<compile_context>
chip_gen: v6e
topology: v6e:2x2x1
jax: 0.10.0
libtpu: 0.0.40
codegen_flags: <defaults>
</compile_context>

<pallas_src>
import functools

import numpy as np
import jax
import jax.numpy as jnp
from jax import lax
from jax.experimental import pallas as pl
from jax.experimental.pallas import tpu as pltpu

_EPS = 1e-5
_SLOPE = 0.2
_KSIZE = 4          # every conv in this model is 4x4
_CIN1_PAD = 4       # pad nc (1 or 3) up to 4 -> conv1 activation is 128 lanes


# ---------------------------------------------------------------------------
# Fused Pallas kernel
# ---------------------------------------------------------------------------

def _fused_disc_kernel(x_ref,
                       rh1_ref, n1_ref,
                       rh2_ref, n2_ref, s2_ref, s2t_ref, g2_ref, b2_ref,
                       rh3_ref, n3_ref, s3_ref, s3t_ref, g3_ref, b3_ref,
                       rh4_ref, n4_ref,
                       o_ref, *, cnt2, cnt3):
    def conv(a, rh_ref, n_ref):
        # Gather-first + stacked-K merge:
        #   P  = [RH_0 @ A | ... | RH_3 @ A]   (lane concat; RH is 0/1 -> exact f32)
        #   out = P @ N_stacked                 (single K=4*W*Cin bf16 MXU matmul)
        parts = [jnp.dot(rh_ref[di], a, preferred_element_type=jnp.float32)
                 for di in range(_KSIZE)]
        p = jnp.concatenate(parts, axis=1).astype(jnp.bfloat16)
        return jnp.dot(p, n_ref[...], preferred_element_type=jnp.float32)

    def lrelu(y):
        return jnp.maximum(y, _SLOPE * y)            # == LeakyReLU(0.2)

    def bn(y, s_ref, st_ref, g_ref, b_ref, count):
        # Channel c of the layer output lives in columns {jo*C + c}; S is the
        # (Wo*C, C) block-identity that sums them.  One matmul gives both
        # sum(y) and sum(y^2) by sublane-concatenating [y ; y*y].
        m = y.shape[0]
        yy = jnp.concatenate([y, y * y], axis=0)                      # (2M, Wo*C)
        col = jnp.dot(yy, s_ref[...], preferred_element_type=jnp.float32)  # (2M, C)
        mean = jnp.sum(col[:m], axis=0, keepdims=True) / count
        mean_sq = jnp.sum(col[m:], axis=0, keepdims=True) / count
        var = mean_sq - mean * mean                   # biased variance (train-mode BN)
        scale = g_ref[...] * lax.rsqrt(var + _EPS)    # (1, C)
        shift = b_ref[...] - mean * scale             # (1, C)
        # Broadcast back to the (1, Wo*C) column layout via S^T.
        scale_f = jnp.dot(scale, st_ref[...], preferred_element_type=jnp.float32)
        shift_f = jnp.dot(shift, st_ref[...], preferred_element_type=jnp.float32)
        return y * scale_f + shift_f

    x = x_ref[...]                                            # (B*32, 32*4) f32
    a1 = lrelu(conv(x, rh1_ref, n1_ref))                      # (B*16, 16*ndf)
    a2 = lrelu(bn(conv(a1, rh2_ref, n2_ref),
                  s2_ref, s2t_ref, g2_ref, b2_ref, cnt2))     # (B*8, 8*2ndf)
    a3 = lrelu(bn(conv(a2, rh3_ref, n3_ref),
                  s3_ref, s3t_ref, g3_ref, b3_ref, cnt3))     # (B*4, 4*4ndf)
    out = conv(a3, rh4_ref, n4_ref)                           # (B, 128): col 0 = logit
    o_ref[...] = out.astype(o_ref.dtype)


# ---------------------------------------------------------------------------
# pallas_call wrapper
# ---------------------------------------------------------------------------

def _zero_index_map(i, nd):
    return (0,) * nd


def fused_discriminator_call(x2d, ops):
    # Packed operands are specialized to a fixed batch size (RH is
    # block-diagonal over B) -- catch mismatches loudly.
    assert x2d.shape[0] == ops["rh1"].shape[2], (
        "batch size of input does not match pack_operands batch size")

    inputs = [x2d,
              ops["rh1"], ops["n1"],
              ops["rh2"], ops["n2"], ops["s2"], ops["s2t"], ops["g2"], ops["b2"],
              ops["rh3"], ops["n3"], ops["s3"], ops["s3t"], ops["g3"], ops["b3"],
              ops["rh4"], ops["n4"]]
    in_specs = [pl.BlockSpec(a.shape, functools.partial(_zero_index_map, nd=a.ndim))
                for a in inputs]

    # Per-channel element counts (B*Ho*Wo) for BatchNorm batch statistics,
    # derived from static operand shapes.
    wo2 = ops["s2"].shape[0] // ops["s2"].shape[1]
    wo3 = ops["s3"].shape[0] // ops["s3"].shape[1]
    cnt2 = float(ops["rh2"].shape[1] * wo2)
    cnt3 = float(ops["rh3"].shape[1] * wo3)
    b_rows, out_cols = ops["rh4"].shape[1], ops["n4"].shape[1]

    return pl.pallas_call(
        functools.partial(_fused_disc_kernel, cnt2=cnt2, cnt3=cnt3),
        out_shape=jax.ShapeDtypeStruct((b_rows, out_cols), jnp.float32),
        grid=(1,),                     # single block: whole net ~0.7 MiB in VMEM
        in_specs=in_specs,
        out_specs=pl.BlockSpec((b_rows, out_cols), lambda i: (0, 0)),
        compiler_params=pltpu.CompilerParams(
            dimension_semantics=("arbitrary",)),
    )(*inputs)


@jax.jit
def discriminator_forward(x_nchw, ops):
    B, C, H, W = x_nchw.shape
    assert C <= _CIN1_PAD
    if C < _CIN1_PAD:                                 # pad channels 3 -> 4 (host side)
        x_nchw = jnp.pad(x_nchw, ((0, 0), (0, _CIN1_PAD - C), (0, 0), (0, 0)))
    x2d = jnp.transpose(x_nchw, (0, 2, 3, 1)).reshape(B * H, W * _CIN1_PAD)
    x2d = x2d.astype(jnp.float32)
    out = fused_discriminator_call(x2d, ops)
    return out[:, 0]                   # (B,) == output.view(-1, 1).squeeze(1)


# ---------------------------------------------------------------------------
# One-time operand packing (weights -> RH / stacked-N / S matrices), host numpy
# ---------------------------------------------------------------------------

def _pack_conv(w_oihw, B, H, W, stride, pad, out_cols=None):
    """Pack an OIHW conv weight into (RH_di, N_stacked) for the fused kernel.

    RH_di (k, B*Ho, B*H): 0/1 row gather (H-index + zero padding per batch).
    N     (k*W*Cin, ncol): weights in a Wo-block column layout, stacked over
                           di along the contraction axis (W-gather + padding
                           folded in), so the conv is ONE big matmul.
    """
    Cout, Cin, k, _ = w_oihw.shape
    Ho = (H + 2 * pad - k) // stride + 1
    Wo = (W + 2 * pad - k) // stride + 1

    rh = np.zeros((k, B * Ho, B * H), np.float32)
    for di in range(k):
        for b in range(B):
            for io in range(Ho):
                h = stride * io + di - pad
                if 0 <= h < H:
                    rh[di, b * Ho + io, b * H + h] = 1.0

    ncol = Wo * Cout if out_cols is None else out_cols
    n = np.zeros((k * W * Cin, ncol), np.float32)
    for di in range(k):
        for jo in range(Wo):
            for dj in range(k):
                w = stride * jo + dj - pad
                if 0 <= w < W:
                    r0 = di * W * Cin + w * Cin
                    n[r0:r0 + Cin, jo * Cout:(jo + 1) * Cout] = w_oihw[:, :, di, dj].T
    return rh, n, Ho, Wo


def pack_operands(params, B, H=32, W=32):
    w1 = np.asarray(params["w1"])
    w2 = np.asarray(params["w2"])
    w3 = np.asarray(params["w3"])
    w4 = np.asarray(params["w4"])

    # Pad conv1 input channels to 4 so conv1's activation is 128-lane dense.
    nc = w1.shape[1]
    w1p = np.zeros((w1.shape[0], _CIN1_PAD, _KSIZE, _KSIZE), np.float32)
    w1p[:, :nc] = w1

    rh1, n1, H1, W1 = _pack_conv(w1p, B, H, W, 2, 1)
    rh2, n2, H2, W2 = _pack_conv(w2, B, H1, W1, 2, 1)
    rh3, n3, H3, W3 = _pack_conv(w3, B, H2, W2, 2, 1)
    # conv4 (Ho=Wo=Cout=1): pad its output columns to 128 so the final store
    # is lane-dense; column 0 carries the logit.
    rh4, n4, H4, W4 = _pack_conv(w4, B, H3, W3, 1, 0, out_cols=128)
    assert H4 == 1 and W4 == 1, "DCGANDiscriminator32_BN expects 32x32 inputs"

    c2, c3 = w2.shape[0], w3.shape[0]
    s2 = np.tile(np.eye(c2, dtype=np.float32), (W2, 1))    # (Wo2*C2, C2)
    s3 = np.tile(np.eye(c3, dtype=np.float32), (W3, 1))    # (Wo3*C3, C3)

    bf16 = jnp.bfloat16
    return dict(
        # 0/1 gather matrices & BN selection/broadcast matrices stay f32
        # (exact gathers, f32 elementwise path — v5e-friendly); the big weight
        # operands (the only sizeable DMA) ship in bf16 for the MXU.
        rh1=jnp.asarray(rh1), n1=jnp.asarray(n1, bf16),
        rh2=jnp.asarray(rh2), n2=jnp.asarray(n2, bf16),
        s2=jnp.asarray(s2), s2t=jnp.asarray(np.ascontiguousarray(s2.T)),
        g2=params["g2"].reshape(1, -1).astype(jnp.float32),
        b2=params["b2"].reshape(1, -1).astype(jnp.float32),
        rh3=jnp.asarray(rh3), n3=jnp.asarray(n3, bf16),
        s3=jnp.asarray(s3), s3t=jnp.asarray(np.ascontiguousarray(s3.T)),
        g3=params["g3"].reshape(1, -1).astype(jnp.float32),
        b3=params["b3"].reshape(1, -1).astype(jnp.float32),
        rh4=jnp.asarray(rh4), n4=jnp.asarray(n4, bf16),
    )


def make_params(key, nc=3, ndf=8):
    ks = jax.random.split(key, 6)
    std = 0.05
    return {
        # conv weights in PyTorch OIHW layout (as nn.Conv2d would hold them)
        "w1": jax.random.normal(ks[0], (ndf, nc, 4, 4), jnp.float32) * std,
        "w2": jax.random.normal(ks[1], (ndf * 2, ndf, 4, 4), jnp.float32) * std,
        "w3": jax.random.normal(ks[2], (ndf * 4, ndf * 2, 4, 4), jnp.float32) * std,
        "w4": jax.random.normal(ks[3], (1, ndf * 4, 4, 4), jnp.float32) * std,
        # BatchNorm affine params
        "g2": 1.0 + 0.1 * jax.random.normal(ks[4], (ndf * 2,), jnp.float32),
        "b2": jnp.zeros((ndf * 2,), jnp.float32),
        "g3": 1.0 + 0.1 * jax.random.normal(ks[5], (ndf * 4,), jnp.float32),
        "b3": jnp.zeros((ndf * 4,), jnp.float32),
    }


# ---------------------------------------------------------------------------
# Pure-JAX reference (for correctness check, full f32)
# ---------------------------------------------------------------------------

def reference_forward(x, params):
    def conv(x, w, stride, pad):
        return lax.conv_general_dilated(
            x, w, (stride, stride), [(pad, pad), (pad, pad)],
            dimension_numbers=("NCHW", "OIHW", "NCHW"))

    def lrelu(x):
        return jnp.where(x >= 0, x, 0.2 * x)

    def bn(x, g, b):
        mean = jnp.mean(x, axis=(0, 2, 3), keepdims=True)
        var = jnp.mean((x - mean) ** 2, axis=(0, 2, 3), keepdims=True)
        xn = (x - mean) * lax.rsqrt(var + 1e-5)
        return xn * g.reshape(1, -1, 1, 1) + b.reshape(1, -1, 1, 1)

    h = lrelu(conv(x, params["w1"], 2, 1))
    h = lrelu(bn(conv(h, params["w2"], 2, 1), params["g2"], params["b2"]))
    h = lrelu(bn(conv(h, params["w3"], 2, 1), params["g3"], params["b3"]))
    h = conv(h, params["w4"], 1, 0)
    return h.reshape(-1, 1).squeeze(1)


if __name__ == "__main__":
    key = jax.random.PRNGKey(0)
    k_x, k_p = jax.random.split(key)

    B, nc, ndf = 2, 3, 8                       # opt.dataset='cifar10' -> nc=3
    x = jax.random.normal(k_x, (B, nc, 32, 32), jnp.float32)
    params = make_params(k_p, nc=nc, ndf=ndf)
    ops = pack_operands(params, B)

    out = discriminator_forward(x, ops)
    out = jax.block_until_ready(out)

    ref = reference_forward(x, params)
    assert out.shape == (B,), out.shape
    # bf16 conv weights / MXU activations -> looser tolerance vs. f32 reference.
    assert jnp.allclose(out, ref, rtol=5e-2, atol=5e-2), (out, ref)

    print("KERNEL_OK")
</pallas_src>

<mosaic_0001>
module attributes {stable_mosaic.version = 11 : i64} {
  func.func @_fused_disc_kernel(%arg0: i32, %arg1: memref<64x128xf32, #tpu.memory_space<vmem>>, %arg2: memref<4x32x64xf32, #tpu.memory_space<vmem>>, %arg3: memref<512x128xbf16, #tpu.memory_space<vmem>>, %arg4: memref<4x16x32xf32, #tpu.memory_space<vmem>>, %arg5: memref<512x128xbf16, #tpu.memory_space<vmem>>, %arg6: memref<128x16xf32, #tpu.memory_space<vmem>>, %arg7: memref<16x128xf32, #tpu.memory_space<vmem>>, %arg8: memref<1x16xf32, #tpu.memory_space<vmem>>, %arg9: memref<1x16xf32, #tpu.memory_space<vmem>>, %arg10: memref<4x8x16xf32, #tpu.memory_space<vmem>>, %arg11: memref<512x128xbf16, #tpu.memory_space<vmem>>, %arg12: memref<128x32xf32, #tpu.memory_space<vmem>>, %arg13: memref<32x128xf32, #tpu.memory_space<vmem>>, %arg14: memref<1x32xf32, #tpu.memory_space<vmem>>, %arg15: memref<1x32xf32, #tpu.memory_space<vmem>>, %arg16: memref<4x2x8xf32, #tpu.memory_space<vmem>>, %arg17: memref<512x128xbf16, #tpu.memory_space<vmem>>, %arg18: memref<2x128xf32, #tpu.memory_space<vmem>>) attributes {dimension_semantics = [#tpu.dimension_semantics<arbitrary>], iteration_bounds = array<i64: 1>, scalar_prefetch = 0 : i64, scratch_operands = 0 : i64, tpu.core_type = #tpu.core_type<tc>, window_params = [{pipeline_mode = #tpu.pipeline_mode<synchronous>, transform_indices = @transform_0, window_bounds = array<i64: 64, 128>}, {pipeline_mode = #tpu.pipeline_mode<synchronous>, transform_indices = @transform_1, window_bounds = array<i64: 4, 32, 64>}, {pipeline_mode = #tpu.pipeline_mode<synchronous>, transform_indices = @transform_2, window_bounds = array<i64: 512, 128>}, {pipeline_mode = #tpu.pipeline_mode<synchronous>, transform_indices = @transform_3, window_bounds = array<i64: 4, 16, 32>}, {pipeline_mode = #tpu.pipeline_mode<synchronous>, transform_indices = @transform_4, window_bounds = array<i64: 512, 128>}, {pipeline_mode = #tpu.pipeline_mode<synchronous>, transform_indices = @transform_5, window_bounds = array<i64: 128, 16>}, {pipeline_mode = #tpu.pipeline_mode<synchronous>, transform_indices = @transform_6, window_bounds = array<i64: 16, 128>}, {pipeline_mode = #tpu.pipeline_mode<synchronous>, transform_indices = @transform_7, window_bounds = array<i64: 1, 16>}, {pipeline_mode = #tpu.pipeline_mode<synchronous>, transform_indices = @transform_8, window_bounds = array<i64: 1, 16>}, {pipeline_mode = #tpu.pipeline_mode<synchronous>, transform_indices = @transform_9, window_bounds = array<i64: 4, 8, 16>}, {pipeline_mode = #tpu.pipeline_mode<synchronous>, transform_indices = @transform_10, window_bounds = array<i64: 512, 128>}, {pipeline_mode = #tpu.pipeline_mode<synchronous>, transform_indices = @transform_11, window_bounds = array<i64: 128, 32>}, {pipeline_mode = #tpu.pipeline_mode<synchronous>, transform_indices = @transform_12, window_bounds = array<i64: 32, 128>}, {pipeline_mode = #tpu.pipeline_mode<synchronous>, transform_indices = @transform_13, window_bounds = array<i64: 1, 32>}, {pipeline_mode = #tpu.pipeline_mode<synchronous>, transform_indices = @transform_14, window_bounds = array<i64: 1, 32>}, {pipeline_mode = #tpu.pipeline_mode<synchronous>, transform_indices = @transform_15, window_bounds = array<i64: 4, 2, 8>}, {pipeline_mode = #tpu.pipeline_mode<synchronous>, transform_indices = @transform_16, window_bounds = array<i64: 512, 128>}, {pipeline_mode = #tpu.pipeline_mode<synchronous>, transform_indices = @transform_17, window_bounds = array<i64: 2, 128>}]} {
    %c0 = arith.constant 0 : index
    %c0_0 = arith.constant 0 : index
    %0 = vector.load %arg1[%c0, %c0_0] : memref<64x128xf32, #tpu.memory_space<vmem>>, vector<64x128xf32>
    %c0_1 = arith.constant 0 : index
    %c0_2 = arith.constant 0 : index
    %c0_3 = arith.constant 0 : index
    %1 = vector.load %arg2[%c0_1, %c0_2, %c0_3] : memref<4x32x64xf32, #tpu.memory_space<vmem>>, vector<1x32x64xf32>
    %2 = vector.shape_cast %1 : vector<1x32x64xf32> to vector<32x64xf32>
    %cst = arith.constant dense<0.000000e+00> : vector<32x128xf32>
    %3 = tpu.matmul %2, %0, %cst {dimension_numbers = #tpu.dot_dimension_numbers<[1], [0], [0], [1], [0, 0, 1, 1], [], []>} : vector<32x64xf32>, vector<64x128xf32>, vector<32x128xf32> -> vector<32x128xf32>
    %c1 = arith.constant 1 : index
    %c0_4 = arith.constant 0 : index
    %c0_5 = arith.constant 0 : index
    %4 = vector.load %arg2[%c1, %c0_4, %c0_5] : memref<4x32x64xf32, #tpu.memory_space<vmem>>, vector<1x32x64xf32>
    %5 = vector.shape_cast %4 : vector<1x32x64xf32> to vector<32x64xf32>
    %cst_6 = arith.constant dense<0.000000e+00> : vector<32x128xf32>
    %6 = tpu.matmul %5, %0, %cst_6 {dimension_numbers = #tpu.dot_dimension_numbers<[1], [0], [0], [1], [0, 0, 1, 1], [], []>} : vector<32x64xf32>, vector<64x128xf32>, vector<32x128xf32> -> vector<32x128xf32>
    %c2 = arith.constant 2 : index
    %c0_7 = arith.constant 0 : index
    %c0_8 = arith.constant 0 : index
    %7 = vector.load %arg2[%c2, %c0_7, %c0_8] : memref<4x32x64xf32, #tpu.memory_space<vmem>>, vector<1x32x64xf32>
    %8 = vector.shape_cast %7 : vector<1x32x64xf32> to vector<32x64xf32>
    %cst_9 = arith.constant dense<0.000000e+00> : vector<32x128xf32>
    %9 = tpu.matmul %8, %0, %cst_9 {dimension_numbers = #tpu.dot_dimension_numbers<[1], [0], [0], [1], [0, 0, 1, 1], [], []>} : vector<32x64xf32>, vector<64x128xf32>, vector<32x128xf32> -> vector<32x128xf32>
    %c3 = arith.constant 3 : index
    %c0_10 = arith.constant 0 : index
    %c0_11 = arith.constant 0 : index
    %10 = vector.load %arg2[%c3, %c0_10, %c0_11] : memref<4x32x64xf32, #tpu.memory_space<vmem>>, vector<1x32x64xf32>
    %11 = vector.shape_cast %10 : vector<1x32x64xf32> to vector<32x64xf32>
    %cst_12 = arith.constant dense<0.000000e+00> : vector<32x128xf32>
    %12 = tpu.matmul %11, %0, %cst_12 {dimension_numbers = #tpu.dot_dimension_numbers<[1], [0], [0], [1], [0, 0, 1, 1], [], []>} : vector<32x64xf32>, vector<64x128xf32>, vector<32x128xf32> -> vector<32x128xf32>
    %13 = tpu.concatenate %3, %6, %9, %12 in 1 : vector<32x128xf32>, vector<32x128xf32>, vector<32x128xf32>, vector<32x128xf32> -> vector<32x512xf32>
    %14 = arith.truncf %13 : vector<32x512xf32> to vector<32x512xbf16>
    %c0_13 = arith.constant 0 : index
    %c0_14 = arith.constant 0 : index
    %15 = vector.load %arg3[%c0_13, %c0_14] : memref<512x128xbf16, #tpu.memory_space<vmem>>, vector<512x128xbf16>
    %cst_15 = arith.constant dense<0.000000e+00> : vector<32x128xf32>
    %16 = tpu.matmul %14, %15, %cst_15 {dimension_numbers = #tpu.dot_dimension_numbers<[1], [0], [0], [1], [0, 0, 1, 1], [], []>} : vector<32x512xbf16>, vector<512x128xbf16>, vector<32x128xf32> -> vector<32x128xf32>
    %cst_16 = arith.constant 2.000000e-01 : f32
    %17 = vector.broadcast %cst_16 : f32 to vector<32x128xf32>
    %18 = arith.mulf %17, %16 : vector<32x128xf32>
    %19 = arith.maximumf %16, %18 : vector<32x128xf32>
    %c0_17 = arith.constant 0 : index
    %c0_18 = arith.constant 0 : index
    %c0_19 = arith.constant 0 : index
    %20 = vector.load %arg4[%c0_17, %c0_18, %c0_19] : memref<4x16x32xf32, #tpu.memory_space<vmem>>, vector<1x16x32xf32>
    %21 = vector.shape_cast %20 : vector<1x16x32xf32> to vector<16x32xf32>
    %cst_20 = arith.constant dense<0.000000e+00> : vector<16x128xf32>
    %22 = tpu.matmul %21, %19, %cst_20 {dimension_numbers = #tpu.dot_dimension_numbers<[1], [0], [0], [1], [0, 0, 1, 1], [], []>} : vector<16x32xf32>, vector<32x128xf32>, vector<16x128xf32> -> vector<16x128xf32>
    %c1_21 = arith.constant 1 : index
    %c0_22 = arith.constant 0 : index
    %c0_23 = arith.constant 0 : index
    %23 = vector.load %arg4[%c1_21, %c0_22, %c0_23] : memref<4x16x32xf32, #tpu.memory_space<vmem>>, vector<1x16x32xf32>
    %24 = vector.shape_cast %23 : vector<1x16x32xf32> to vector<16x32xf32>
    %cst_24 = arith.constant dense<0.000000e+00> : vector<16x128xf32>
    %25 = tpu.matmul %24, %19, %cst_24 {dimension_numbers = #tpu.dot_dimension_numbers<[1], [0], [0], [1], [0, 0, 1, 1], [], []>} : vector<16x32xf32>, vector<32x128xf32>, vector<16x128xf32> -> vector<16x128xf32>
    %c2_25 = arith.constant 2 : index
    %c0_26 = arith.constant 0 : index
    %c0_27 = arith.constant 0 : index
    %26 = vector.load %arg4[%c2_25, %c0_26, %c0_27] : memref<4x16x32xf32, #tpu.memory_space<vmem>>, vector<1x16x32xf32>
    %27 = vector.shape_cast %26 : vector<1x16x32xf32> to vector<16x32xf32>
    %cst_28 = arith.constant dense<0.000000e+00> : vector<16x128xf32>
    %28 = tpu.matmul %27, %19, %cst_28 {dimension_numbers = #tpu.dot_dimension_numbers<[1], [0], [0], [1], [0, 0, 1, 1], [], []>} : vector<16x32xf32>, vector<32x128xf32>, vector<16x128xf32> -> vector<16x128xf32>
    %c3_29 = arith.constant 3 : index
    %c0_30 = arith.constant 0 : index
    %c0_31 = arith.constant 0 : index
    %29 = vector.load %arg4[%c3_29, %c0_30, %c0_31] : memref<4x16x32xf32, #tpu.memory_space<vmem>>, vector<1x16x32xf32>
    %30 = vector.shape_cast %29 : vector<1x16x32xf32> to vector<16x32xf32>
    %cst_32 = arith.constant dense<0.000000e+00> : vector<16x128xf32>
    %31 = tpu.matmul %30, %19, %cst_32 {dimension_numbers = #tpu.dot_dimension_numbers<[1], [0], [0], [1], [0, 0, 1, 1], [], []>} : vector<16x32xf32>, vector<32x128xf32>, vector<16x128xf32> -> vector<16x128xf32>
    %32 = tpu.concatenate %22, %25, %28, %31 in 1 : vector<16x128xf32>, vector<16x128xf32>, vector<16x128xf32>, vector<16x128xf32> -> vector<16x512xf32>
    %33 = arith.truncf %32 : vector<16x512xf32> to vector<16x512xbf16>
    %c0_33 = arith.constant 0 : index
    %c0_34 = arith.constant 0 : index
    %34 = vector.load %arg5[%c0_33, %c0_34] : memref<512x128xbf16, #tpu.memory_space<vmem>>, vector<512x128xbf16>
    %cst_35 = arith.constant dense<0.000000e+00> : vector<16x128xf32>
    %35 = tpu.matmul %33, %34, %cst_35 {dimension_numbers = #tpu.dot_dimension_numbers<[1], [0], [0], [1], [0, 0, 1, 1], [], []>} : vector<16x512xbf16>, vector<512x128xbf16>, vector<16x128xf32> -> vector<16x128xf32>
    %36 = arith.mulf %35, %35 : vector<16x128xf32>
    %37 = tpu.concatenate %35, %36 in 0 : vector<16x128xf32>, vector<16x128xf32> -> vector<32x128xf32>
    %c0_36 = arith.constant 0 : index
    %c0_37 = arith.constant 0 : index
    %38 = vector.load %arg6[%c0_36, %c0_37] : memref<128x16xf32, #tpu.memory_space<vmem>>, vector<128x16xf32>
    %cst_38 = arith.constant dense<0.000000e+00> : vector<32x16xf32>
    %39 = tpu.matmul %37, %38, %cst_38 {dimension_numbers = #tpu.dot_dimension_numbers<[1], [0], [0], [1], [0, 0, 1, 1], [], []>} : vector<32x128xf32>, vector<128x16xf32>, vector<32x16xf32> -> vector<32x16xf32>
    %40 = vector.extract_strided_slice %39 {offsets = [0, 0], sizes = [16, 16], strides = [1, 1]} : vector<32x16xf32> to vector<16x16xf32>
    %cst_39 = arith.constant dense<0.000000e+00> : vector<16xf32>
    %41 = vector.multi_reduction <add>, %40, %cst_39 [0] : vector<16x16xf32> to vector<16xf32>
    %42 = vector.shape_cast %41 : vector<16xf32> to vector<1x16xf32>
    %cst_40 = arith.constant 1.280000e+02 : f32
    %43 = vector.broadcast %cst_40 : f32 to vector<1x16xf32>
    %44 = arith.divf %42, %43 : vector<1x16xf32>
    %45 = vector.extract_strided_slice %39 {offsets = [16, 0], sizes = [16, 16], strides = [1, 1]} : vector<32x16xf32> to vector<16x16xf32>
    %cst_41 = arith.constant dense<0.000000e+00> : vector<16xf32>
    %46 = vector.multi_reduction <add>, %45, %cst_41 [0] : vector<16x16xf32> to vector<16xf32>
    %47 = vector.shape_cast %46 : vector<16xf32> to vector<1x16xf32>
    %cst_42 = arith.constant 1.280000e+02 : f32
    %48 = vector.broadcast %cst_42 : f32 to vector<1x16xf32>
    %49 = arith.divf %47, %48 : vector<1x16xf32>
    %50 = arith.mulf %44, %44 : vector<1x16xf32>
    %51 = arith.subf %49, %50 : vector<1x16xf32>
    %c0_43 = arith.constant 0 : index
    %c0_44 = arith.constant 0 : index
    %52 = vector.load %arg8[%c0_43, %c0_44] : memref<1x16xf32, #tpu.memory_space<vmem>>, vector<1x16xf32>
    %cst_45 = arith.constant 9.99999974E-6 : f32
    %53 = vector.broadcast %cst_45 : f32 to vector<1x16xf32>
    %54 = arith.addf %51, %53 : vector<1x16xf32>
    %55 = math.rsqrt %54 : vector<1x16xf32>
    %56 = arith.mulf %52, %55 : vector<1x16xf32>
    %c0_46 = arith.constant 0 : index
    %c0_47 = arith.constant 0 : index
    %57 = vector.load %arg9[%c0_46, %c0_47] : memref<1x16xf32, #tpu.memory_space<vmem>>, vector<1x16xf32>
    %58 = arith.mulf %44, %56 : vector<1x16xf32>
    %59 = arith.subf %57, %58 : vector<1x16xf32>
    %c0_48 = arith.constant 0 : index
    %c0_49 = arith.constant 0 : index
    %60 = vector.load %arg7[%c0_48, %c0_49] : memref<16x128xf32, #tpu.memory_space<vmem>>, vector<16x128xf32>
    %cst_50 = arith.constant dense<0.000000e+00> : vector<1x128xf32>
    %61 = tpu.matmul %56, %60, %cst_50 {dimension_numbers = #tpu.dot_dimension_numbers<[1], [0], [0], [1], [0, 0, 1, 1], [], []>} : vector<1x16xf32>, vector<16x128xf32>, vector<1x128xf32> -> vector<1x128xf32>
    %c0_51 = arith.constant 0 : index
    %c0_52 = arith.constant 0 : index
    %62 = vector.load %arg7[%c0_51, %c0_52] : memref<16x128xf32, #tpu.memory_space<vmem>>, vector<16x128xf32>
    %cst_53 = arith.constant dense<0.000000e+00> : vector<1x128xf32>
    %63 = tpu.matmul %59, %62, %cst_53 {dimension_numbers = #tpu.dot_dimension_numbers<[1], [0], [0], [1], [0, 0, 1, 1], [], []>} : vector<1x16xf32>, vector<16x128xf32>, vector<1x128xf32> -> vector<1x128xf32>
    %64 = vector.broadcast %61 : vector<1x128xf32> to vector<16x128xf32>
    %65 = arith.mulf %35, %64 : vector<16x128xf32>
    %66 = vector.broadcast %63 : vector<1x128xf32> to vector<16x128xf32>
    %67 = arith.addf %65, %66 : vector<16x128xf32>
    %cst_54 = arith.constant 2.000000e-01 : f32
    %68 = vector.broadcast %cst_54 : f32 to vector<16x128xf32>
    %69 = arith.mulf %68, %67 : vector<16x128xf32>
    %70 = arith.maximumf %67, %69 : vector<16x128xf32>
    %c0_55 = arith.constant 0 : index
    %c0_56 = arith.constant 0 : index
    %c0_57 = arith.constant 0 : index
    %71 = vector.load %arg10[%c0_55, %c0_56, %c0_57] : memref<4x8x16xf32, #tpu.memory_space<vmem>>, vector<1x8x16xf32>
    %72 = vector.shape_cast %71 : vector<1x8x16xf32> to vector<8x16xf32>
    %cst_58 = arith.constant dense<0.000000e+00> : vector<8x128xf32>
    %73 = tpu.matmul %72, %70, %cst_58 {dimension_numbers = #tpu.dot_dimension_numbers<[1], [0], [0], [1], [0, 0, 1, 1], [], []>} : vector<8x16xf32>, vector<16x128xf32>, vector<8x128xf32> -> vector<8x128xf32>
    %c1_59 = arith.constant 1 : index
    %c0_60 = arith.constant 0 : index
    %c0_61 = arith.constant 0 : index
    %74 = vector.load %arg10[%c1_59, %c0_60, %c0_61] : memref<4x8x16xf32, #tpu.memory_space<vmem>>, vector<1x8x16xf32>
    %75 = vector.shape_cast %74 : vector<1x8x16xf32> to vector<8x16xf32>
    %cst_62 = arith.constant dense<0.000000e+00> : vector<8x128xf32>
    %76 = tpu.matmul %75, %70, %cst_62 {dimension_numbers = #tpu.dot_dimension_numbers<[1], [0], [0], [1], [0, 0, 1, 1], [], []>} : vector<8x16xf32>, vector<16x128xf32>, vector<8x128xf32> -> vector<8x128xf32>
    %c2_63 = arith.constant 2 : index
    %c0_64 = arith.constant 0 : index
    %c0_65 = arith.constant 0 : index
    %77 = vector.load %arg10[%c2_63, %c0_64, %c0_65] : memref<4x8x16xf32, #tpu.memory_space<vmem>>, vector<1x8x16xf32>
    %78 = vector.shape_cast %77 : vector<1x8x16xf32> to vector<8x16xf32>
    %cst_66 = arith.constant dense<0.000000e+00> : vector<8x128xf32>
    %79 = tpu.matmul %78, %70, %cst_66 {dimension_numbers = #tpu.dot_dimension_numbers<[1], [0], [0], [1], [0, 0, 1, 1], [], []>} : vector<8x16xf32>, vector<16x128xf32>, vector<8x128xf32> -> vector<8x128xf32>
    %c3_67 = arith.constant 3 : index
    %c0_68 = arith.constant 0 : index
    %c0_69 = arith.constant 0 : index
    %80 = vector.load %arg10[%c3_67, %c0_68, %c0_69] : memref<4x8x16xf32, #tpu.memory_space<vmem>>, vector<1x8x16xf32>
    %81 = vector.shape_cast %80 : vector<1x8x16xf32> to vector<8x16xf32>
    %cst_70 = arith.constant dense<0.000000e+00> : vector<8x128xf32>
    %82 = tpu.matmul %81, %70, %cst_70 {dimension_numbers = #tpu.dot_dimension_numbers<[1], [0], [0], [1], [0, 0, 1, 1], [], []>} : vector<8x16xf32>, vector<16x128xf32>, vector<8x128xf32> -> vector<8x128xf32>
    %83 = tpu.concatenate %73, %76, %79, %82 in 1 : vector<8x128xf32>, vector<8x128xf32>, vector<8x128xf32>, vector<8x128xf32> -> vector<8x512xf32>
    %84 = arith.truncf %83 : vector<8x512xf32> to vector<8x512xbf16>
    %c0_71 = arith.constant 0 : index
    %c0_72 = arith.constant 0 : index
    %85 = vector.load %arg11[%c0_71, %c0_72] : memref<512x128xbf16, #tpu.memory_space<vmem>>, vector<512x128xbf16>
    %cst_73 = arith.constant dense<0.000000e+00> : vector<8x128xf32>
    %86 = tpu.matmul %84, %85, %cst_73 {dimension_numbers = #tpu.dot_dimension_numbers<[1], [0], [0], [1], [0, 0, 1, 1], [], []>} : vector<8x512xbf16>, vector<512x128xbf16>, vector<8x128xf32> -> vector<8x128xf32>
    %87 = arith.mulf %86, %86 : vector<8x128xf32>
    %88 = tpu.concatenate %86, %87 in 0 : vector<8x128xf32>, vector<8x128xf32> -> vector<16x128xf32>
    %c0_74 = arith.constant 0 : index
    %c0_75 = arith.constant 0 : index
    %89 = vector.load %arg12[%c0_74, %c0_75] : memref<128x32xf32, #tpu.memory_space<vmem>>, vector<128x32xf32>
    %cst_76 = arith.constant dense<0.000000e+00> : vector<16x32xf32>
    %90 = tpu.matmul %88, %89, %cst_76 {dimension_numbers = #tpu.dot_dimension_numbers<[1], [0], [0], [1], [0, 0, 1, 1], [], []>} : vector<16x128xf32>, vector<128x32xf32>, vector<16x32xf32> -> vector<16x32xf32>
    %91 = vector.extract_strided_slice %90 {offsets = [0, 0], sizes = [8, 32], strides = [1, 1]} : vector<16x32xf32> to vector<8x32xf32>
    %cst_77 = arith.constant dense<0.000000e+00> : vector<32xf32>
    %92 = vector.multi_reduction <add>, %91, %cst_77 [0] : vector<8x32xf32> to vector<32xf32>
    %93 = vector.shape_cast %92 : vector<32xf32> to vector<1x32xf32>
    %cst_78 = arith.constant 3.200000e+01 : f32
    %94 = vector.broadcast %cst_78 : f32 to vector<1x32xf32>
    %95 = arith.divf %93, %94 : vector<1x32xf32>
    %96 = vector.extract_strided_slice %90 {offsets = [8, 0], sizes = [8, 32], strides = [1, 1]} : vector<16x32xf32> to vector<8x32xf32>
    %cst_79 = arith.constant dense<0.000000e+00> : vector<32xf32>
    %97 = vector.multi_reduction <add>, %96, %cst_79 [0] : vector<8x32xf32> to vector<32xf32>
    %98 = vector.shape_cast %97 : vector<32xf32> to vector<1x32xf32>
    %cst_80 = arith.constant 3.200000e+01 : f32
    %99 = vector.broadcast %cst_80 : f32 to vector<1x32xf32>
    %100 = arith.divf %98, %99 : vector<1x32xf32>
    %101 = arith.mulf %95, %95 : vector<1x32xf32>
    %102 = arith.subf %100, %101 : vector<1x32xf32>
    %c0_81 = arith.constant 0 : index
    %c0_82 = arith.constant 0 : index
    %103 = vector.load %arg14[%c0_81, %c0_82] : memref<1x32xf32, #tpu.memory_space<vmem>>, vector<1x32xf32>
    %cst_83 = arith.constant 9.99999974E-6 : f32
    %104 = vector.broadcast %cst_83 : f32 to vector<1x32xf32>
    %105 = arith.addf %102, %104 : vector<1x32xf32>
    %106 = math.rsqrt %105 : vector<1x32xf32>
    %107 = arith.mulf %103, %106 : vector<1x32xf32>
    %c0_84 = arith.constant 0 : index
    %c0_85 = arith.constant 0 : index
    %108 = vector.load %arg15[%c0_84, %c0_85] : memref<1x32xf32, #tpu.memory_space<vmem>>, vector<1x32xf32>
    %109 = arith.mulf %95, %107 : vector<1x32xf32>
    %110 = arith.subf %108, %109 : vector<1x32xf32>
    %c0_86 = arith.constant 0 : index
    %c0_87 = arith.constant 0 : index
    %111 = vector.load %arg13[%c0_86, %c0_87] : memref<32x128xf32, #tpu.memory_space<vmem>>, vector<32x128xf32>
    %cst_88 = arith.constant dense<0.000000e+00> : vector<1x128xf32>
    %112 = tpu.matmul %107, %111, %cst_88 {dimension_numbers = #tpu.dot_dimension_numbers<[1], [0], [0], [1], [0, 0, 1, 1], [], []>} : vector<1x32xf32>, vector<32x128xf32>, vector<1x128xf32> -> vector<1x128xf32>
    %c0_89 = arith.constant 0 : index
    %c0_90 = arith.constant 0 : index
    %113 = vector.load %arg13[%c0_89, %c0_90] : memref<32x128xf32, #tpu.memory_space<vmem>>, vector<32x128xf32>
    %cst_91 = arith.constant dense<0.000000e+00> : vector<1x128xf32>
    %114 = tpu.matmul %110, %113, %cst_91 {dimension_numbers = #tpu.dot_dimension_numbers<[1], [0], [0], [1], [0, 0, 1, 1], [], []>} : vector<1x32xf32>, vector<32x128xf32>, vector<1x128xf32> -> vector<1x128xf32>
    %115 = vector.broadcast %112 : vector<1x128xf32> to vector<8x128xf32>
    %116 = arith.mulf %86, %115 : vector<8x128xf32>
    %117 = vector.broadcast %114 : vector<1x128xf32> to vector<8x128xf32>
    %118 = arith.addf %116, %117 : vector<8x128xf32>
    %cst_92 = arith.constant 2.000000e-01 : f32
    %119 = vector.broadcast %cst_92 : f32 to vector<8x128xf32>
    %120 = arith.mulf %119, %118 : vector<8x128xf32>
    %121 = arith.maximumf %118, %120 : vector<8x128xf32>
    %c0_93 = arith.constant 0 : index
    %c0_94 = arith.constant 0 : index
    %c0_95 = arith.constant 0 : index
    %122 = vector.load %arg16[%c0_93, %c0_94, %c0_95] : memref<4x2x8xf32, #tpu.memory_space<vmem>>, vector<1x2x8xf32>
    %123 = vector.shape_cast %122 : vector<1x2x8xf32> to vector<2x8xf32>
    %cst_96 = arith.constant dense<0.000000e+00> : vector<2x128xf32>
    %124 = tpu.matmul %123, %121, %cst_96 {dimension_numbers = #tpu.dot_dimension_numbers<[1], [0], [0], [1], [0, 0, 1, 1], [], []>} : vector<2x8xf32>, vector<8x128xf32>, vector<2x128xf32> -> vector<2x128xf32>
    %c1_97 = arith.constant 1 : index
    %c0_98 = arith.constant 0 : index
    %c0_99 = arith.constant 0 : index
    %125 = vector.load %arg16[%c1_97, %c0_98, %c0_99] : memref<4x2x8xf32, #tpu.memory_space<vmem>>, vector<1x2x8xf32>
    %126 = vector.shape_cast %125 : vector<1x2x8xf32> to vector<2x8xf32>
    %cst_100 = arith.constant dense<0.000000e+00> : vector<2x128xf32>
    %127 = tpu.matmul %126, %121, %cst_100 {dimension_numbers = #tpu.dot_dimension_numbers<[1], [0], [0], [1], [0, 0, 1, 1], [], []>} : vector<2x8xf32>, vector<8x128xf32>, vector<2x128xf32> -> vector<2x128xf32>
    %c2_101 = arith.constant 2 : index
    %c0_102 = arith.constant 0 : index
    %c0_103 = arith.constant 0 : index
    %128 = vector.load %arg16[%c2_101, %c0_102, %c0_103] : memref<4x2x8xf32, #tpu.memory_space<vmem>>, vector<1x2x8xf32>
    %129 = vector.shape_cast %128 : vector<1x2x8xf32> to vector<2x8xf32>
    %cst_104 = arith.constant dense<0.000000e+00> : vector<2x128xf32>
    %130 = tpu.matmul %129, %121, %cst_104 {dimension_numbers = #tpu.dot_dimension_numbers<[1], [0], [0], [1], [0, 0, 1, 1], [], []>} : vector<2x8xf32>, vector<8x128xf32>, vector<2x128xf32> -> vector<2x128xf32>
    %c3_105 = arith.constant 3 : index
    %c0_106 = arith.constant 0 : index
    %c0_107 = arith.constant 0 : index
    %131 = vector.load %arg16[%c3_105, %c0_106, %c0_107] : memref<4x2x8xf32, #tpu.memory_space<vmem>>, vector<1x2x8xf32>
    %132 = vector.shape_cast %131 : vector<1x2x8xf32> to vector<2x8xf32>
    %cst_108 = arith.constant dense<0.000000e+00> : vector<2x128xf32>
    %133 = tpu.matmul %132, %121, %cst_108 {dimension_numbers = #tpu.dot_dimension_numbers<[1], [0], [0], [1], [0, 0, 1, 1], [], []>} : vector<2x8xf32>, vector<8x128xf32>, vector<2x128xf32> -> vector<2x128xf32>
    %134 = tpu.concatenate %124, %127, %130, %133 in 1 : vector<2x128xf32>, vector<2x128xf32>, vector<2x128xf32>, vector<2x128xf32> -> vector<2x512xf32>
    %135 = arith.truncf %134 : vector<2x512xf32> to vector<2x512xbf16>
    %c0_109 = arith.constant 0 : index
    %c0_110 = arith.constant 0 : index
    %136 = vector.load %arg17[%c0_109, %c0_110] : memref<512x128xbf16, #tpu.memory_space<vmem>>, vector<512x128xbf16>
    %cst_111 = arith.constant dense<0.000000e+00> : vector<2x128xf32>
    %137 = tpu.matmul %135, %136, %cst_111 {dimension_numbers = #tpu.dot_dimension_numbers<[1], [0], [0], [1], [0, 0, 1, 1], [], []>} : vector<2x512xbf16>, vector<512x128xbf16>, vector<2x128xf32> -> vector<2x128xf32>
    %c0_112 = arith.constant 0 : index
    %c0_113 = arith.constant 0 : index
    %138 = vector.load %arg18[%c0_112, %c0_113] : memref<2x128xf32, #tpu.memory_space<vmem>>, vector<2x128xf32>
    tpu.vector_store %arg18[%c0_112, %c0_113], %137 {strides = array<i32>} : memref<2x128xf32, #tpu.memory_space<vmem>>, vector<2x128xf32>,
    return
  }
  func.func @transform_0(%arg0: i32) -> (i32, i32) {
    %c0_i32 = arith.constant 0 : i32
    %c0_i32_0 = arith.constant 0 : i32
    %c0_i32_1 = arith.constant 0 : i32
    return %c0_i32, %c0_i32_0 : i32, i32
  }
  func.func @transform_1(%arg0: i32) -> (i32, i32, i32) {
    %c0_i32 = arith.constant 0 : i32
    %c0_i32_0 = arith.constant 0 : i32
    %c0_i32_1 = arith.constant 0 : i32
    %c0_i32_2 = arith.constant 0 : i32
    return %c0_i32, %c0_i32_0, %c0_i32_1 : i32, i32, i32
  }
  func.func @transform_2(%arg0: i32) -> (i32, i32) {
    %c0_i32 = arith.constant 0 : i32
    %c0_i32_0 = arith.constant 0 : i32
    %c0_i32_1 = arith.constant 0 : i32
    return %c0_i32, %c0_i32_0 : i32, i32
  }
  func.func @transform_3(%arg0: i32) -> (i32, i32, i32) {
    %c0_i32 = arith.constant 0 : i32
    %c0_i32_0 = arith.constant 0 : i32
    %c0_i32_1 = arith.constant 0 : i32
    %c0_i32_2 = arith.constant 0 : i32
    return %c0_i32, %c0_i32_0, %c0_i32_1 : i32, i32, i32
  }
  func.func @transform_4(%arg0: i32) -> (i32, i32) {
    %c0_i32 = arith.constant 0 : i32
    %c0_i32_0 = arith.constant 0 : i32
    %c0_i32_1 = arith.constant 0 : i32
    return %c0_i32, %c0_i32_0 : i32, i32
  }
  func.func @transform_5(%arg0: i32) -> (i32, i32) {
    %c0_i32 = arith.constant 0 : i32
    %c0_i32_0 = arith.constant 0 : i32
    %c0_i32_1 = arith.constant 0 : i32
    return %c0_i32, %c0_i32_0 : i32, i32
  }
  func.func @transform_6(%arg0: i32) -> (i32, i32) {
    %c0_i32 = arith.constant 0 : i32
    %c0_i32_0 = arith.constant 0 : i32
    %c0_i32_1 = arith.constant 0 : i32
    return %c0_i32, %c0_i32_0 : i32, i32
  }
  func.func @transform_7(%arg0: i32) -> (i32, i32) {
    %c0_i32 = arith.constant 0 : i32
    %c0_i32_0 = arith.constant 0 : i32
    %c0_i32_1 = arith.constant 0 : i32
    return %c0_i32, %c0_i32_0 : i32, i32
  }
  func.func @transform_8(%arg0: i32) -> (i32, i32) {
    %c0_i32 = arith.constant 0 : i32
    %c0_i32_0 = arith.constant 0 : i32
    %c0_i32_1 = arith.constant 0 : i32
    return %c0_i32, %c0_i32_0 : i32, i32
  }
  func.func @transform_9(%arg0: i32) -> (i32, i32, i32) {
    %c0_i32 = arith.constant 0 : i32
    %c0_i32_0 = arith.constant 0 : i32
    %c0_i32_1 = arith.constant 0 : i32
    %c0_i32_2 = arith.constant 0 : i32
    return %c0_i32, %c0_i32_0, %c0_i32_1 : i32, i32, i32
  }
  func.func @transform_10(%arg0: i32) -> (i32, i32) {
    %c0_i32 = arith.constant 0 : i32
    %c0_i32_0 = arith.constant 0 : i32
    %c0_i32_1 = arith.constant 0 : i32
    return %c0_i32, %c0_i32_0 : i32, i32
  }
  func.func @transform_11(%arg0: i32) -> (i32, i32) {
    %c0_i32 = arith.constant 0 : i32
    %c0_i32_0 = arith.constant 0 : i32
    %c0_i32_1 = arith.constant 0 : i32
    return %c0_i32, %c0_i32_0 : i32, i32
  }
  func.func @transform_12(%arg0: i32) -> (i32, i32) {
    %c0_i32 = arith.constant 0 : i32
    %c0_i32_0 = arith.constant 0 : i32
    %c0_i32_1 = arith.constant 0 : i32
    return %c0_i32, %c0_i32_0 : i32, i32
  }
  func.func @transform_13(%arg0: i32) -> (i32, i32) {
    %c0_i32 = arith.constant 0 : i32
    %c0_i32_0 = arith.constant 0 : i32
    %c0_i32_1 = arith.constant 0 : i32
    return %c0_i32, %c0_i32_0 : i32, i32
  }
  func.func @transform_14(%arg0: i32) -> (i32, i32) {
    %c0_i32 = arith.constant 0 : i32
    %c0_i32_0 = arith.constant 0 : i32
    %c0_i32_1 = arith.constant 0 : i32
    return %c0_i32, %c0_i32_0 : i32, i32
  }
  func.func @transform_15(%arg0: i32) -> (i32, i32, i32) {
    %c0_i32 = arith.constant 0 : i32
    %c0_i32_0 = arith.constant 0 : i32
    %c0_i32_1 = arith.constant 0 : i32
    %c0_i32_2 = arith.constant 0 : i32
    return %c0_i32, %c0_i32_0, %c0_i32_1 : i32, i32, i32
  }
  func.func @transform_16(%arg0: i32) -> (i32, i32) {
    %c0_i32 = arith.constant 0 : i32
    %c0_i32_0 = arith.constant 0 : i32
    %c0_i32_1 = arith.constant 0 : i32
    return %c0_i32, %c0_i32_0 : i32, i32
  }
  func.func @transform_17(%arg0: i32) -> (i32, i32) {
    %c0_i32 = arith.constant 0 : i32
    %c0_i32_0 = arith.constant 0 : i32
    %c0_i32_1 = arith.constant 0 : i32
    return %c0_i32, %c0_i32_0 : i32, i32
  }
}

</mosaic_0001>

<llo_original>
// kernel: discriminator_forward.1
$region0: #{discriminator_forward.1}
  #allocation0 [shape = 'u32[]', space=smem, size = 0x4, offset = 0x4, fixed_abs, tag = 'smem constant byte address 0x4 - core index']
  #allocation1 [shape = 'u32[144,128]{1,0:T(1,128)}', space=vmem, size = 0x12000, scoped, tag = 'internal scratch']
  %s0 = inlined_call_operand.vmem [shape: f32[64,128], index: 0, kind: input, shape index: {}]
  %s1 = inlined_call_operand.vmem [shape: f32[4,32,64], index: 1, kind: input, shape index: {}]
  %s2 = inlined_call_operand.vmem [shape: bf16[512,128], index: 2, kind: input, shape index: {}]
  %s3 = inlined_call_operand.vmem [shape: f32[4,16,32], index: 3, kind: input, shape index: {}]
  %s4 = inlined_call_operand.vmem [shape: bf16[512,128], index: 4, kind: input, shape index: {}]
  %s5 = inlined_call_operand.vmem [shape: f32[128,16], index: 5, kind: input, shape index: {}]
  %s6 = inlined_call_operand.vmem [shape: f32[16,128], index: 6, kind: input, shape index: {}]
  %s7 = inlined_call_operand.vmem [shape: f32[1,16], index: 7, kind: input, shape index: {}]
  %s8 = inlined_call_operand.vmem [shape: f32[1,16], index: 8, kind: input, shape index: {}]
  %s9 = inlined_call_operand.vmem [shape: f32[4,8,16], index: 9, kind: input, shape index: {}]
  %s10 = inlined_call_operand.vmem [shape: bf16[512,128], index: 10, kind: input, shape index: {}]
  %s11 = inlined_call_operand.vmem [shape: f32[128,32], index: 11, kind: input, shape index: {}]
  %s12 = inlined_call_operand.vmem [shape: f32[32,128], index: 12, kind: input, shape index: {}]
  %s13 = inlined_call_operand.vmem [shape: f32[1,32], index: 13, kind: input, shape index: {}]
  %s14 = inlined_call_operand.vmem [shape: f32[1,32], index: 14, kind: input, shape index: {}]
  %s15 = inlined_call_operand.vmem [shape: f32[4,2,8], index: 15, kind: input, shape index: {}]
  %s16 = inlined_call_operand.vmem [shape: bf16[512,128], index: 16, kind: input, shape index: {}]
  %s17 = inlined_call_operand.vmem [shape: f32[2,128], index: 17, kind: output, shape index: {}]
  %s18 = sld [smem:[#allocation0]]
  $region78: #{discriminator_forward.1} parent=0
    _
  %s20 = ssub.s32 1, %s18
  %s21 = scalar_select 0, %s20, %s18
  // Predicated region
  $region2: #{discriminator_forward.1} parent=0 // pred_check
    _
  $region3: #{discriminator_forward.1} parent=0 // pred_check_branch
    %23 = sbr.rel (0) target = $region5
  $region4: #{discriminator_forward.1} parent=0 // pred_region
    _
  $region5: #{discriminator_forward.1} parent=0 // pred_fallthru
    _
  // Predicated region
  $region6: #{discriminator_forward.1} parent=0 // pred_check
    _
  $region7: #{discriminator_forward.1} parent=0 // pred_check_branch
    %25 = sbr.rel (0) target = $region9
  $region8: #{discriminator_forward.1} parent=0 // pred_region
    _
  $region9: #{discriminator_forward.1} parent=0 // pred_fallthru
    _
  // Predicated region
  $region10: #{discriminator_forward.1} parent=0 // pred_check
    _
  $region11: #{discriminator_forward.1} parent=0 // pred_check_branch
    %27 = sbr.rel (0) target = $region13
  $region12: #{discriminator_forward.1} parent=0 // pred_region
    _
  $region13: #{discriminator_forward.1} parent=0 // pred_fallthru
    _
  // Predicated region
  $region14: #{discriminator_forward.1} parent=0 // pred_check
    _
  $region15: #{discriminator_forward.1} parent=0 // pred_check_branch
    %29 = sbr.rel (0) target = $region17
  $region16: #{discriminator_forward.1} parent=0 // pred_region
    _
  $region17: #{discriminator_forward.1} parent=0 // pred_fallthru
    _
  // Predicated region
  $region18: #{discriminator_forward.1} parent=0 // pred_check
    _
  $region19: #{discriminator_forward.1} parent=0 // pred_check_branch
    %31 = sbr.rel (0) target = $region21
  $region20: #{discriminator_forward.1} parent=0 // pred_region
    _
  $region21: #{discriminator_forward.1} parent=0 // pred_fallthru
    _
  // Predicated region
  $region22: #{discriminator_forward.1} parent=0 // pred_check
    _
  $region23: #{discriminator_forward.1} parent=0 // pred_check_branch
    %33 = sbr.rel (0) target = $region25
  $region24: #{discriminator_forward.1} parent=0 // pred_region
    _
  $region25: #{discriminator_forward.1} parent=0 // pred_fallthru
    _
  // Predicated region
  $region26: #{discriminator_forward.1} parent=0 // pred_check
    _
  $region27: #{discriminator_forward.1} parent=0 // pred_check_branch
    %35 = sbr.rel (0) target = $region29
  $region28: #{discriminator_forward.1} parent=0 // pred_region
    _
  $region29: #{discriminator_forward.1} parent=0 // pred_fallthru
    _
  // Predicated region
  $region30: #{discriminator_forward.1} parent=0 // pred_check
    _
  $region31: #{discriminator_forward.1} parent=0 // pred_check_branch
    %37 = sbr.rel (0) target = $region33
  $region32: #{discriminator_forward.1} parent=0 // pred_region
    _
  $region33: #{discriminator_forward.1} parent=0 // pred_fallthru
    _
  // Predicated region
  $region34: #{discriminator_forward.1} parent=0 // pred_check
    _
  $region35: #{discriminator_forward.1} parent=0 // pred_check_branch
    %39 = sbr.rel (0) target = $region37
  $region36: #{discriminator_forward.1} parent=0 // pred_region
    _
  $region37: #{discriminator_forward.1} parent=0 // pred_fallthru
    _
  // Predicated region
  $region38: #{discriminator_forward.1} parent=0 // pred_check
    _
  $region39: #{discriminator_forward.1} parent=0 // pred_check_branch
    %41 = sbr.rel (0) target = $region41
  $region40: #{discriminator_forward.1} parent=0 // pred_region
    _
  $region41: #{discriminator_forward.1} parent=0 // pred_fallthru
    _
  // Predicated region
  $region42: #{discriminator_forward.1} parent=0 // pred_check
    _
  $region43: #{discriminator_forward.1} parent=0 // pred_check_branch
    %43 = sbr.rel (0) target = $region45
  $region44: #{discriminator_forward.1} parent=0 // pred_region
    _
  $region45: #{discriminator_forward.1} parent=0 // pred_fallthru
    _
  // Predicated region
  $region46: #{discriminator_forward.1} parent=0 // pred_check
    _
  $region47: #{discriminator_forward.1} parent=0 // pred_check_branch
    %45 = sbr.rel (0) target = $region49
  $region48: #{discriminator_forward.1} parent=0 // pred_region
    _
  $region49: #{discriminator_forward.1} parent=0 // pred_fallthru
    _
  // Predicated region
  $region50: #{discriminator_forward.1} parent=0 // pred_check
    _
  $region51: #{discriminator_forward.1} parent=0 // pred_check_branch
    %47 = sbr.rel (0) target = $region53
  $region52: #{discriminator_forward.1} parent=0 // pred_region
    _
  $region53: #{discriminator_forward.1} parent=0 // pred_fallthru
    _
  // Predicated region
  $region54: #{discriminator_forward.1} parent=0 // pred_check
    _
  $region55: #{discriminator_forward.1} parent=0 // pred_check_branch
    %49 = sbr.rel (0) target = $region57
  $region56: #{discriminator_forward.1} parent=0 // pred_region
    _
  $region57: #{discriminator_forward.1} parent=0 // pred_fallthru
    _
  // Predicated region
  $region58: #{discriminator_forward.1} parent=0 // pred_check
    _
  $region59: #{discriminator_forward.1} parent=0 // pred_check_branch
    %51 = sbr.rel (0) target = $region61
  $region60: #{discriminator_forward.1} parent=0 // pred_region
    _
  $region61: #{discriminator_forward.1} parent=0 // pred_fallthru
    _
  // Predicated region
  $region62: #{discriminator_forward.1} parent=0 // pred_check
    _
  $region63: #{discriminator_forward.1} parent=0 // pred_check_branch
    %53 = sbr.rel (0) target = $region65
  $region64: #{discriminator_forward.1} parent=0 // pred_region
    _
  $region65: #{discriminator_forward.1} parent=0 // pred_fallthru
    _
  // Predicated region
  $region66: #{discriminator_forward.1} parent=0 // pred_check
    _
  $region67: #{discriminator_forward.1} parent=0 // pred_check_branch
    %55 = sbr.rel (0) target = $region69
  $region68: #{discriminator_forward.1} parent=0 // pred_region
    _
  $region69: #{discriminator_forward.1} parent=0 // pred_fallthru
    _
  %v57 = vld [vmem:[%s0] sm:$0xff]
  %v58 = vld [vmem:[%s0 + $0x8] sm:$0xff]
  %v59 = vld [vmem:[%s0 + $0x10] sm:$0xff]
  %v60 = vld [vmem:[%s0 + $0x18] sm:$0xff]
  %v61 = vld [vmem:[%s0 + $0x20] sm:$0xff]
  %v62 = vld [vmem:[%s0 + $0x28] sm:$0xff]
  %v63 = vld [vmem:[%s0 + $0x30] sm:$0xff]
  %v64 = vld [vmem:[%s0 + $0x38] sm:$0xff]
  %v65 = vld [vmem:[%s1] sm:$0xff]
  %v66 = vld [vmem:[%s1 + $0x8] sm:$0xff]
  %v67 = vld [vmem:[%s1 + $0x10] sm:$0xff]
  %v68 = vld [vmem:[%s1 + $0x18] sm:$0xff]
  %vm69 = vcmask 523264
  %v71 = vsel %vm69, %v65, 0
  %v74 = vsel %vm69, %v66, 0
  %v77 = vsel %vm69, %v67, 0
  %v80 = vsel %vm69, %v68, 0
  %82 = vmatprep.subr.mxu0 0.0
  %83 = vmatpush1.msra.mxu0 0.0
  %84 = vmatprep.subr.mxu0 0.0
  %85 = vmatpush1.msra.mxu0 0.0
  %86 = vmatprep.subr.mxu0 0.0
  %87 = vmatpush1.msra.mxu0 0.0
  %88 = vmatprep.subr.mxu0 0.0
  %89 = vmatpush1.msra.mxu0 0.0
  %90 = vmatprep.subr.mxu0 0.0
  %91 = vmatpush1.msra.mxu0 0.0
  %92 = vmatprep.subr.mxu0 0.0
  %93 = vmatpush1.msra.mxu0 0.0
  %94 = vmatprep.subr.mxu0 0.0
  %95 = vmatpush1.msra.mxu0 0.0
  %96 = vmatprep.subr.mxu0 0.0
  %97 = vmatpush1.msra.mxu0 0.0
  %98 = vmatprep.subr.mxu0 0.0
  %99 = vmatpush1.msra.mxu0 %v64
  %100 = vmatprep.subr.mxu0 0.0
  %101 = vmatpush1.msra.mxu0 %v63
  %102 = vmatprep.subr.mxu0 0.0
  %103 = vmatpush1.msra.mxu0 %v62
  %104 = vmatprep.subr.mxu0 0.0
  %105 = vmatpush1.msra.mxu0 %v61
  %106 = vmatprep.subr.mxu0 0.0
  %107 = vmatpush1.msra.mxu0 %v60
  %108 = vmatprep.subr.mxu0 0.0
  %109 = vmatpush1.msra.mxu0 %v59
  %110 = vmatprep.subr.mxu0 0.0
  %111 = vmatpush1.msra.mxu0 %v58
  %112 = vmatprep.subr.mxu0 0.0
  %113 = vmatpush1.msra.mxu0 %v57
  %114 = vmatprep.subr.mxu0 0.0
  %115 = vmatpush2.msra.mxu0 0.0
  %116 = vmatprep.subr.mxu0 0.0
  %117 = vmatpush2.msra.mxu0 0.0
  %118 = vmatprep.subr.mxu0 0.0
  %119 = vmatpush2.msra.mxu0 0.0
  %120 = vmatprep.subr.mxu0 0.0
  %121 = vmatpush2.msra.mxu0 0.0
  %122 = vmatprep.subr.mxu0 0.0
  %123 = vmatpush2.msra.mxu0 0.0
  %124 = vmatprep.subr.mxu0 0.0
  %125 = vmatpush2.msra.mxu0 0.0
  %126 = vmatprep.subr.mxu0 0.0
  %127 = vmatpush2.msra.mxu0 0.0
  %128 = vmatprep.subr.mxu0 0.0
  %129 = vmatpush2.msra.mxu0 0.0
  %130 = vmatprep.subr.mxu0 0.0
  %131 = vmatpush2.msra.mxu0 0.0
  %132 = vmatprep.subr.mxu0 0.0
  %133 = vmatpush2.msra.mxu0 0.0
  %134 = vmatprep.subr.mxu0 0.0
  %135 = vmatpush2.msra.mxu0 0.0
  %136 = vmatprep.subr.mxu0 0.0
  %137 = vmatpush2.msra.mxu0 0.0
  %138 = vmatprep.subr.mxu0 0.0
  %139 = vmatpush2.msra.mxu0 0.0
  %140 = vmatprep.subr.mxu0 0.0
  %141 = vmatpush2.msra.mxu0 0.0
  %142 = vmatprep.subr.mxu0 0.0
  %143 = vmatpush2.msra.mxu0 0.0
  %144 = vmatprep.subr.mxu0 0.0
  %145 = vmatpush2.msra.mxu0 0.0
  %146 = vmatprep.mubr.f32.mxu0 0.0
  %147 = vmatmul.mubr.f32.gmra.mxu0 %v71
  %v148 = vpop.f32.mrf.mxu0
  %v149 = vadd.f32 0.0, %v148
  %v150 = vpop.f32.mrf.mxu0
  %151 = vmatprep.mubr.f32.mxu0 0.0
  %152 = vmatmul.mubr.f32.gmra.mxu0 %v74
  %v153 = vpop.f32.mrf.mxu0
  %v154 = vadd.f32 0.0, %v153
  %v155 = vpop.f32.mrf.mxu0
  %156 = vmatprep.mubr.f32.mxu0 0.0
  %157 = vmatmul.mubr.f32.gmra.mxu0 %v77
  %v158 = vpop.f32.mrf.mxu0
  %v159 = vadd.f32 0.0, %v158
  %v160 = vpop.f32.mrf.mxu0
  %161 = vmatprep.mubr.f32.mxu0 0.0
  %162 = vmatmul.mubr.f32.gmra.mxu0 %v80
  %v163 = vpop.f32.mrf.mxu0
  %v164 = vadd.f32 0.0, %v163
  %v165 = vpop.f32.mrf.mxu0
  %166 = vdwg.mxu0
  %s167 = scalar_lea.vmem %s1, 32
  %v168 = vld [vmem:[%s167] sm:$0xff]
  %v169 = vld [vmem:[%s167 + $0x8] sm:$0xff]
  %v170 = vld [vmem:[%s167 + $0x10] sm:$0xff]
  %v171 = vld [vmem:[%s167 + $0x18] sm:$0xff]
  %v173 = vsel %vm69, %v168, 0
  %v176 = vsel %vm69, %v169, 0
  %v179 = vsel %vm69, %v170, 0
  %v182 = vsel %vm69, %v171, 0
  %184 = vmatprep.subr.mxu0 0.0
  %185 = vmatpush1.msra.mxu0 0.0
  %186 = vmatprep.subr.mxu0 0.0
  %187 = vmatpush1.msra.mxu0 0.0
  %188 = vmatprep.subr.mxu0 0.0
  %189 = vmatpush1.msra.mxu0 0.0
  %190 = vmatprep.subr.mxu0 0.0
  %191 = vmatpush1.msra.mxu0 0.0
  %192 = vmatprep.subr.mxu0 0.0
  %193 = vmatpush1.msra.mxu0 0.0
  %194 = vmatprep.subr.mxu0 0.0
  %195 = vmatpush1.msra.mxu0 0.0
  %196 = vmatprep.subr.mxu0 0.0
  %197 = vmatpush1.msra.mxu0 0.0
  %198 = vmatprep.subr.mxu0 0.0
  %199 = vmatpush1.msra.mxu0 0.0
  %200 = vmatprep.subr.mxu0 0.0
  %201 = vmatpush1.msra.mxu0 %v64
  %202 = vmatprep.subr.mxu0 0.0
  %203 = vmatpush1.msra.mxu0 %v63
  %204 = vmatprep.subr.mxu0 0.0
  %205 = vmatpush1.msra.mxu0 %v62
  %206 = vmatprep.subr.mxu0 0.0
  %207 = vmatpush1.msra.mxu0 %v61
  %208 = vmatprep.subr.mxu0 0.0
  %209 = vmatpush1.msra.mxu0 %v60
  %210 = vmatprep.subr.mxu0 0.0
  %211 = vmatpush1.msra.mxu0 %v59
  %212 = vmatprep.subr.mxu0 0.0
  %213 = vmatpush1.msra.mxu0 %v58
  %214 = vmatprep.subr.mxu0 0.0
  %215 = vmatpush1.msra.mxu0 %v57
  %216 = vmatprep.subr.mxu0 0.0
  %217 = vmatpush2.msra.mxu0 0.0
  %218 = vmatprep.subr.mxu0 0.0
  %219 = vmatpush2.msra.mxu0 0.0
  %220 = vmatprep.subr.mxu0 0.0
  %221 = vmatpush2.msra.mxu0 0.0
  %222 = vmatprep.subr.mxu0 0.0
  %223 = vmatpush2.msra.mxu0 0.0
  %224 = vmatprep.subr.mxu0 0.0
  %225 = vmatpush2.msra.mxu0 0.0
  %226 = vmatprep.subr.mxu0 0.0
  %227 = vmatpush2.msra.mxu0 0.0
  %228 = vmatprep.subr.mxu0 0.0
  %229 = vmatpush2.msra.mxu0 0.0
  %230 = vmatprep.subr.mxu0 0.0
  %231 = vmatpush2.msra.mxu0 0.0
  %232 = vmatprep.subr.mxu0 0.0
  %233 = vmatpush2.msra.mxu0 0.0
  %234 = vmatprep.subr.mxu0 0.0
  %235 = vmatpush2.msra.mxu0 0.0
  %236 = vmatprep.subr.mxu0 0.0
  %237 = vmatpush2.msra.mxu0 0.0
  %238 = vmatprep.subr.mxu0 0.0
  %239 = vmatpush2.msra.mxu0 0.0
  %240 = vmatprep.subr.mxu0 0.0
  %241 = vmatpush2.msra.mxu0 0.0
  %242 = vmatprep.subr.mxu0 0.0
  %243 = vmatpush2.msra.mxu0 0.0
  %244 = vmatprep.subr.mxu0 0.0
  %245 = vmatpush2.msra.mxu0 0.0
  %246 = vmatprep.subr.mxu0 0.0
  %247 = vmatpush2.msra.mxu0 0.0
  %248 = vmatprep.mubr.f32.mxu0 0.0
  %249 = vmatmul.mubr.f32.gmra.mxu0 %v173
  %v250 = vpop.f32.mrf.mxu0
  %v251 = vadd.f32 0.0, %v250
  %v252 = vpop.f32.mrf.mxu0
  %253 = vmatprep.mubr.f32.mxu0 0.0
  %254 = vmatmul.mubr.f32.gmra.mxu0 %v176
  %v255 = vpop.f32.mrf.mxu0
  %v256 = vadd.f32 0.0, %v255
  %v257 = vpop.f32.mrf.mxu0
  %258 = vmatprep.mubr.f32.mxu0 0.0
  %259 = vmatmul.mubr.f32.gmra.mxu0 %v179
  %v260 = vpop.f32.mrf.mxu0
  %v261 = vadd.f32 0.0, %v260
  %v262 = vpop.f32.mrf.mxu0
  %263 = vmatprep.mubr.f32.mxu0 0.0
  %264 = vmatmul.mubr.f32.gmra.mxu0 %v182
  %v265 = vpop.f32.mrf.mxu0
  %v266 = vadd.f32 0.0, %v265
  %v267 = vpop.f32.mrf.mxu0
  %268 = vdwg.mxu0
  %s269 = scalar_lea.vmem %s1, 64
  %v270 = vld [vmem:[%s269] sm:$0xff]
  %v271 = vld [vmem:[%s269 + $0x8] sm:$0xff]
  %v272 = vld [vmem:[%s269 + $0x10] sm:$0xff]
  %v273 = vld [vmem:[%s269 + $0x18] sm:$0xff]
  %v275 = vsel %vm69, %v270, 0
  %v278 = vsel %vm69, %v271, 0
  %v281 = vsel %vm69, %v272, 0
  %v284 = vsel %vm69, %v273, 0
  %286 = vmatprep.subr.mxu0 0.0
  %287 = vmatpush1.msra.mxu0 0.0
  %288 = vmatprep.subr.mxu0 0.0
  %289 = vmatpush1.msra.mxu0 0.0
  %290 = vmatprep.subr.mxu0 0.0
  %291 = vmatpush1.msra.mxu0 0.0
  %292 = vmatprep.subr.mxu0 0.0
  %293 = vmatpush1.msra.mxu0 0.0
  %294 = vmatprep.subr.mxu0 0.0
  %295 = vmatpush1.msra.mxu0 0.0
  %296 = vmatprep.subr.mxu0 0.0
  %297 = vmatpush1.msra.mxu0 0.0
  %298 = vmatprep.subr.mxu0 0.0
  %299 = vmatpush1.msra.mxu0 0.0
  %300 = vmatprep.subr.mxu0 0.0
  %301 = vmatpush1.msra.mxu0 0.0
  %302 = vmatprep.subr.mxu0 0.0
  %303 = vmatpush1.msra.mxu0 %v64
  %304 = vmatprep.subr.mxu0 0.0
  %305 = vmatpush1.msra.mxu0 %v63
  %306 = vmatprep.subr.mxu0 0.0
  %307 = vmatpush1.msra.mxu0 %v62
  %308 = vmatprep.subr.mxu0 0.0
  %309 = vmatpush1.msra.mxu0 %v61
  %310 = vmatprep.subr.mxu0 0.0
  %311 = vmatpush1.msra.mxu0 %v60
  %312 = vmatprep.subr.mxu0 0.0
  %313 = vmatpush1.msra.mxu0 %v59
  %314 = vmatprep.subr.mxu0 0.0
  %315 = vmatpush1.msra.mxu0 %v58
  %316 = vmatprep.subr.mxu0 0.0
  %317 = vmatpush1.msra.mxu0 %v57
  %318 = vmatprep.subr.mxu0 0.0
  %319 = vmatpush2.msra.mxu0 0.0
  %320 = vmatprep.subr.mxu0 0.0
  %321 = vmatpush2.msra.mxu0 0.0
  %322 = vmatprep.subr.mxu0 0.0
  %323 = vmatpush2.msra.mxu0 0.0
  %324 = vmatprep.subr.mxu0 0.0
  %325 = vmatpush2.msra.mxu0 0.0
  %326 = vmatprep.subr.mxu0 0.0
  %327 = vmatpush2.msra.mxu0 0.0
  %328 = vmatprep.subr.mxu0 0.0
  %329 = vmatpush2.msra.mxu0 0.0
  %330 = vmatprep.subr.mxu0 0.0
  %331 = vmatpush2.msra.mxu0 0.0
  %332 = vmatprep.subr.mxu0 0.0
  %333 = vmatpush2.msra.mxu0 0.0
  %334 = vmatprep.subr.mxu0 0.0
  %335 = vmatpush2.msra.mxu0 0.0
  %336 = vmatprep.subr.mxu0 0.0
  %337 = vmatpush2.msra.mxu0 0.0
  %338 = vmatprep.subr.mxu0 0.0
  %339 = vmatpush2.msra.mxu0 0.0
  %340 = vmatprep.subr.mxu0 0.0
  %341 = vmatpush2.msra.mxu0 0.0
  %342 = vmatprep.subr.mxu0 0.0
  %343 = vmatpush2.msra.mxu0 0.0
  %344 = vmatprep.subr.mxu0 0.0
  %345 = vmatpush2.msra.mxu0 0.0
  %346 = vmatprep.subr.mxu0 0.0
  %347 = vmatpush2.msra.mxu0 0.0
  %348 = vmatprep.subr.mxu0 0.0
  %349 = vmatpush2.msra.mxu0 0.0
  %350 = vmatprep.mubr.f32.mxu0 0.0
  %351 = vmatmul.mubr.f32.gmra.mxu0 %v275
  %v352 = vpop.f32.mrf.mxu0
  %v353 = vadd.f32 0.0, %v352
  %v354 = vpop.f32.mrf.mxu0
  %355 = vmatprep.mubr.f32.mxu0 0.0
  %356 = vmatmul.mubr.f32.gmra.mxu0 %v278
  %v357 = vpop.f32.mrf.mxu0
  %v358 = vadd.f32 0.0, %v357
  %v359 = vpop.f32.mrf.mxu0
  %360 = vmatprep.mubr.f32.mxu0 0.0
  %361 = vmatmul.mubr.f32.gmra.mxu0 %v281
  %v362 = vpop.f32.mrf.mxu0
  %v363 = vadd.f32 0.0, %v362
  %v364 = vpop.f32.mrf.mxu0
  %365 = vmatprep.mubr.f32.mxu0 0.0
  %366 = vmatmul.mubr.f32.gmra.mxu0 %v284
  %v367 = vpop.f32.mrf.mxu0
  %v368 = vadd.f32 0.0, %v367
  %v369 = vpop.f32.mrf.mxu0
  %370 = vdwg.mxu0
  %s371 = scalar_lea.vmem %s1, 96
  %v372 = vld [vmem:[%s371] sm:$0xff]
  %v373 = vld [vmem:[%s371 + $0x8] sm:$0xff]
  %v374 = vld [vmem:[%s371 + $0x10] sm:$0xff]
  %v375 = vld [vmem:[%s371 + $0x18] sm:$0xff]
  %v377 = vsel %vm69, %v372, 0
  %v380 = vsel %vm69, %v373, 0
  %v383 = vsel %vm69, %v374, 0
  %v386 = vsel %vm69, %v375, 0
  %388 = vmatprep.subr.mxu0 0.0
  %389 = vmatpush1.msra.mxu0 0.0
  %390 = vmatprep.subr.mxu0 0.0
  %391 = vmatpush1.msra.mxu0 0.0
  %392 = vmatprep.subr.mxu0 0.0
  %393 = vmatpush1.msra.mxu0 0.0
  %394 = vmatprep.subr.mxu0 0.0
  %395 = vmatpush1.msra.mxu0 0.0
  %396 = vmatprep.subr.mxu0 0.0
  %397 = vmatpush1.msra.mxu0 0.0
  %398 = vmatprep.subr.mxu0 0.0
  %399 = vmatpush1.msra.mxu0 0.0
  %400 = vmatprep.subr.mxu0 0.0
  %401 = vmatpush1.msra.mxu0 0.0
  %402 = vmatprep.subr.mxu0 0.0
  %403 = vmatpush1.msra.mxu0 0.0
  %404 = vmatprep.subr.mxu0 0.0
  %405 = vmatpush1.msra.mxu0 %v64
  %406 = vmatprep.subr.mxu0 0.0
  %407 = vmatpush1.msra.mxu0 %v63
  %408 = vmatprep.subr.mxu0 0.0
  %409 = vmatpush1.msra.mxu0 %v62
  %410 = vmatprep.subr.mxu0 0.0
  %411 = vmatpush1.msra.mxu0 %v61
  %412 = vmatprep.subr.mxu0 0.0
  %413 = vmatpush1.msra.mxu0 %v60
  %414 = vmatprep.subr.mxu0 0.0
  %415 = vmatpush1.msra.mxu0 %v59
  %416 = vmatprep.subr.mxu0 0.0
  %417 = vmatpush1.msra.mxu0 %v58
  %418 = vmatprep.subr.mxu0 0.0
  %419 = vmatpush1.msra.mxu0 %v57
  %420 = vmatprep.subr.mxu0 0.0
  %421 = vmatpush2.msra.mxu0 0.0
  %422 = vmatprep.subr.mxu0 0.0
  %423 = vmatpush2.msra.mxu0 0.0
  %424 = vmatprep.subr.mxu0 0.0
  %425 = vmatpush2.msra.mxu0 0.0
  %426 = vmatprep.subr.mxu0 0.0
  %427 = vmatpush2.msra.mxu0 0.0
  %428 = vmatprep.subr.mxu0 0.0
  %429 = vmatpush2.msra.mxu0 0.0
  %430 = vmatprep.subr.mxu0 0.0
  %431 = vmatpush2.msra.mxu0 0.0
  %432 = vmatprep.subr.mxu0 0.0
  %433 = vmatpush2.msra.mxu0 0.0
  %434 = vmatprep.subr.mxu0 0.0
  %435 = vmatpush2.msra.mxu0 0.0
  %436 = vmatprep.subr.mxu0 0.0
  %437 = vmatpush2.msra.mxu0 0.0
  %438 = vmatprep.subr.mxu0 0.0
  %439 = vmatpush2.msra.mxu0 0.0
  %440 = vmatprep.subr.mxu0 0.0
  %441 = vmatpush2.msra.mxu0 0.0
  %442 = vmatprep.subr.mxu0 0.0
  %443 = vmatpush2.msra.mxu0 0.0
  %444 = vmatprep.subr.mxu0 0.0
  %445 = vmatpush2.msra.mxu0 0.0
  %446 = vmatprep.subr.mxu0 0.0
  %447 = vmatpush2.msra.mxu0 0.0
  %448 = vmatprep.subr.mxu0 0.0
  %449 = vmatpush2.msra.mxu0 0.0
  %450 = vmatprep.subr.mxu0 0.0
  %451 = vmatpush2.msra.mxu0 0.0
  %452 = vmatprep.mubr.f32.mxu0 0.0
  %453 = vmatmul.mubr.f32.gmra.mxu0 %v377
  %v454 = vpop.f32.mrf.mxu0
  %v455 = vadd.f32 0.0, %v454
  %v456 = vpop.f32.mrf.mxu0
  %457 = vmatprep.mubr.f32.mxu0 0.0
  %458 = vmatmul.mubr.f32.gmra.mxu0 %v380
  %v459 = vpop.f32.mrf.mxu0
  %v460 = vadd.f32 0.0, %v459
  %v461 = vpop.f32.mrf.mxu0
  %462 = vmatprep.mubr.f32.mxu0 0.0
  %463 = vmatmul.mubr.f32.gmra.mxu0 %v383
  %v464 = vpop.f32.mrf.mxu0
  %v465 = vadd.f32 0.0, %v464
  %v466 = vpop.f32.mrf.mxu0
  %467 = vmatprep.mubr.f32.mxu0 0.0
  %468 = vmatmul.mubr.f32.gmra.mxu0 %v386
  %v469 = vpop.f32.mrf.mxu0
  %v470 = vadd.f32 0.0, %v469
  %v471 = vpop.f32.mrf.mxu0
  %472 = vdwg.mxu0
  %v473 = vpack.c.bf16 %v154, %v149
  %v474 = vpack.c.bf16 %v256, %v251
  %v475 = vpack.c.bf16 %v358, %v353
  %v476 = vpack.c.bf16 %v460, %v455
  %v477 = vpack.c.bf16 %v164, %v159
  %v478 = vpack.c.bf16 %v266, %v261
  %v479 = vpack.c.bf16 %v368, %v363
  %v480 = vpack.c.bf16 %v470, %v465
  %v481 = vld [vmem:[%s2] sm:$0xf]
  %v482 = vld [vmem:[%s2 + $0x4] sm:$0xf]
  %v483 = vld [vmem:[%s2 + $0x8] sm:$0xf]
  %v484 = vld [vmem:[%s2 + $0xc] sm:$0xf]
  %v485 = vld [vmem:[%s2 + $0x10] sm:$0xf]
  %v486 = vld [vmem:[%s2 + $0x14] sm:$0xf]
  %v487 = vld [vmem:[%s2 + $0x18] sm:$0xf]
  %v488 = vld [vmem:[%s2 + $0x1c] sm:$0xf]
  %v489 = vld [vmem:[%s2 + $0x20] sm:$0xf]
  %v490 = vld [vmem:[%s2 + $0x24] sm:$0xf]
  %v491 = vld [vmem:[%s2 + $0x28] sm:$0xf]
  %v492 = vld [vmem:[%s2 + $0x2c] sm:$0xf]
  %v493 = vld [vmem:[%s2 + $0x30] sm:$0xf]
  %v494 = vld [vmem:[%s2 + $0x34] sm:$0xf]
  %v495 = vld [vmem:[%s2 + $0x38] sm:$0xf]
  %v496 = vld [vmem:[%s2 + $0x3c] sm:$0xf]
  %v497 = vld [vmem:[%s2 + $0x40] sm:$0xf]
  %v498 = vld [vmem:[%s2 + $0x44] sm:$0xf]
  %v499 = vld [vmem:[%s2 + $0x48] sm:$0xf]
  %v500 = vld [vmem:[%s2 + $0x4c] sm:$0xf]
  %v501 = vld [vmem:[%s2 + $0x50] sm:$0xf]
  %v502 = vld [vmem:[%s2 + $0x54] sm:$0xf]
  %v503 = vld [vmem:[%s2 + $0x58] sm:$0xf]
  %v504 = vld [vmem:[%s2 + $0x5c] sm:$0xf]
  %v505 = vld [vmem:[%s2 + $0x60] sm:$0xf]
  %v506 = vld [vmem:[%s2 + $0x64] sm:$0xf]
  %v507 = vld [vmem:[%s2 + $0x68] sm:$0xf]
  %v508 = vld [vmem:[%s2 + $0x6c] sm:$0xf]
  %v509 = vld [vmem:[%s2 + $0x70] sm:$0xf]
  %v510 = vld [vmem:[%s2 + $0x74] sm:$0xf]
  %v511 = vld [vmem:[%s2 + $0x78] sm:$0xf]
  %v512 = vld [vmem:[%s2 + $0x7c] sm:$0xf]
  %v513 = vld [vmem:[%s2 + $0x80] sm:$0xf]
  %v514 = vld [vmem:[%s2 + $0x84] sm:$0xf]
  %v515 = vld [vmem:[%s2 + $0x88] sm:$0xf]
  %v516 = vld [vmem:[%s2 + $0x8c] sm:$0xf]
  %v517 = vld [vmem:[%s2 + $0x90] sm:$0xf]
  %v518 = vld [vmem:[%s2 + $0x94] sm:$0xf]
  %v519 = vld [vmem:[%s2 + $0x98] sm:$0xf]
  %v520 = vld [vmem:[%s2 + $0x9c] sm:$0xf]
  %v521 = vld [vmem:[%s2 + $0xa0] sm:$0xf]
  %v522 = vld [vmem:[%s2 + $0xa4] sm:$0xf]
  %v523 = vld [vmem:[%s2 + $0xa8] sm:$0xf]
  %v524 = vld [vmem:[%s2 + $0xac] sm:$0xf]
  %v525 = vld [vmem:[%s2 + $0xb0] sm:$0xf]
  %v526 = vld [vmem:[%s2 + $0xb4] sm:$0xf]
  %v527 = vld [vmem:[%s2 + $0xb8] sm:$0xf]
  %v528 = vld [vmem:[%s2 + $0xbc] sm:$0xf]
  %v529 = vld [vmem:[%s2 + $0xc0] sm:$0xf]
  %v530 = vld [vmem:[%s2 + $0xc4] sm:$0xf]
  %v531 = vld [vmem:[%s2 + $0xc8] sm:$0xf]
  %v532 = vld [vmem:[%s2 + $0xcc] sm:$0xf]
  %v533 = vld [vmem:[%s2 + $0xd0] sm:$0xf]
  %v534 = vld [vmem:[%s2 + $0xd4] sm:$0xf]
  %v535 = vld [vmem:[%s2 + $0xd8] sm:$0xf]
  %v536 = vld [vmem:[%s2 + $0xdc] sm:$0xf]
  %v537 = vld [vmem:[%s2 + $0xe0] sm:$0xf]
  %v538 = vld [vmem:[%s2 + $0xe4] sm:$0xf]
  %v539 = vld [vmem:[%s2 + $0xe8] sm:$0xf]
  %v540 = vld [vmem:[%s2 + $0xec] sm:$0xf]
  %v541 = vld [vmem:[%s2 + $0xf0] sm:$0xf]
  %v542 = vld [vmem:[%s2 + $0xf4] sm:$0xf]
  %v543 = vld [vmem:[%s2 + $0xf8] sm:$0xf]
  %v544 = vld [vmem:[%s2 + $0xfc] sm:$0xf]
  %v609 = vunpack.c.l.b16 %v481
  %v610 = vunpack.c.l.b16 %v482
  %v611 = vunpack.c.l.b16 %v483
  %v612 = vunpack.c.l.b16 %v484
  %v613 = vunpack.c.l.b16 %v485
  %v614 = vunpack.c.l.b16 %v486
  %v615 = vunpack.c.l.b16 %v487
  %v616 = vunpack.c.l.b16 %v488
  %v617 = vunpack.c.l.b16 %v489
  %v618 = vunpack.c.l.b16 %v490
  %v619 = vunpack.c.l.b16 %v491
  %v620 = vunpack.c.l.b16 %v492
  %v621 = vunpack.c.l.b16 %v493
  %v622 = vunpack.c.l.b16 %v494
  %v623 = vunpack.c.l.b16 %v495
  %v624 = vunpack.c.l.b16 %v496
  %v625 = vunpack.c.l.b16 %v497
  %v626 = vunpack.c.l.b16 %v498
  %v627 = vunpack.c.l.b16 %v499
  %v628 = vunpack.c.l.b16 %v500
  %v629 = vunpack.c.l.b16 %v501
  %v630 = vunpack.c.l.b16 %v502
  %v631 = vunpack.c.l.b16 %v503
  %v632 = vunpack.c.l.b16 %v504
  %v633 = vunpack.c.l.b16 %v505
  %v634 = vunpack.c.l.b16 %v506
  %v635 = vunpack.c.l.b16 %v507
  %v636 = vunpack.c.l.b16 %v508
  %v637 = vunpack.c.l.b16 %v509
  %v638 = vunpack.c.l.b16 %v510
  %v639 = vunpack.c.l.b16 %v511
  %v640 = vunpack.c.l.b16 %v512
  %v641 = vunpack.c.l.b16 %v513
  %v642 = vunpack.c.l.b16 %v514
  %v643 = vunpack.c.l.b16 %v515
  %v644 = vunpack.c.l.b16 %v516
  %v645 = vunpack.c.l.b16 %v517
  %v646 = vunpack.c.l.b16 %v518
  %v647 = vunpack.c.l.b16 %v519
  %v648 = vunpack.c.l.b16 %v520
  %v649 = vunpack.c.l.b16 %v521
  %v650 = vunpack.c.l.b16 %v522
  %v651 = vunpack.c.l.b16 %v523
  %v652 = vunpack.c.l.b16 %v524
  %v653 = vunpack.c.l.b16 %v525
  %v654 = vunpack.c.l.b16 %v526
  %v655 = vunpack.c.l.b16 %v527
  %v656 = vunpack.c.l.b16 %v528
  %v657 = vunpack.c.l.b16 %v529
  %v658 = vunpack.c.l.b16 %v530
  %v659 = vunpack.c.l.b16 %v531
  %v660 = vunpack.c.l.b16 %v532
  %v661 = vunpack.c.l.b16 %v533
  %v662 = vunpack.c.l.b16 %v534
  %v663 = vunpack.c.l.b16 %v535
  %v664 = vunpack.c.l.b16 %v536
  %v665 = vunpack.c.l.b16 %v537
  %v666 = vunpack.c.l.b16 %v538
  %v667 = vunpack.c.l.b16 %v539
  %v668 = vunpack.c.l.b16 %v540
  %v669 = vunpack.c.l.b16 %v541
  %v670 = vunpack.c.l.b16 %v542
  %v671 = vunpack.c.l.b16 %v543
  %v672 = vunpack.c.l.b16 %v544
  %v673 = vpack.c.b16 %v610, %v609
  %v674 = vpack.c.b16 %v612, %v611
  %v675 = vpack.c.b16 %v614, %v613
  %v676 = vpack.c.b16 %v616, %v615
  %v677 = vpack.c.b16 %v618, %v617
  %v678 = vpack.c.b16 %v620, %v619
  %v679 = vpack.c.b16 %v622, %v621
  %v680 = vpack.c.b16 %v624, %v623
  %v681 = vpack.c.b16 %v626, %v625
  %v682 = vpack.c.b16 %v628, %v627
  %v683 = vpack.c.b16 %v630, %v629
  %v684 = vpack.c.b16 %v632, %v631
  %v685 = vpack.c.b16 %v634, %v633
  %v686 = vpack.c.b16 %v636, %v635
  %v687 = vpack.c.b16 %v638, %v637
  %v688 = vpack.c.b16 %v640, %v639
  %v689 = vpack.c.b16 %v642, %v641
  %v690 = vpack.c.b16 %v644, %v643
  %v691 = vpack.c.b16 %v646, %v645
  %v692 = vpack.c.b16 %v648, %v647
  %v693 = vpack.c.b16 %v650, %v649
  %v694 = vpack.c.b16 %v652, %v651
  %v695 = vpack.c.b16 %v654, %v653
  %v696 = vpack.c.b16 %v656, %v655
  %v697 = vpack.c.b16 %v658, %v657
  %v698 = vpack.c.b16 %v660, %v659
  %v699 = vpack.c.b16 %v662, %v661
  %v700 = vpack.c.b16 %v664, %v663
  %v701 = vpack.c.b16 %v666, %v665
  %v702 = vpack.c.b16 %v668, %v667
  %v703 = vpack.c.b16 %v670, %v669
  %v704 = vpack.c.b16 %v672, %v671
  %737 = vmatprep.subr.bf16.mxu0 0
  %738 = vmatpush1.bf16.msra.mxu0 %v680
  %739 = vmatprep.subr.bf16.mxu0 0
  %740 = vmatpush1.bf16.msra.mxu0 %v679
  %741 = vmatprep.subr.bf16.mxu0 0
  %742 = vmatpush1.bf16.msra.mxu0 %v678
  %743 = vmatprep.subr.bf16.mxu0 0
  %744 = vmatpush1.bf16.msra.mxu0 %v677
  %745 = vmatprep.subr.bf16.mxu0 0
  %746 = vmatpush1.bf16.msra.mxu0 %v676
  %747 = vmatprep.subr.bf16.mxu0 0
  %748 = vmatpush1.bf16.msra.mxu0 %v675
  %749 = vmatprep.subr.bf16.mxu0 0
  %750 = vmatpush1.bf16.msra.mxu0 %v674
  %751 = vmatprep.subr.bf16.mxu0 0
  %752 = vmatpush1.bf16.msra.mxu0 %v673
  %753 = vmatprep.subr.bf16.mxu0 0
  %754 = vmatpush2.bf16.msra.mxu0 %v688
  %755 = vmatprep.subr.bf16.mxu0 0
  %756 = vmatpush2.bf16.msra.mxu0 %v687
  %757 = vmatprep.subr.bf16.mxu0 0
  %758 = vmatpush2.bf16.msra.mxu0 %v686
  %759 = vmatprep.subr.bf16.mxu0 0
  %760 = vmatpush2.bf16.msra.mxu0 %v685
  %761 = vmatprep.subr.bf16.mxu0 0
  %762 = vmatpush2.bf16.msra.mxu0 %v684
  %763 = vmatprep.subr.bf16.mxu0 0
  %764 = vmatpush2.bf16.msra.mxu0 %v683
  %765 = vmatprep.subr.bf16.mxu0 0
  %766 = vmatpush2.bf16.msra.mxu0 %v682
  %767 = vmatprep.subr.bf16.mxu0 0
  %768 = vmatpush2.bf16.msra.mxu0 %v681
  %769 = vmatprep.mubr.bf16.mxu0 %v474
  %770 = vmatmul.mubr.bf16.gmra.mxu0 %v473
  %v771 = vpop.f32.mrf.mxu0
  %v772 = vadd.f32 0.0, %v771
  %v773 = vpop.f32.mrf.mxu0
  %v774 = vpop.f32.mrf.mxu0
  %v775 = vadd.f32 0.0, %v774
  %v776 = vpop.f32.mrf.mxu0
  %777 = vmatprep.mubr.bf16.mxu0 %v478
  %778 = vmatmul.mubr.bf16.gmra.mxu0 %v477
  %v779 = vpop.f32.mrf.mxu0
  %v780 = vadd.f32 0.0, %v779
  %v781 = vpop.f32.mrf.mxu0
  %v782 = vpop.f32.mrf.mxu0
  %v783 = vadd.f32 0.0, %v782
  %v784 = vpop.f32.mrf.mxu0
  %785 = vdwg.mxu0
  %786 = vmatprep.subr.bf16.mxu0 0
  %787 = vmatpush1.bf16.msra.mxu0 %v696
  %788 = vmatprep.subr.bf16.mxu0 0
  %789 = vmatpush1.bf16.msra.mxu0 %v695
  %790 = vmatprep.subr.bf16.mxu0 0
  %791 = vmatpush1.bf16.msra.mxu0 %v694
  %792 = vmatprep.subr.bf16.mxu0 0
  %793 = vmatpush1.bf16.msra.mxu0 %v693
  %794 = vmatprep.subr.bf16.mxu0 0
  %795 = vmatpush1.bf16.msra.mxu0 %v692
  %796 = vmatprep.subr.bf16.mxu0 0
  %797 = vmatpush1.bf16.msra.mxu0 %v691
  %798 = vmatprep.subr.bf16.mxu0 0
  %799 = vmatpush1.bf16.msra.mxu0 %v690
  %800 = vmatprep.subr.bf16.mxu0 0
  %801 = vmatpush1.bf16.msra.mxu0 %v689
  %802 = vmatprep.subr.bf16.mxu0 0
  %803 = vmatpush2.bf16.msra.mxu0 %v704
  %804 = vmatprep.subr.bf16.mxu0 0
  %805 = vmatpush2.bf16.msra.mxu0 %v703
  %806 = vmatprep.subr.bf16.mxu0 0
  %807 = vmatpush2.bf16.msra.mxu0 %v702
  %808 = vmatprep.subr.bf16.mxu0 0
  %809 = vmatpush2.bf16.msra.mxu0 %v701
  %810 = vmatprep.subr.bf16.mxu0 0
  %811 = vmatpush2.bf16.msra.mxu0 %v700
  %812 = vmatprep.subr.bf16.mxu0 0
  %813 = vmatpush2.bf16.msra.mxu0 %v699
  %814 = vmatprep.subr.bf16.mxu0 0
  %815 = vmatpush2.bf16.msra.mxu0 %v698
  %816 = vmatprep.subr.bf16.mxu0 0
  %817 = vmatpush2.bf16.msra.mxu0 %v697
  %818 = vmatprep.mubr.bf16.mxu0 %v476
  %819 = vmatmul.mubr.bf16.gmra.mxu0 %v475
  %v820 = vpop.f32.mrf.mxu0
  %v821 = vadd.f32 %v772, %v820
  %v822 = vpop.f32.mrf.mxu0
  %v823 = vpop.f32.mrf.mxu0
  %v824 = vadd.f32 %v775, %v823
  %v825 = vpop.f32.mrf.mxu0
  %826 = vmatprep.mubr.bf16.mxu0 %v480
  %827 = vmatmul.mubr.bf16.gmra.mxu0 %v479
  %v828 = vpop.f32.mrf.mxu0
  %v829 = vadd.f32 %v780, %v828
  %v830 = vpop.f32.mrf.mxu0
  %v831 = vpop.f32.mrf.mxu0
  %v832 = vadd.f32 %v783, %v831
  %v833 = vpop.f32.mrf.mxu0
  %834 = vdwg.mxu0
  %v835 = vmul.f32 %v821, 0.2
  %v836 = vmul.f32 %v824, 0.2
  %v837 = vmul.f32 %v829, 0.2
  %v838 = vmul.f32 %v832, 0.2
  %v839 = vmax.f32 %v821, %v835
  %v840 = vmax.f32 %v824, %v836
  %v841 = vmax.f32 %v829, %v837
  %v842 = vmax.f32 %v832, %v838
  %v843 = vld [vmem:[%s3] sm:$0xff]
  %v844 = vld [vmem:[%s3 + $0x8] sm:$0xff]
  %vm845 = vcmask 261120
  %v847 = vsel %vm845, %v843, 0
  %v850 = vsel %vm845, %v844, 0
  %852 = vmatprep.subr.mxu0 0.0
  %853 = vmatpush1.msra.mxu0 0.0
  %854 = vmatprep.subr.mxu0 0.0
  %855 = vmatpush1.msra.mxu0 0.0
  %856 = vmatprep.subr.mxu0 0.0
  %857 = vmatpush1.msra.mxu0 0.0
  %858 = vmatprep.subr.mxu0 0.0
  %859 = vmatpush1.msra.mxu0 0.0
  %860 = vmatprep.subr.mxu0 0.0
  %861 = vmatpush1.msra.mxu0 0.0
  %862 = vmatprep.subr.mxu0 0.0
  %863 = vmatpush1.msra.mxu0 0.0
  %864 = vmatprep.subr.mxu0 0.0
  %865 = vmatpush1.msra.mxu0 0.0
  %866 = vmatprep.subr.mxu0 0.0
  %867 = vmatpush1.msra.mxu0 0.0
  %868 = vmatprep.subr.mxu0 0.0
  %869 = vmatpush1.msra.mxu0 0.0
  %870 = vmatprep.subr.mxu0 0.0
  %871 = vmatpush1.msra.mxu0 0.0
  %872 = vmatprep.subr.mxu0 0.0
  %873 = vmatpush1.msra.mxu0 0.0
  %874 = vmatprep.subr.mxu0 0.0
  %875 = vmatpush1.msra.mxu0 0.0
  %876 = vmatprep.subr.mxu0 0.0
  %877 = vmatpush1.msra.mxu0 %v842
  %878 = vmatprep.subr.mxu0 0.0
  %879 = vmatpush1.msra.mxu0 %v841
  %880 = vmatprep.subr.mxu0 0.0
  %881 = vmatpush1.msra.mxu0 %v840
  %882 = vmatprep.subr.mxu0 0.0
  %883 = vmatpush1.msra.mxu0 %v839
  %884 = vmatprep.subr.mxu0 0.0
  %885 = vmatpush2.msra.mxu0 0.0
  %886 = vmatprep.subr.mxu0 0.0
  %887 = vmatpush2.msra.mxu0 0.0
  %888 = vmatprep.subr.mxu0 0.0
  %889 = vmatpush2.msra.mxu0 0.0
  %890 = vmatprep.subr.mxu0 0.0
  %891 = vmatpush2.msra.mxu0 0.0
  %892 = vmatprep.subr.mxu0 0.0
  %893 = vmatpush2.msra.mxu0 0.0
  %894 = vmatprep.subr.mxu0 0.0
  %895 = vmatpush2.msra.mxu0 0.0
  %896 = vmatprep.subr.mxu0 0.0
  %897 = vmatpush2.msra.mxu0 0.0
  %898 = vmatprep.subr.mxu0 0.0
  %899 = vmatpush2.msra.mxu0 0.0
  %900 = vmatprep.subr.mxu0 0.0
  %901 = vmatpush2.msra.mxu0 0.0
  %902 = vmatprep.subr.mxu0 0.0
  %903 = vmatpush2.msra.mxu0 0.0
  %904 = vmatprep.subr.mxu0 0.0
  %905 = vmatpush2.msra.mxu0 0.0
  %906 = vmatprep.subr.mxu0 0.0
  %907 = vmatpush2.msra.mxu0 0.0
  %908 = vmatprep.subr.mxu0 0.0
  %909 = vmatpush2.msra.mxu0 0.0
  %910 = vmatprep.subr.mxu0 0.0
  %911 = vmatpush2.msra.mxu0 0.0
  %912 = vmatprep.subr.mxu0 0.0
  %913 = vmatpush2.msra.mxu0 0.0
  %914 = vmatprep.subr.mxu0 0.0
  %915 = vmatpush2.msra.mxu0 0.0
  %916 = vmatprep.mubr.f32.mxu0 0.0
  %917 = vmatmul.mubr.f32.gmra.mxu0 %v847
  %v918 = vpop.f32.mrf.mxu0
  %v919 = vadd.f32 0.0, %v918
  %v920 = vpop.f32.mrf.mxu0
  %921 = vmatprep.mubr.f32.mxu0 0.0
  %922 = vmatmul.mubr.f32.gmra.mxu0 %v850
  %v923 = vpop.f32.mrf.mxu0
  %v924 = vadd.f32 0.0, %v923
  %v925 = vpop.f32.mrf.mxu0
  %926 = vdwg.mxu0
  %s927 = scalar_lea.vmem %s3, 16
  %v928 = vld [vmem:[%s927] sm:$0xff]
  %v929 = vld [vmem:[%s927 + $0x8] sm:$0xff]
  %v931 = vsel %vm845, %v928, 0
  %v934 = vsel %vm845, %v929, 0
  %936 = vmatprep.subr.mxu0 0.0
  %937 = vmatpush1.msra.mxu0 0.0
  %938 = vmatprep.subr.mxu0 0.0
  %939 = vmatpush1.msra.mxu0 0.0
  %940 = vmatprep.subr.mxu0 0.0
  %941 = vmatpush1.msra.mxu0 0.0
  %942 = vmatprep.subr.mxu0 0.0
  %943 = vmatpush1.msra.mxu0 0.0
  %944 = vmatprep.subr.mxu0 0.0
  %945 = vmatpush1.msra.mxu0 0.0
  %946 = vmatprep.subr.mxu0 0.0
  %947 = vmatpush1.msra.mxu0 0.0
  %948 = vmatprep.subr.mxu0 0.0
  %949 = vmatpush1.msra.mxu0 0.0
  %950 = vmatprep.subr.mxu0 0.0
  %951 = vmatpush1.msra.mxu0 0.0
  %952 = vmatprep.subr.mxu0 0.0
  %953 = vmatpush1.msra.mxu0 0.0
  %954 = vmatprep.subr.mxu0 0.0
  %955 = vmatpush1.msra.mxu0 0.0
  %956 = vmatprep.subr.mxu0 0.0
  %957 = vmatpush1.msra.mxu0 0.0
  %958 = vmatprep.subr.mxu0 0.0
  %959 = vmatpush1.msra.mxu0 0.0
  %960 = vmatprep.subr.mxu0 0.0
  %961 = vmatpush1.msra.mxu0 %v842
  %962 = vmatprep.subr.mxu0 0.0
  %963 = vmatpush1.msra.mxu0 %v841
  %964 = vmatprep.subr.mxu0 0.0
  %965 = vmatpush1.msra.mxu0 %v840
  %966 = vmatprep.subr.mxu0 0.0
  %967 = vmatpush1.msra.mxu0 %v839
  %968 = vmatprep.subr.mxu0 0.0
  %969 = vmatpush2.msra.mxu0 0.0
  %970 = vmatprep.subr.mxu0 0.0
  %971 = vmatpush2.msra.mxu0 0.0
  %972 = vmatprep.subr.mxu0 0.0
  %973 = vmatpush2.msra.mxu0 0.0
  %974 = vmatprep.subr.mxu0 0.0
  %975 = vmatpush2.msra.mxu0 0.0
  %976 = vmatprep.subr.mxu0 0.0
  %977 = vmatpush2.msra.mxu0 0.0
  %978 = vmatprep.subr.mxu0 0.0
  %979 = vmatpush2.msra.mxu0 0.0
  %980 = vmatprep.subr.mxu0 0.0
  %981 = vmatpush2.msra.mxu0 0.0
  %982 = vmatprep.subr.mxu0 0.0
  %983 = vmatpush2.msra.mxu0 0.0
  %984 = vmatprep.subr.mxu0 0.0
  %985 = vmatpush2.msra.mxu0 0.0
  %986 = vmatprep.subr.mxu0 0.0
  %987 = vmatpush2.msra.mxu0 0.0
  %988 = vmatprep.subr.mxu0 0.0
  %989 = vmatpush2.msra.mxu0 0.0
  %990 = vmatprep.subr.mxu0 0.0
  %991 = vmatpush2.msra.mxu0 0.0
  %992 = vmatprep.subr.mxu0 0.0
  %993 = vmatpush2.msra.mxu0 0.0
  %994 = vmatprep.subr.mxu0 0.0
  %995 = vmatpush2.msra.mxu0 0.0
  %996 = vmatprep.subr.mxu0 0.0
  %997 = vmatpush2.msra.mxu0 0.0
  %998 = vmatprep.subr.mxu0 0.0
  %999 = vmatpush2.msra.mxu0 0.0
  %1000 = vmatprep.mubr.f32.mxu0 0.0
  %1001 = vmatmul.mubr.f32.gmra.mxu0 %v931
  %v1002 = vpop.f32.mrf.mxu0
  %v1003 = vadd.f32 0.0, %v1002
  %v1004 = vpop.f32.mrf.mxu0
  %1005 = vmatprep.mubr.f32.mxu0 0.0
  %1006 = vmatmul.mubr.f32.gmra.mxu0 %v934
  %v1007 = vpop.f32.mrf.mxu0
  %v1008 = vadd.f32 0.0, %v1007
  %v1009 = vpop.f32.mrf.mxu0
  %1010 = vdwg.mxu0
  %s1011 = scalar_lea.vmem %s3, 32
  %v1012 = vld [vmem:[%s1011] sm:$0xff]
  %v1013 = vld [vmem:[%s1011 + $0x8] sm:$0xff]
  %v1015 = vsel %vm845, %v1012, 0
  %v1018 = vsel %vm845, %v1013, 0
  %1020 = vmatprep.subr.mxu0 0.0
  %1021 = vmatpush1.msra.mxu0 0.0
  %1022 = vmatprep.subr.mxu0 0.0
  %1023 = vmatpush1.msra.mxu0 0.0
  %1024 = vmatprep.subr.mxu0 0.0
  %1025 = vmatpush1.msra.mxu0 0.0
  %1026 = vmatprep.subr.mxu0 0.0
  %1027 = vmatpush1.msra.mxu0 0.0
  %1028 = vmatprep.subr.mxu0 0.0
  %1029 = vmatpush1.msra.mxu0 0.0
  %1030 = vmatprep.subr.mxu0 0.0
  %1031 = vmatpush1.msra.mxu0 0.0
  %1032 = vmatprep.subr.mxu0 0.0
  %1033 = vmatpush1.msra.mxu0 0.0
  %1034 = vmatprep.subr.mxu0 0.0
  %1035 = vmatpush1.msra.mxu0 0.0
  %1036 = vmatprep.subr.mxu0 0.0
  %1037 = vmatpush1.msra.mxu0 0.0
  %1038 = vmatprep.subr.mxu0 0.0
  %1039 = vmatpush1.msra.mxu0 0.0
  %1040 = vmatprep.subr.mxu0 0.0
  %1041 = vmatpush1.msra.mxu0 0.0
  %1042 = vmatprep.subr.mxu0 0.0
  %1043 = vmatpush1.msra.mxu0 0.0
  %1044 = vmatprep.subr.mxu0 0.0
  %1045 = vmatpush1.msra.mxu0 %v842
  %1046 = vmatprep.subr.mxu0 0.0
  %1047 = vmatpush1.msra.mxu0 %v841
  %1048 = vmatprep.subr.mxu0 0.0
  %1049 = vmatpush1.msra.mxu0 %v840
  %1050 = vmatprep.subr.mxu0 0.0
  %1051 = vmatpush1.msra.mxu0 %v839
  %1052 = vmatprep.subr.mxu0 0.0
  %1053 = vmatpush2.msra.mxu0 0.0
  %1054 = vmatprep.subr.mxu0 0.0
  %1055 = vmatpush2.msra.mxu0 0.0
  %1056 = vmatprep.subr.mxu0 0.0
  %1057 = vmatpush2.msra.mxu0 0.0
  %1058 = vmatprep.subr.mxu0 0.0
  %1059 = vmatpush2.msra.mxu0 0.0
  %1060 = vmatprep.subr.mxu0 0.0
  %1061 = vmatpush2.msra.mxu0 0.0
  %1062 = vmatprep.subr.mxu0 0.0
  %1063 = vmatpush2.msra.mxu0 0.0
  %1064 = vmatprep.subr.mxu0 0.0
  %1065 = vmatpush2.msra.mxu0 0.0
  %1066 = vmatprep.subr.mxu0 0.0
  %1067 = vmatpush2.msra.mxu0 0.0
  %1068 = vmatprep.subr.mxu0 0.0
  %1069 = vmatpush2.msra.mxu0 0.0
  %1070 = vmatprep.subr.mxu0 0.0
  %1071 = vmatpush2.msra.mxu0 0.0
  %1072 = vmatprep.subr.mxu0 0.0
  %1073 = vmatpush2.msra.mxu0 0.0
  %1074 = vmatprep.subr.mxu0 0.0
  %1075 = vmatpush2.msra.mxu0 0.0
  %1076 = vmatprep.subr.mxu0 0.0
  %1077 = vmatpush2.msra.mxu0 0.0
  %1078 = vmatprep.subr.mxu0 0.0
  %1079 = vmatpush2.msra.mxu0 0.0
  %1080 = vmatprep.subr.mxu0 0.0
  %1081 = vmatpush2.msra.mxu0 0.0
  %1082 = vmatprep.subr.mxu0 0.0
  %1083 = vmatpush2.msra.mxu0 0.0
  %1084 = vmatprep.mubr.f32.mxu0 0.0
  %1085 = vmatmul.mubr.f32.gmra.mxu0 %v1015
  %v1086 = vpop.f32.mrf.mxu0
  %v1087 = vadd.f32 0.0, %v1086
  %v1088 = vpop.f32.mrf.mxu0
  %1089 = vmatprep.mubr.f32.mxu0 0.0
  %1090 = vmatmul.mubr.f32.gmra.mxu0 %v1018
  %v1091 = vpop.f32.mrf.mxu0
  %v1092 = vadd.f32 0.0, %v1091
  %v1093 = vpop.f32.mrf.mxu0
  %1094 = vdwg.mxu0
  %s1095 = scalar_lea.vmem %s3, 48
  %v1096 = vld [vmem:[%s1095] sm:$0xff]
  %v1097 = vld [vmem:[%s1095 + $0x8] sm:$0xff]
  %v1099 = vsel %vm845, %v1096, 0
  %v1102 = vsel %vm845, %v1097, 0
  %1104 = vmatprep.subr.mxu0 0.0
  %1105 = vmatpush1.msra.mxu0 0.0
  %1106 = vmatprep.subr.mxu0 0.0
  %1107 = vmatpush1.msra.mxu0 0.0
  %1108 = vmatprep.subr.mxu0 0.0
  %1109 = vmatpush1.msra.mxu0 0.0
  %1110 = vmatprep.subr.mxu0 0.0
  %1111 = vmatpush1.msra.mxu0 0.0
  %1112 = vmatprep.subr.mxu0 0.0
  %1113 = vmatpush1.msra.mxu0 0.0
  %1114 = vmatprep.subr.mxu0 0.0
  %1115 = vmatpush1.msra.mxu0 0.0
  %1116 = vmatprep.subr.mxu0 0.0
  %1117 = vmatpush1.msra.mxu0 0.0
  %1118 = vmatprep.subr.mxu0 0.0
  %1119 = vmatpush1.msra.mxu0 0.0
  %1120 = vmatprep.subr.mxu0 0.0
  %1121 = vmatpush1.msra.mxu0 0.0
  %1122 = vmatprep.subr.mxu0 0.0
  %1123 = vmatpush1.msra.mxu0 0.0
  %1124 = vmatprep.subr.mxu0 0.0
  %1125 = vmatpush1.msra.mxu0 0.0
  %1126 = vmatprep.subr.mxu0 0.0
  %1127 = vmatpush1.msra.mxu0 0.0
  %1128 = vmatprep.subr.mxu0 0.0
  %1129 = vmatpush1.msra.mxu0 %v842
  %1130 = vmatprep.subr.mxu0 0.0
  %1131 = vmatpush1.msra.mxu0 %v841
  %1132 = vmatprep.subr.mxu0 0.0
  %1133 = vmatpush1.msra.mxu0 %v840
  %1134 = vmatprep.subr.mxu0 0.0
  %1135 = vmatpush1.msra.mxu0 %v839
  %1136 = vmatprep.subr.mxu0 0.0
  %1137 = vmatpush2.msra.mxu0 0.0
  %1138 = vmatprep.subr.mxu0 0.0
  %1139 = vmatpush2.msra.mxu0 0.0
  %1140 = vmatprep.subr.mxu0 0.0
  %1141 = vmatpush2.msra.mxu0 0.0
  %1142 = vmatprep.subr.mxu0 0.0
  %1143 = vmatpush2.msra.mxu0 0.0
  %1144 = vmatprep.subr.mxu0 0.0
  %1145 = vmatpush2.msra.mxu0 0.0
  %1146 = vmatprep.subr.mxu0 0.0
  %1147 = vmatpush2.msra.mxu0 0.0
  %1148 = vmatprep.subr.mxu0 0.0
  %1149 = vmatpush2.msra.mxu0 0.0
  %1150 = vmatprep.subr.mxu0 0.0
  %1151 = vmatpush2.msra.mxu0 0.0
  %1152 = vmatprep.subr.mxu0 0.0
  %1153 = vmatpush2.msra.mxu0 0.0
  %1154 = vmatprep.subr.mxu0 0.0
  %1155 = vmatpush2.msra.mxu0 0.0
  %1156 = vmatprep.subr.mxu0 0.0
  %1157 = vmatpush2.msra.mxu0 0.0
  %1158 = vmatprep.subr.mxu0 0.0
  %1159 = vmatpush2.msra.mxu0 0.0
  %1160 = vmatprep.subr.mxu0 0.0
  %1161 = vmatpush2.msra.mxu0 0.0
  %1162 = vmatprep.subr.mxu0 0.0
  %1163 = vmatpush2.msra.mxu0 0.0
  %1164 = vmatprep.subr.mxu0 0.0
  %1165 = vmatpush2.msra.mxu0 0.0
  %1166 = vmatprep.subr.mxu0 0.0
  %1167 = vmatpush2.msra.mxu0 0.0
  %1168 = vmatprep.mubr.f32.mxu0 0.0
  %1169 = vmatmul.mubr.f32.gmra.mxu0 %v1099
  %v1170 = vpop.f32.mrf.mxu0
  %v1171 = vadd.f32 0.0, %v1170
  %v1172 = vpop.f32.mrf.mxu0
  %1173 = vmatprep.mubr.f32.mxu0 0.0
  %1174 = vmatmul.mubr.f32.gmra.mxu0 %v1102
  %v1175 = vpop.f32.mrf.mxu0
  %v1176 = vadd.f32 0.0, %v1175
  %v1177 = vpop.f32.mrf.mxu0
  %1178 = vdwg.mxu0
  %v1179 = vpack.c.bf16 %v924, %v919
  %v1180 = vpack.c.bf16 %v1008, %v1003
  %v1181 = vpack.c.bf16 %v1092, %v1087
  %v1182 = vpack.c.bf16 %v1176, %v1171
  %v1183 = vld [vmem:[%s4] sm:$0xf]
  %v1184 = vld [vmem:[%s4 + $0x4] sm:$0xf]
  %v1185 = vld [vmem:[%s4 + $0x8] sm:$0xf]
  %v1186 = vld [vmem:[%s4 + $0xc] sm:$0xf]
  %v1187 = vld [vmem:[%s4 + $0x10] sm:$0xf]
  %v1188 = vld [vmem:[%s4 + $0x14] sm:$0xf]
  %v1189 = vld [vmem:[%s4 + $0x18] sm:$0xf]
  %v1190 = vld [vmem:[%s4 + $0x1c] sm:$0xf]
  %v1191 = vld [vmem:[%s4 + $0x20] sm:$0xf]
  %v1192 = vld [vmem:[%s4 + $0x24] sm:$0xf]
  %v1193 = vld [vmem:[%s4 + $0x28] sm:$0xf]
  %v1194 = vld [vmem:[%s4 + $0x2c] sm:$0xf]
  %v1195 = vld [vmem:[%s4 + $0x30] sm:$0xf]
  %v1196 = vld [vmem:[%s4 + $0x34] sm:$0xf]
  %v1197 = vld [vmem:[%s4 + $0x38] sm:$0xf]
  %v1198 = vld [vmem:[%s4 + $0x3c] sm:$0xf]
  %v1199 = vld [vmem:[%s4 + $0x40] sm:$0xf]
  %v1200 = vld [vmem:[%s4 + $0x44] sm:$0xf]
  %v1201 = vld [vmem:[%s4 + $0x48] sm:$0xf]
  %v1202 = vld [vmem:[%s4 + $0x4c] sm:$0xf]
  %v1203 = vld [vmem:[%s4 + $0x50] sm:$0xf]
  %v1204 = vld [vmem:[%s4 + $0x54] sm:$0xf]
  %v1205 = vld [vmem:[%s4 + $0x58] sm:$0xf]
  %v1206 = vld [vmem:[%s4 + $0x5c] sm:$0xf]
  %v1207 = vld [vmem:[%s4 + $0x60] sm:$0xf]
  %v1208 = vld [vmem:[%s4 + $0x64] sm:$0xf]
  %v1209 = vld [vmem:[%s4 + $0x68] sm:$0xf]
  %v1210 = vld [vmem:[%s4 + $0x6c] sm:$0xf]
  %v1211 = vld [vmem:[%s4 + $0x70] sm:$0xf]
  %v1212 = vld [vmem:[%s4 + $0x74] sm:$0xf]
  %v1213 = vld [vmem:[%s4 + $0x78] sm:$0xf]
  %v1214 = vld [vmem:[%s4 + $0x7c] sm:$0xf]
  %v1215 = vld [vmem:[%s4 + $0x80] sm:$0xf]
  %v1216 = vld [vmem:[%s4 + $0x84] sm:$0xf]
  %v1217 = vld [vmem:[%s4 + $0x88] sm:$0xf]
  %v1218 = vld [vmem:[%s4 + $0x8c] sm:$0xf]
  %v1219 = vld [vmem:[%s4 + $0x90] sm:$0xf]
  %v1220 = vld [vmem:[%s4 + $0x94] sm:$0xf]
  %v1221 = vld [vmem:[%s4 + $0x98] sm:$0xf]
  %v1222 = vld [vmem:[%s4 + $0x9c] sm:$0xf]
  %v1223 = vld [vmem:[%s4 + $0xa0] sm:$0xf]
  %v1224 = vld [vmem:[%s4 + $0xa4] sm:$0xf]
  %v1225 = vld [vmem:[%s4 + $0xa8] sm:$0xf]
  %v1226 = vld [vmem:[%s4 + $0xac] sm:$0xf]
  %v1227 = vld [vmem:[%s4 + $0xb0] sm:$0xf]
  %v1228 = vld [vmem:[%s4 + $0xb4] sm:$0xf]
  %v1229 = vld [vmem:[%s4 + $0xb8] sm:$0xf]
  %v1230 = vld [vmem:[%s4 + $0xbc] sm:$0xf]
  %v1231 = vld [vmem:[%s4 + $0xc0] sm:$0xf]
  %v1232 = vld [vmem:[%s4 + $0xc4] sm:$0xf]
  %v1233 = vld [vmem:[%s4 + $0xc8] sm:$0xf]
  %v1234 = vld [vmem:[%s4 + $0xcc] sm:$0xf]
  %v1235 = vld [vmem:[%s4 + $0xd0] sm:$0xf]
  %v1236 = vld [vmem:[%s4 + $0xd4] sm:$0xf]
  %v1237 = vld [vmem:[%s4 + $0xd8] sm:$0xf]
  %v1238 = vld [vmem:[%s4 + $0xdc] sm:$0xf]
  %v1239 = vld [vmem:[%s4 + $0xe0] sm:$0xf]
  %v1240 = vld [vmem:[%s4 + $0xe4] sm:$0xf]
  %v1241 = vld [vmem:[%s4 + $0xe8] sm:$0xf]
  %v1242 = vld [vmem:[%s4 + $0xec] sm:$0xf]
  %v1243 = vld [vmem:[%s4 + $0xf0] sm:$0xf]
  %v1244 = vld [vmem:[%s4 + $0xf4] sm:$0xf]
  %v1245 = vld [vmem:[%s4 + $0xf8] sm:$0xf]
  %v1246 = vld [vmem:[%s4 + $0xfc] sm:$0xf]
  %v1311 = vunpack.c.l.b16 %v1183
  %v1312 = vunpack.c.l.b16 %v1184
  %v1313 = vunpack.c.l.b16 %v1185
  %v1314 = vunpack.c.l.b16 %v1186
  %v1315 = vunpack.c.l.b16 %v1187
  %v1316 = vunpack.c.l.b16 %v1188
  %v1317 = vunpack.c.l.b16 %v1189
  %v1318 = vunpack.c.l.b16 %v1190
  %v1319 = vunpack.c.l.b16 %v1191
  %v1320 = vunpack.c.l.b16 %v1192
  %v1321 = vunpack.c.l.b16 %v1193
  %v1322 = vunpack.c.l.b16 %v1194
  %v1323 = vunpack.c.l.b16 %v1195
  %v1324 = vunpack.c.l.b16 %v1196
  %v1325 = vunpack.c.l.b16 %v1197
  %v1326 = vunpack.c.l.b16 %v1198
  %v1327 = vunpack.c.l.b16 %v1199
  %v1328 = vunpack.c.l.b16 %v1200
  %v1329 = vunpack.c.l.b16 %v1201
  %v1330 = vunpack.c.l.b16 %v1202
  %v1331 = vunpack.c.l.b16 %v1203
  %v1332 = vunpack.c.l.b16 %v1204
  %v1333 = vunpack.c.l.b16 %v1205
  %v1334 = vunpack.c.l.b16 %v1206
  %v1335 = vunpack.c.l.b16 %v1207
  %v1336 = vunpack.c.l.b16 %v1208
  %v1337 = vunpack.c.l.b16 %v1209
  %v1338 = vunpack.c.l.b16 %v1210
  %v1339 = vunpack.c.l.b16 %v1211
  %v1340 = vunpack.c.l.b16 %v1212
  %v1341 = vunpack.c.l.b16 %v1213
  %v1342 = vunpack.c.l.b16 %v1214
  %v1343 = vunpack.c.l.b16 %v1215
  %v1344 = vunpack.c.l.b16 %v1216
  %v1345 = vunpack.c.l.b16 %v1217
  %v1346 = vunpack.c.l.b16 %v1218
  %v1347 = vunpack.c.l.b16 %v1219
  %v1348 = vunpack.c.l.b16 %v1220
  %v1349 = vunpack.c.l.b16 %v1221
  %v1350 = vunpack.c.l.b16 %v1222
  %v1351 = vunpack.c.l.b16 %v1223
  %v1352 = vunpack.c.l.b16 %v1224
  %v1353 = vunpack.c.l.b16 %v1225
  %v1354 = vunpack.c.l.b16 %v1226
  %v1355 = vunpack.c.l.b16 %v1227
  %v1356 = vunpack.c.l.b16 %v1228
  %v1357 = vunpack.c.l.b16 %v1229
  %v1358 = vunpack.c.l.b16 %v1230
  %v1359 = vunpack.c.l.b16 %v1231
  %v1360 = vunpack.c.l.b16 %v1232
  %v1361 = vunpack.c.l.b16 %v1233
  %v1362 = vunpack.c.l.b16 %v1234
  %v1363 = vunpack.c.l.b16 %v1235
  %v1364 = vunpack.c.l.b16 %v1236
  %v1365 = vunpack.c.l.b16 %v1237
  %v1366 = vunpack.c.l.b16 %v1238
  %v1367 = vunpack.c.l.b16 %v1239
  %v1368 = vunpack.c.l.b16 %v1240
  %v1369 = vunpack.c.l.b16 %v1241
  %v1370 = vunpack.c.l.b16 %v1242
  %v1371 = vunpack.c.l.b16 %v1243
  %v1372 = vunpack.c.l.b16 %v1244
  %v1373 = vunpack.c.l.b16 %v1245
  %v1374 = vunpack.c.l.b16 %v1246
  %v1375 = vpack.c.b16 %v1312, %v1311
  %v1376 = vpack.c.b16 %v1314, %v1313
  %v1377 = vpack.c.b16 %v1316, %v1315
  %v1378 = vpack.c.b16 %v1318, %v1317
  %v1379 = vpack.c.b16 %v1320, %v1319
  %v1380 = vpack.c.b16 %v1322, %v1321
  %v1381 = vpack.c.b16 %v1324, %v1323
  %v1382 = vpack.c.b16 %v1326, %v1325
  %v1383 = vpack.c.b16 %v1328, %v1327
  %v1384 = vpack.c.b16 %v1330, %v1329
  %v1385 = vpack.c.b16 %v1332, %v1331
  %v1386 = vpack.c.b16 %v1334, %v1333
  %v1387 = vpack.c.b16 %v1336, %v1335
  %v1388 = vpack.c.b16 %v1338, %v1337
  %v1389 = vpack.c.b16 %v1340, %v1339
  %v1390 = vpack.c.b16 %v1342, %v1341
  %v1391 = vpack.c.b16 %v1344, %v1343
  %v1392 = vpack.c.b16 %v1346, %v1345
  %v1393 = vpack.c.b16 %v1348, %v1347
  %v1394 = vpack.c.b16 %v1350, %v1349
  %v1395 = vpack.c.b16 %v1352, %v1351
  %v1396 = vpack.c.b16 %v1354, %v1353
  %v1397 = vpack.c.b16 %v1356, %v1355
  %v1398 = vpack.c.b16 %v1358, %v1357
  %v1399 = vpack.c.b16 %v1360, %v1359
  %v1400 = vpack.c.b16 %v1362, %v1361
  %v1401 = vpack.c.b16 %v1364, %v1363
  %v1402 = vpack.c.b16 %v1366, %v1365
  %v1403 = vpack.c.b16 %v1368, %v1367
  %v1404 = vpack.c.b16 %v1370, %v1369
  %v1405 = vpack.c.b16 %v1372, %v1371
  %v1406 = vpack.c.b16 %v1374, %v1373
  %1439 = vmatprep.subr.bf16.mxu0 0
  %1440 = vmatpush1.bf16.msra.mxu0 %v1382
  %1441 = vmatprep.subr.bf16.mxu0 0
  %1442 = vmatpush1.bf16.msra.mxu0 %v1381
  %1443 = vmatprep.subr.bf16.mxu0 0
  %1444 = vmatpush1.bf16.msra.mxu0 %v1380
  %1445 = vmatprep.subr.bf16.mxu0 0
  %1446 = vmatpush1.bf16.msra.mxu0 %v1379
  %1447 = vmatprep.subr.bf16.mxu0 0
  %1448 = vmatpush1.bf16.msra.mxu0 %v1378
  %1449 = vmatprep.subr.bf16.mxu0 0
  %1450 = vmatpush1.bf16.msra.mxu0 %v1377
  %1451 = vmatprep.subr.bf16.mxu0 0
  %1452 = vmatpush1.bf16.msra.mxu0 %v1376
  %1453 = vmatprep.subr.bf16.mxu0 0
  %1454 = vmatpush1.bf16.msra.mxu0 %v1375
  %1455 = vmatprep.subr.bf16.mxu0 0
  %1456 = vmatpush2.bf16.msra.mxu0 %v1390
  %1457 = vmatprep.subr.bf16.mxu0 0
  %1458 = vmatpush2.bf16.msra.mxu0 %v1389
  %1459 = vmatprep.subr.bf16.mxu0 0
  %1460 = vmatpush2.bf16.msra.mxu0 %v1388
  %1461 = vmatprep.subr.bf16.mxu0 0
  %1462 = vmatpush2.bf16.msra.mxu0 %v1387
  %1463 = vmatprep.subr.bf16.mxu0 0
  %1464 = vmatpush2.bf16.msra.mxu0 %v1386
  %1465 = vmatprep.subr.bf16.mxu0 0
  %1466 = vmatpush2.bf16.msra.mxu0 %v1385
  %1467 = vmatprep.subr.bf16.mxu0 0
  %1468 = vmatpush2.bf16.msra.mxu0 %v1384
  %1469 = vmatprep.subr.bf16.mxu0 0
  %1470 = vmatpush2.bf16.msra.mxu0 %v1383
  %1471 = vmatprep.mubr.bf16.mxu0 %v1180
  %1472 = vmatmul.mubr.bf16.gmra.mxu0 %v1179
  %v1473 = vpop.f32.mrf.mxu0
  %v1474 = vadd.f32 0.0, %v1473
  %v1475 = vpop.f32.mrf.mxu0
  %v1476 = vpop.f32.mrf.mxu0
  %v1477 = vadd.f32 0.0, %v1476
  %v1478 = vpop.f32.mrf.mxu0
  %1479 = vdwg.mxu0
  %1480 = vmatprep.subr.bf16.mxu0 0
  %1481 = vmatpush1.bf16.msra.mxu0 %v1398
  %1482 = vmatprep.subr.bf16.mxu0 0
  %1483 = vmatpush1.bf16.msra.mxu0 %v1397
  %1484 = vmatprep.subr.bf16.mxu0 0
  %1485 = vmatpush1.bf16.msra.mxu0 %v1396
  %1486 = vmatprep.subr.bf16.mxu0 0
  %1487 = vmatpush1.bf16.msra.mxu0 %v1395
  %1488 = vmatprep.subr.bf16.mxu0 0
  %1489 = vmatpush1.bf16.msra.mxu0 %v1394
  %1490 = vmatprep.subr.bf16.mxu0 0
  %1491 = vmatpush1.bf16.msra.mxu0 %v1393
  %1492 = vmatprep.subr.bf16.mxu0 0
  %1493 = vmatpush1.bf16.msra.mxu0 %v1392
  %1494 = vmatprep.subr.bf16.mxu0 0
  %1495 = vmatpush1.bf16.msra.mxu0 %v1391
  %1496 = vmatprep.subr.bf16.mxu0 0
  %1497 = vmatpush2.bf16.msra.mxu0 %v1406
  %1498 = vmatprep.subr.bf16.mxu0 0
  %1499 = vmatpush2.bf16.msra.mxu0 %v1405
  %1500 = vmatprep.subr.bf16.mxu0 0
  %1501 = vmatpush2.bf16.msra.mxu0 %v1404
  %1502 = vmatprep.subr.bf16.mxu0 0
  %1503 = vmatpush2.bf16.msra.mxu0 %v1403
  %1504 = vmatprep.subr.bf16.mxu0 0
  %1505 = vmatpush2.bf16.msra.mxu0 %v1402
  %1506 = vmatprep.subr.bf16.mxu0 0
  %1507 = vmatpush2.bf16.msra.mxu0 %v1401
  %1508 = vmatprep.subr.bf16.mxu0 0
  %1509 = vmatpush2.bf16.msra.mxu0 %v1400
  %1510 = vmatprep.subr.bf16.mxu0 0
  %1511 = vmatpush2.bf16.msra.mxu0 %v1399
  %1512 = vmatprep.mubr.bf16.mxu0 %v1182
  %1513 = vmatmul.mubr.bf16.gmra.mxu0 %v1181
  %v1514 = vpop.f32.mrf.mxu0
  %v1515 = vadd.f32 %v1474, %v1514
  %v1516 = vpop.f32.mrf.mxu0
  %v1517 = vpop.f32.mrf.mxu0
  %v1518 = vadd.f32 %v1477, %v1517
  %v1519 = vpop.f32.mrf.mxu0
  %1520 = vdwg.mxu0
  %v1521 = vmul.f32 %v1515, %v1515
  %v1522 = vmul.f32 %v1518, %v1518
  %v1523 = vld [vmem:[%s5] sm:$0xff]
  %v1524 = vld [vmem:[%s5 + $0x8] sm:$0xff]
  %v1525 = vld [vmem:[%s5 + $0x10] sm:$0xff]
  %v1526 = vld [vmem:[%s5 + $0x18] sm:$0xff]
  %v1527 = vld [vmem:[%s5 + $0x20] sm:$0xff]
  %v1528 = vld [vmem:[%s5 + $0x28] sm:$0xff]
  %v1529 = vld [vmem:[%s5 + $0x30] sm:$0xff]
  %v1530 = vld [vmem:[%s5 + $0x38] sm:$0xff]
  %v1531 = vld [vmem:[%s5 + $0x40] sm:$0xff]
  %v1532 = vld [vmem:[%s5 + $0x48] sm:$0xff]
  %v1533 = vld [vmem:[%s5 + $0x50] sm:$0xff]
  %v1534 = vld [vmem:[%s5 + $0x58] sm:$0xff]
  %v1535 = vld [vmem:[%s5 + $0x60] sm:$0xff]
  %v1536 = vld [vmem:[%s5 + $0x68] sm:$0xff]
  %v1537 = vld [vmem:[%s5 + $0x70] sm:$0xff]
  %v1538 = vld [vmem:[%s5 + $0x78] sm:$0xff]
  %1539 = vmatprep.subr.mxu0 0.0
  %1540 = vmatpush1.msra.mxu0 %v1538
  %1541 = vmatprep.subr.mxu0 0.0
  %1542 = vmatpush1.msra.mxu0 %v1537
  %1543 = vmatprep.subr.mxu0 0.0
  %1544 = vmatpush1.msra.mxu0 %v1536
  %1545 = vmatprep.subr.mxu0 0.0
  %1546 = vmatpush1.msra.mxu0 %v1535
  %1547 = vmatprep.subr.mxu0 0.0
  %1548 = vmatpush1.msra.mxu0 %v1534
  %1549 = vmatprep.subr.mxu0 0.0
  %1550 = vmatpush1.msra.mxu0 %v1533
  %1551 = vmatprep.subr.mxu0 0.0
  %1552 = vmatpush1.msra.mxu0 %v1532
  %1553 = vmatprep.subr.mxu0 0.0
  %1554 = vmatpush1.msra.mxu0 %v1531
  %1555 = vmatprep.subr.mxu0 0.0
  %1556 = vmatpush1.msra.mxu0 %v1530
  %1557 = vmatprep.subr.mxu0 0.0
  %1558 = vmatpush1.msra.mxu0 %v1529
  %1559 = vmatprep.subr.mxu0 0.0
  %1560 = vmatpush1.msra.mxu0 %v1528
  %1561 = vmatprep.subr.mxu0 0.0
  %1562 = vmatpush1.msra.mxu0 %v1527
  %1563 = vmatprep.subr.mxu0 0.0
  %1564 = vmatpush1.msra.mxu0 %v1526
  %1565 = vmatprep.subr.mxu0 0.0
  %1566 = vmatpush1.msra.mxu0 %v1525
  %1567 = vmatprep.subr.mxu0 0.0
  %1568 = vmatpush1.msra.mxu0 %v1524
  %1569 = vmatprep.subr.mxu0 0.0
  %1570 = vmatpush1.msra.mxu0 %v1523
  %1571 = vmatprep.subr.mxu0 0.0
  %1572 = vmatpush2.msra.mxu0 0.0
  %1573 = vmatprep.subr.mxu0 0.0
  %1574 = vmatpush2.msra.mxu0 0.0
  %1575 = vmatprep.subr.mxu0 0.0
  %1576 = vmatpush2.msra.mxu0 0.0
  %1577 = vmatprep.subr.mxu0 0.0
  %1578 = vmatpush2.msra.mxu0 0.0
  %1579 = vmatprep.subr.mxu0 0.0
  %1580 = vmatpush2.msra.mxu0 0.0
  %1581 = vmatprep.subr.mxu0 0.0
  %1582 = vmatpush2.msra.mxu0 0.0
  %1583 = vmatprep.subr.mxu0 0.0
  %1584 = vmatpush2.msra.mxu0 0.0
  %1585 = vmatprep.subr.mxu0 0.0
  %1586 = vmatpush2.msra.mxu0 0.0
  %1587 = vmatprep.subr.mxu0 0.0
  %1588 = vmatpush2.msra.mxu0 0.0
  %1589 = vmatprep.subr.mxu0 0.0
  %1590 = vmatpush2.msra.mxu0 0.0
  %1591 = vmatprep.subr.mxu0 0.0
  %1592 = vmatpush2.msra.mxu0 0.0
  %1593 = vmatprep.subr.mxu0 0.0
  %1594 = vmatpush2.msra.mxu0 0.0
  %1595 = vmatprep.subr.mxu0 0.0
  %1596 = vmatpush2.msra.mxu0 0.0
  %1597 = vmatprep.subr.mxu0 0.0
  %1598 = vmatpush2.msra.mxu0 0.0
  %1599 = vmatprep.subr.mxu0 0.0
  %1600 = vmatpush2.msra.mxu0 0.0
  %1601 = vmatprep.subr.mxu0 0.0
  %1602 = vmatpush2.msra.mxu0 0.0
  %1603 = vmatprep.mubr.f32.mxu0 0.0
  %1604 = vmatmul.mubr.f32.gmra.mxu0 %v1515
  %v1605 = vpop.f32.mrf.mxu0
  %v1606 = vadd.f32 0.0, %v1605
  %v1607 = vpop.f32.mrf.mxu0
  %1608 = vmatprep.mubr.f32.mxu0 0.0
  %1609 = vmatmul.mubr.f32.gmra.mxu0 %v1518
  %v1610 = vpop.f32.mrf.mxu0
  %v1611 = vadd.f32 0.0, %v1610
  %v1612 = vpop.f32.mrf.mxu0
  %1613 = vmatprep.mubr.f32.mxu0 0.0
  %1614 = vmatmul.mubr.f32.gmra.mxu0 %v1521
  %v1615 = vpop.f32.mrf.mxu0
  %v1616 = vadd.f32 0.0, %v1615
  %v1617 = vpop.f32.mrf.mxu0
  %1618 = vmatprep.mubr.f32.mxu0 0.0
  %1619 = vmatmul.mubr.f32.gmra.mxu0 %v1522
  %v1620 = vpop.f32.mrf.mxu0
  %v1621 = vadd.f32 0.0, %v1620
  %v1622 = vpop.f32.mrf.mxu0
  %1623 = vdwg.mxu0
  %vm1624 = vcmask 130048
  %v1625 = vsel %vm1624, %v1606, 0.0
  %v1626 = vsel %vm1624, %v1611, 0.0
  %v1627 = vadd.f32 %v1625, %v1626
  %v1628 = vrot.slane %v1627, 4
  %v1629 = vadd.f32 %v1627, %v1628
  %v1630 = vrot.slane %v1629, 2
  %v1631 = vadd.f32 %v1629, %v1630
  %v1632 = vrot.slane %v1631, 1
  %v1633 = vadd.f32 %v1631, %v1632
  %v1634 = vrcp.pop 128.0
  %v1635 = vmul.f32 %v1633, %v1634
  %v1636 = vsel %vm1624, %v1616, 0.0
  %v1637 = vsel %vm1624, %v1621, 0.0
  %v1638 = vadd.f32 %v1636, %v1637
  %v1639 = vrot.slane %v1638, 4
  %v1640 = vadd.f32 %v1638, %v1639
  %v1641 = vrot.slane %v1640, 2
  %v1642 = vadd.f32 %v1640, %v1641
  %v1643 = vrot.slane %v1642, 1
  %v1644 = vadd.f32 %v1642, %v1643
  %v1645 = vmul.f32 %v1644, %v1634
  %v1646 = vmul.f32 %v1635, %v1635
  %v1647 = vsub.f32 %v1645, %v1646
  %v1648 = vld [vmem:[%s7] sm:$0x1]
  %v1649 = vadd.f32 %v1647, 1e-05
  %v1650 = vrsqrt.pop %v1649
  %v1651 = vmul.f32 %v1648, %v1650
  %v1652 = vld [vmem:[%s8] sm:$0x1]
  %v1653 = vmul.f32 %v1635, %v1651
  %v1654 = vsub.f32 %v1652, %v1653
  %v1655 = vld [vmem:[%s6] sm:$0xff]
  %v1656 = vld [vmem:[%s6 + $0x8] sm:$0xff]
  %v1658 = vsel %vm1624, %v1651, 0
  %1660 = vmatprep.subr.mxu0 0.0
  %1661 = vmatpush1.msra.mxu0 0.0
  %1662 = vmatprep.subr.mxu0 0.0
  %1663 = vmatpush1.msra.mxu0 0.0
  %1664 = vmatprep.subr.mxu0 0.0
  %1665 = vmatpush1.msra.mxu0 0.0
  %1666 = vmatprep.subr.mxu0 0.0
  %1667 = vmatpush1.msra.mxu0 0.0
  %1668 = vmatprep.subr.mxu0 0.0
  %1669 = vmatpush1.msra.mxu0 0.0
  %1670 = vmatprep.subr.mxu0 0.0
  %1671 = vmatpush1.msra.mxu0 0.0
  %1672 = vmatprep.subr.mxu0 0.0
  %1673 = vmatpush1.msra.mxu0 0.0
  %1674 = vmatprep.subr.mxu0 0.0
  %1675 = vmatpush1.msra.mxu0 0.0
  %1676 = vmatprep.subr.mxu0 0.0
  %1677 = vmatpush1.msra.mxu0 0.0
  %1678 = vmatprep.subr.mxu0 0.0
  %1679 = vmatpush1.msra.mxu0 0.0
  %1680 = vmatprep.subr.mxu0 0.0
  %1681 = vmatpush1.msra.mxu0 0.0
  %1682 = vmatprep.subr.mxu0 0.0
  %1683 = vmatpush1.msra.mxu0 0.0
  %1684 = vmatprep.subr.mxu0 0.0
  %1685 = vmatpush1.msra.mxu0 0.0
  %1686 = vmatprep.subr.mxu0 0.0
  %1687 = vmatpush1.msra.mxu0 0.0
  %1688 = vmatprep.subr.mxu0 0.0
  %1689 = vmatpush1.msra.mxu0 %v1656
  %1690 = vmatprep.subr.mxu0 0.0
  %1691 = vmatpush1.msra.mxu0 %v1655
  %1692 = vmatprep.subr.mxu0 0.0
  %1693 = vmatpush2.msra.mxu0 0.0
  %1694 = vmatprep.subr.mxu0 0.0
  %1695 = vmatpush2.msra.mxu0 0.0
  %1696 = vmatprep.subr.mxu0 0.0
  %1697 = vmatpush2.msra.mxu0 0.0
  %1698 = vmatprep.subr.mxu0 0.0
  %1699 = vmatpush2.msra.mxu0 0.0
  %1700 = vmatprep.subr.mxu0 0.0
  %1701 = vmatpush2.msra.mxu0 0.0
  %1702 = vmatprep.subr.mxu0 0.0
  %1703 = vmatpush2.msra.mxu0 0.0
  %1704 = vmatprep.subr.mxu0 0.0
  %1705 = vmatpush2.msra.mxu0 0.0
  %1706 = vmatprep.subr.mxu0 0.0
  %1707 = vmatpush2.msra.mxu0 0.0
  %1708 = vmatprep.subr.mxu0 0.0
  %1709 = vmatpush2.msra.mxu0 0.0
  %1710 = vmatprep.subr.mxu0 0.0
  %1711 = vmatpush2.msra.mxu0 0.0
  %1712 = vmatprep.subr.mxu0 0.0
  %1713 = vmatpush2.msra.mxu0 0.0
  %1714 = vmatprep.subr.mxu0 0.0
  %1715 = vmatpush2.msra.mxu0 0.0
  %1716 = vmatprep.subr.mxu0 0.0
  %1717 = vmatpush2.msra.mxu0 0.0
  %1718 = vmatprep.subr.mxu0 0.0
  %1719 = vmatpush2.msra.mxu0 0.0
  %1720 = vmatprep.subr.mxu0 0.0
  %1721 = vmatpush2.msra.mxu0 0.0
  %1722 = vmatprep.subr.mxu0 0.0
  %1723 = vmatpush2.msra.mxu0 0.0
  %1724 = vmatprep.mubr.f32.mxu0 0.0
  %1725 = vmatmul.mubr.f32.gmra.mxu0 %v1658
  %v1726 = vpop.f32.mrf.mxu0
  %v1727 = vadd.f32 0.0, %v1726
  %v1728 = vpop.f32.mrf.mxu0
  %1729 = vdwg.mxu0
  %v1731 = vsel %vm1624, %v1654, 0
  %1733 = vmatprep.subr.mxu0 0.0
  %1734 = vmatpush1.msra.mxu0 0.0
  %1735 = vmatprep.subr.mxu0 0.0
  %1736 = vmatpush1.msra.mxu0 0.0
  %1737 = vmatprep.subr.mxu0 0.0
  %1738 = vmatpush1.msra.mxu0 0.0
  %1739 = vmatprep.subr.mxu0 0.0
  %1740 = vmatpush1.msra.mxu0 0.0
  %1741 = vmatprep.subr.mxu0 0.0
  %1742 = vmatpush1.msra.mxu0 0.0
  %1743 = vmatprep.subr.mxu0 0.0
  %1744 = vmatpush1.msra.mxu0 0.0
  %1745 = vmatprep.subr.mxu0 0.0
  %1746 = vmatpush1.msra.mxu0 0.0
  %1747 = vmatprep.subr.mxu0 0.0
  %1748 = vmatpush1.msra.mxu0 0.0
  %1749 = vmatprep.subr.mxu0 0.0
  %1750 = vmatpush1.msra.mxu0 0.0
  %1751 = vmatprep.subr.mxu0 0.0
  %1752 = vmatpush1.msra.mxu0 0.0
  %1753 = vmatprep.subr.mxu0 0.0
  %1754 = vmatpush1.msra.mxu0 0.0
  %1755 = vmatprep.subr.mxu0 0.0
  %1756 = vmatpush1.msra.mxu0 0.0
  %1757 = vmatprep.subr.mxu0 0.0
  %1758 = vmatpush1.msra.mxu0 0.0
  %1759 = vmatprep.subr.mxu0 0.0
  %1760 = vmatpush1.msra.mxu0 0.0
  %1761 = vmatprep.subr.mxu0 0.0
  %1762 = vmatpush1.msra.mxu0 %v1656
  %1763 = vmatprep.subr.mxu0 0.0
  %1764 = vmatpush1.msra.mxu0 %v1655
  %1765 = vmatprep.subr.mxu0 0.0
  %1766 = vmatpush2.msra.mxu0 0.0
  %1767 = vmatprep.subr.mxu0 0.0
  %1768 = vmatpush2.msra.mxu0 0.0
  %1769 = vmatprep.subr.mxu0 0.0
  %1770 = vmatpush2.msra.mxu0 0.0
  %1771 = vmatprep.subr.mxu0 0.0
  %1772 = vmatpush2.msra.mxu0 0.0
  %1773 = vmatprep.subr.mxu0 0.0
  %1774 = vmatpush2.msra.mxu0 0.0
  %1775 = vmatprep.subr.mxu0 0.0
  %1776 = vmatpush2.msra.mxu0 0.0
  %1777 = vmatprep.subr.mxu0 0.0
  %1778 = vmatpush2.msra.mxu0 0.0
  %1779 = vmatprep.subr.mxu0 0.0
  %1780 = vmatpush2.msra.mxu0 0.0
  %1781 = vmatprep.subr.mxu0 0.0
  %1782 = vmatpush2.msra.mxu0 0.0
  %1783 = vmatprep.subr.mxu0 0.0
  %1784 = vmatpush2.msra.mxu0 0.0
  %1785 = vmatprep.subr.mxu0 0.0
  %1786 = vmatpush2.msra.mxu0 0.0
  %1787 = vmatprep.subr.mxu0 0.0
  %1788 = vmatpush2.msra.mxu0 0.0
  %1789 = vmatprep.subr.mxu0 0.0
  %1790 = vmatpush2.msra.mxu0 0.0
  %1791 = vmatprep.subr.mxu0 0.0
  %1792 = vmatpush2.msra.mxu0 0.0
  %1793 = vmatprep.subr.mxu0 0.0
  %1794 = vmatpush2.msra.mxu0 0.0
  %1795 = vmatprep.subr.mxu0 0.0
  %1796 = vmatpush2.msra.mxu0 0.0
  %1797 = vmatprep.mubr.f32.mxu0 0.0
  %1798 = vmatmul.mubr.f32.gmra.mxu0 %v1731
  %v1799 = vpop.f32.mrf.mxu0
  %v1800 = vadd.f32 0.0, %v1799
  %v1801 = vpop.f32.mrf.mxu0
  %1802 = vdwg.mxu0
  %v1803 = vlaneseq
  %v1804 = vshrl.u32 %v1803, 7
  %v1805 = vsub.s32 0, %v1804
  %v1806 = vrot.slane %v1727, %v1805
  %v1807 = vmul.f32 %v1515, %v1806
  %v1808 = vmul.f32 %v1518, %v1806
  %v1809 = vlaneseq
  %v1810 = vshrl.u32 %v1809, 7
  %v1811 = vsub.s32 0, %v1810
  %v1812 = vrot.slane %v1800, %v1811
  %v1813 = vadd.f32 %v1807, %v1812
  %v1814 = vadd.f32 %v1808, %v1812
  %v1815 = vmul.f32 %v1813, 0.2
  %v1816 = vmul.f32 %v1814, 0.2
  %v1817 = vmax.f32 %v1813, %v1815
  %v1818 = vmax.f32 %v1814, %v1816
  %v1819 = vld [vmem:[%s9] sm:$0xff]
  %v1821 = vsel %vm1624, %v1819, 0
  %1823 = vmatprep.subr.mxu0 0.0
  %1824 = vmatpush1.msra.mxu0 0.0
  %1825 = vmatprep.subr.mxu0 0.0
  %1826 = vmatpush1.msra.mxu0 0.0
  %1827 = vmatprep.subr.mxu0 0.0
  %1828 = vmatpush1.msra.mxu0 0.0
  %1829 = vmatprep.subr.mxu0 0.0
  %1830 = vmatpush1.msra.mxu0 0.0
  %1831 = vmatprep.subr.mxu0 0.0
  %1832 = vmatpush1.msra.mxu0 0.0
  %1833 = vmatprep.subr.mxu0 0.0
  %1834 = vmatpush1.msra.mxu0 0.0
  %1835 = vmatprep.subr.mxu0 0.0
  %1836 = vmatpush1.msra.mxu0 0.0
  %1837 = vmatprep.subr.mxu0 0.0
  %1838 = vmatpush1.msra.mxu0 0.0
  %1839 = vmatprep.subr.mxu0 0.0
  %1840 = vmatpush1.msra.mxu0 0.0
  %1841 = vmatprep.subr.mxu0 0.0
  %1842 = vmatpush1.msra.mxu0 0.0
  %1843 = vmatprep.subr.mxu0 0.0
  %1844 = vmatpush1.msra.mxu0 0.0
  %1845 = vmatprep.subr.mxu0 0.0
  %1846 = vmatpush1.msra.mxu0 0.0
  %1847 = vmatprep.subr.mxu0 0.0
  %1848 = vmatpush1.msra.mxu0 0.0
  %1849 = vmatprep.subr.mxu0 0.0
  %1850 = vmatpush1.msra.mxu0 0.0
  %1851 = vmatprep.subr.mxu0 0.0
  %1852 = vmatpush1.msra.mxu0 %v1818
  %1853 = vmatprep.subr.mxu0 0.0
  %1854 = vmatpush1.msra.mxu0 %v1817
  %1855 = vmatprep.subr.mxu0 0.0
  %1856 = vmatpush2.msra.mxu0 0.0
  %1857 = vmatprep.subr.mxu0 0.0
  %1858 = vmatpush2.msra.mxu0 0.0
  %1859 = vmatprep.subr.mxu0 0.0
  %1860 = vmatpush2.msra.mxu0 0.0
  %1861 = vmatprep.subr.mxu0 0.0
  %1862 = vmatpush2.msra.mxu0 0.0
  %1863 = vmatprep.subr.mxu0 0.0
  %1864 = vmatpush2.msra.mxu0 0.0
  %1865 = vmatprep.subr.mxu0 0.0
  %1866 = vmatpush2.msra.mxu0 0.0
  %1867 = vmatprep.subr.mxu0 0.0
  %1868 = vmatpush2.msra.mxu0 0.0
  %1869 = vmatprep.subr.mxu0 0.0
  %1870 = vmatpush2.msra.mxu0 0.0
  %1871 = vmatprep.subr.mxu0 0.0
  %1872 = vmatpush2.msra.mxu0 0.0
  %1873 = vmatprep.subr.mxu0 0.0
  %1874 = vmatpush2.msra.mxu0 0.0
  %1875 = vmatprep.subr.mxu0 0.0
  %1876 = vmatpush2.msra.mxu0 0.0
  %1877 = vmatprep.subr.mxu0 0.0
  %1878 = vmatpush2.msra.mxu0 0.0
  %1879 = vmatprep.subr.mxu0 0.0
  %1880 = vmatpush2.msra.mxu0 0.0
  %1881 = vmatprep.subr.mxu0 0.0
  %1882 = vmatpush2.msra.mxu0 0.0
  %1883 = vmatprep.subr.mxu0 0.0
  %1884 = vmatpush2.msra.mxu0 0.0
  %1885 = vmatprep.subr.mxu0 0.0
  %1886 = vmatpush2.msra.mxu0 0.0
  %1887 = vmatprep.mubr.f32.mxu0 0.0
  %1888 = vmatmul.mubr.f32.gmra.mxu0 %v1821
  %v1889 = vpop.f32.mrf.mxu0
  %v1890 = vadd.f32 0.0, %v1889
  %v1891 = vpop.f32.mrf.mxu0
  %1892 = vdwg.mxu0
  %s1893 = scalar_lea.vmem %s9, 8
  %v1894 = vld [vmem:[%s1893] sm:$0xff]
  %v1896 = vsel %vm1624, %v1894, 0
  %1898 = vmatprep.subr.mxu0 0.0
  %1899 = vmatpush1.msra.mxu0 0.0
  %1900 = vmatprep.subr.mxu0 0.0
  %1901 = vmatpush1.msra.mxu0 0.0
  %1902 = vmatprep.subr.mxu0 0.0
  %1903 = vmatpush1.msra.mxu0 0.0
  %1904 = vmatprep.subr.mxu0 0.0
  %1905 = vmatpush1.msra.mxu0 0.0
  %1906 = vmatprep.subr.mxu0 0.0
  %1907 = vmatpush1.msra.mxu0 0.0
  %1908 = vmatprep.subr.mxu0 0.0
  %1909 = vmatpush1.msra.mxu0 0.0
  %1910 = vmatprep.subr.mxu0 0.0
  %1911 = vmatpush1.msra.mxu0 0.0
  %1912 = vmatprep.subr.mxu0 0.0
  %1913 = vmatpush1.msra.mxu0 0.0
  %1914 = vmatprep.subr.mxu0 0.0
  %1915 = vmatpush1.msra.mxu0 0.0
  %1916 = vmatprep.subr.mxu0 0.0
  %1917 = vmatpush1.msra.mxu0 0.0
  %1918 = vmatprep.subr.mxu0 0.0
  %1919 = vmatpush1.msra.mxu0 0.0
  %1920 = vmatprep.subr.mxu0 0.0
  %1921 = vmatpush1.msra.mxu0 0.0
  %1922 = vmatprep.subr.mxu0 0.0
  %1923 = vmatpush1.msra.mxu0 0.0
  %1924 = vmatprep.subr.mxu0 0.0
  %1925 = vmatpush1.msra.mxu0 0.0
  %1926 = vmatprep.subr.mxu0 0.0
  %1927 = vmatpush1.msra.mxu0 %v1818
  %1928 = vmatprep.subr.mxu0 0.0
  %1929 = vmatpush1.msra.mxu0 %v1817
  %1930 = vmatprep.subr.mxu0 0.0
  %1931 = vmatpush2.msra.mxu0 0.0
  %1932 = vmatprep.subr.mxu0 0.0
  %1933 = vmatpush2.msra.mxu0 0.0
  %1934 = vmatprep.subr.mxu0 0.0
  %1935 = vmatpush2.msra.mxu0 0.0
  %1936 = vmatprep.subr.mxu0 0.0
  %1937 = vmatpush2.msra.mxu0 0.0
  %1938 = vmatprep.subr.mxu0 0.0
  %1939 = vmatpush2.msra.mxu0 0.0
  %1940 = vmatprep.subr.mxu0 0.0
  %1941 = vmatpush2.msra.mxu0 0.0
  %1942 = vmatprep.subr.mxu0 0.0
  %1943 = vmatpush2.msra.mxu0 0.0
  %1944 = vmatprep.subr.mxu0 0.0
  %1945 = vmatpush2.msra.mxu0 0.0
  %1946 = vmatprep.subr.mxu0 0.0
  %1947 = vmatpush2.msra.mxu0 0.0
  %1948 = vmatprep.subr.mxu0 0.0
  %1949 = vmatpush2.msra.mxu0 0.0
  %1950 = vmatprep.subr.mxu0 0.0
  %1951 = vmatpush2.msra.mxu0 0.0
  %1952 = vmatprep.subr.mxu0 0.0
  %1953 = vmatpush2.msra.mxu0 0.0
  %1954 = vmatprep.subr.mxu0 0.0
  %1955 = vmatpush2.msra.mxu0 0.0
  %1956 = vmatprep.subr.mxu0 0.0
  %1957 = vmatpush2.msra.mxu0 0.0
  %1958 = vmatprep.subr.mxu0 0.0
  %1959 = vmatpush2.msra.mxu0 0.0
  %1960 = vmatprep.subr.mxu0 0.0
  %1961 = vmatpush2.msra.mxu0 0.0
  %1962 = vmatprep.mubr.f32.mxu0 0.0
  %1963 = vmatmul.mubr.f32.gmra.mxu0 %v1896
  %v1964 = vpop.f32.mrf.mxu0
  %v1965 = vadd.f32 0.0, %v1964
  %v1966 = vpop.f32.mrf.mxu0
  %1967 = vdwg.mxu0
  %s1968 = scalar_lea.vmem %s9, 16
  %v1969 = vld [vmem:[%s1968] sm:$0xff]
  %v1971 = vsel %vm1624, %v1969, 0
  %1973 = vmatprep.subr.mxu0 0.0
  %1974 = vmatpush1.msra.mxu0 0.0
  %1975 = vmatprep.subr.mxu0 0.0
  %1976 = vmatpush1.msra.mxu0 0.0
  %1977 = vmatprep.subr.mxu0 0.0
  %1978 = vmatpush1.msra.mxu0 0.0
  %1979 = vmatprep.subr.mxu0 0.0
  %1980 = vmatpush1.msra.mxu0 0.0
  %1981 = vmatprep.subr.mxu0 0.0
  %1982 = vmatpush1.msra.mxu0 0.0
  %1983 = vmatprep.subr.mxu0 0.0
  %1984 = vmatpush1.msra.mxu0 0.0
  %1985 = vmatprep.subr.mxu0 0.0
  %1986 = vmatpush1.msra.mxu0 0.0
  %1987 = vmatprep.subr.mxu0 0.0
  %1988 = vmatpush1.msra.mxu0 0.0
  %1989 = vmatprep.subr.mxu0 0.0
  %1990 = vmatpush1.msra.mxu0 0.0
  %1991 = vmatprep.subr.mxu0 0.0
  %1992 = vmatpush1.msra.mxu0 0.0
  %1993 = vmatprep.subr.mxu0 0.0
  %1994 = vmatpush1.msra.mxu0 0.0
  %1995 = vmatprep.subr.mxu0 0.0
  %1996 = vmatpush1.msra.mxu0 0.0
  %1997 = vmatprep.subr.mxu0 0.0
  %1998 = vmatpush1.msra.mxu0 0.0
  %1999 = vmatprep.subr.mxu0 0.0
  %2000 = vmatpush1.msra.mxu0 0.0
  %2001 = vmatprep.subr.mxu0 0.0
  %2002 = vmatpush1.msra.mxu0 %v1818
  %2003 = vmatprep.subr.mxu0 0.0
  %2004 = vmatpush1.msra.mxu0 %v1817
  %2005 = vmatprep.subr.mxu0 0.0
  %2006 = vmatpush2.msra.mxu0 0.0
  %2007 = vmatprep.subr.mxu0 0.0
  %2008 = vmatpush2.msra.mxu0 0.0
  %2009 = vmatprep.subr.mxu0 0.0
  %2010 = vmatpush2.msra.mxu0 0.0
  %2011 = vmatprep.subr.mxu0 0.0
  %2012 = vmatpush2.msra.mxu0 0.0
  %2013 = vmatprep.subr.mxu0 0.0
  %2014 = vmatpush2.msra.mxu0 0.0
  %2015 = vmatprep.subr.mxu0 0.0
  %2016 = vmatpush2.msra.mxu0 0.0
  %2017 = vmatprep.subr.mxu0 0.0
  %2018 = vmatpush2.msra.mxu0 0.0
  %2019 = vmatprep.subr.mxu0 0.0
  %2020 = vmatpush2.msra.mxu0 0.0
  %2021 = vmatprep.subr.mxu0 0.0
  %2022 = vmatpush2.msra.mxu0 0.0
  %2023 = vmatprep.subr.mxu0 0.0
  %2024 = vmatpush2.msra.mxu0 0.0
  %2025 = vmatprep.subr.mxu0 0.0
  %2026 = vmatpush2.msra.mxu0 0.0
  %2027 = vmatprep.subr.mxu0 0.0
  %2028 = vmatpush2.msra.mxu0 0.0
  %2029 = vmatprep.subr.mxu0 0.0
  %2030 = vmatpush2.msra.mxu0 0.0
  %2031 = vmatprep.subr.mxu0 0.0
  %2032 = vmatpush2.msra.mxu0 0.0
  %2033 = vmatprep.subr.mxu0 0.0
  %2034 = vmatpush2.msra.mxu0 0.0
  %2035 = vmatprep.subr.mxu0 0.0
  %2036 = vmatpush2.msra.mxu0 0.0
  %2037 = vmatprep.mubr.f32.mxu0 0.0
  %2038 = vmatmul.mubr.f32.gmra.mxu0 %v1971
  %v2039 = vpop.f32.mrf.mxu0
  %v2040 = vadd.f32 0.0, %v2039
  %v2041 = vpop.f32.mrf.mxu0
  %2042 = vdwg.mxu0
  %s2043 = scalar_lea.vmem %s9, 24
  %v2044 = vld [vmem:[%s2043] sm:$0xff]
  %v2046 = vsel %vm1624, %v2044, 0
  %2048 = vmatprep.subr.mxu0 0.0
  %2049 = vmatpush1.msra.mxu0 0.0
  %2050 = vmatprep.subr.mxu0 0.0
  %2051 = vmatpush1.msra.mxu0 0.0
  %2052 = vmatprep.subr.mxu0 0.0
  %2053 = vmatpush1.msra.mxu0 0.0
  %2054 = vmatprep.subr.mxu0 0.0
  %2055 = vmatpush1.msra.mxu0 0.0
  %2056 = vmatprep.subr.mxu0 0.0
  %2057 = vmatpush1.msra.mxu0 0.0
  %2058 = vmatprep.subr.mxu0 0.0
  %2059 = vmatpush1.msra.mxu0 0.0
  %2060 = vmatprep.subr.mxu0 0.0
  %2061 = vmatpush1.msra.mxu0 0.0
  %2062 = vmatprep.subr.mxu0 0.0
  %2063 = vmatpush1.msra.mxu0 0.0
  %2064 = vmatprep.subr.mxu0 0.0
  %2065 = vmatpush1.msra.mxu0 0.0
  %2066 = vmatprep.subr.mxu0 0.0
  %2067 = vmatpush1.msra.mxu0 0.0
  %2068 = vmatprep.subr.mxu0 0.0
  %2069 = vmatpush1.msra.mxu0 0.0
  %2070 = vmatprep.subr.mxu0 0.0
  %2071 = vmatpush1.msra.mxu0 0.0
  %2072 = vmatprep.subr.mxu0 0.0
  %2073 = vmatpush1.msra.mxu0 0.0
  %2074 = vmatprep.subr.mxu0 0.0
  %2075 = vmatpush1.msra.mxu0 0.0
  %2076 = vmatprep.subr.mxu0 0.0
  %2077 = vmatpush1.msra.mxu0 %v1818
  %2078 = vmatprep.subr.mxu0 0.0
  %2079 = vmatpush1.msra.mxu0 %v1817
  %2080 = vmatprep.subr.mxu0 0.0
  %2081 = vmatpush2.msra.mxu0 0.0
  %2082 = vmatprep.subr.mxu0 0.0
  %2083 = vmatpush2.msra.mxu0 0.0
  %2084 = vmatprep.subr.mxu0 0.0
  %2085 = vmatpush2.msra.mxu0 0.0
  %2086 = vmatprep.subr.mxu0 0.0
  %2087 = vmatpush2.msra.mxu0 0.0
  %2088 = vmatprep.subr.mxu0 0.0
  %2089 = vmatpush2.msra.mxu0 0.0
  %2090 = vmatprep.subr.mxu0 0.0
  %2091 = vmatpush2.msra.mxu0 0.0
  %2092 = vmatprep.subr.mxu0 0.0
  %2093 = vmatpush2.msra.mxu0 0.0
  %2094 = vmatprep.subr.mxu0 0.0
  %2095 = vmatpush2.msra.mxu0 0.0
  %2096 = vmatprep.subr.mxu0 0.0
  %2097 = vmatpush2.msra.mxu0 0.0
  %2098 = vmatprep.subr.mxu0 0.0
  %2099 = vmatpush2.msra.mxu0 0.0
  %2100 = vmatprep.subr.mxu0 0.0
  %2101 = vmatpush2.msra.mxu0 0.0
  %2102 = vmatprep.subr.mxu0 0.0
  %2103 = vmatpush2.msra.mxu0 0.0
  %2104 = vmatprep.subr.mxu0 0.0
  %2105 = vmatpush2.msra.mxu0 0.0
  %2106 = vmatprep.subr.mxu0 0.0
  %2107 = vmatpush2.msra.mxu0 0.0
  %2108 = vmatprep.subr.mxu0 0.0
  %2109 = vmatpush2.msra.mxu0 0.0
  %2110 = vmatprep.subr.mxu0 0.0
  %2111 = vmatpush2.msra.mxu0 0.0
  %2112 = vmatprep.mubr.f32.mxu0 0.0
  %2113 = vmatmul.mubr.f32.gmra.mxu0 %v2046
  %v2114 = vpop.f32.mrf.mxu0
  %v2115 = vadd.f32 0.0, %v2114
  %v2116 = vpop.f32.mrf.mxu0
  %2117 = vdwg.mxu0
  %v2118 = vpack.c.bf16 %v1890, %v1890
  %v2119 = vpack.c.bf16 %v1965, %v1965
  %v2120 = vpack.c.bf16 %v2040, %v2040
  %v2121 = vpack.c.bf16 %v2115, %v2115
  %v2122 = vld [vmem:[%s10] sm:$0xf]
  %v2123 = vld [vmem:[%s10 + $0x4] sm:$0xf]
  %v2124 = vld [vmem:[%s10 + $0x8] sm:$0xf]
  %v2125 = vld [vmem:[%s10 + $0xc] sm:$0xf]
  %v2126 = vld [vmem:[%s10 + $0x10] sm:$0xf]
  %v2127 = vld [vmem:[%s10 + $0x14] sm:$0xf]
  %v2128 = vld [vmem:[%s10 + $0x18] sm:$0xf]
  %v2129 = vld [vmem:[%s10 + $0x1c] sm:$0xf]
  %v2130 = vld [vmem:[%s10 + $0x20] sm:$0xf]
  %v2131 = vld [vmem:[%s10 + $0x24] sm:$0xf]
  %v2132 = vld [vmem:[%s10 + $0x28] sm:$0xf]
  %v2133 = vld [vmem:[%s10 + $0x2c] sm:$0xf]
  %v2134 = vld [vmem:[%s10 + $0x30] sm:$0xf]
  %v2135 = vld [vmem:[%s10 + $0x34] sm:$0xf]
  %v2136 = vld [vmem:[%s10 + $0x38] sm:$0xf]
  %v2137 = vld [vmem:[%s10 + $0x3c] sm:$0xf]
  %v2138 = vld [vmem:[%s10 + $0x40] sm:$0xf]
  %v2139 = vld [vmem:[%s10 + $0x44] sm:$0xf]
  %v2140 = vld [vmem:[%s10 + $0x48] sm:$0xf]
  %v2141 = vld [vmem:[%s10 + $0x4c] sm:$0xf]
  %v2142 = vld [vmem:[%s10 + $0x50] sm:$0xf]
  %v2143 = vld [vmem:[%s10 + $0x54] sm:$0xf]
  %v2144 = vld [vmem:[%s10 + $0x58] sm:$0xf]
  %v2145 = vld [vmem:[%s10 + $0x5c] sm:$0xf]
  %v2146 = vld [vmem:[%s10 + $0x60] sm:$0xf]
  %v2147 = vld [vmem:[%s10 + $0x64] sm:$0xf]
  %v2148 = vld [vmem:[%s10 + $0x68] sm:$0xf]
  %v2149 = vld [vmem:[%s10 + $0x6c] sm:$0xf]
  %v2150 = vld [vmem:[%s10 + $0x70] sm:$0xf]
  %v2151 = vld [vmem:[%s10 + $0x74] sm:$0xf]
  %v2152 = vld [vmem:[%s10 + $0x78] sm:$0xf]
  %v2153 = vld [vmem:[%s10 + $0x7c] sm:$0xf]
  %v2154 = vld [vmem:[%s10 + $0x80] sm:$0xf]
  %v2155 = vld [vmem:[%s10 + $0x84] sm:$0xf]
  %v2156 = vld [vmem:[%s10 + $0x88] sm:$0xf]
  %v2157 = vld [vmem:[%s10 + $0x8c] sm:$0xf]
  %v2158 = vld [vmem:[%s10 + $0x90] sm:$0xf]
  %v2159 = vld [vmem:[%s10 + $0x94] sm:$0xf]
  %v2160 = vld [vmem:[%s10 + $0x98] sm:$0xf]
  %v2161 = vld [vmem:[%s10 + $0x9c] sm:$0xf]
  %v2162 = vld [vmem:[%s10 + $0xa0] sm:$0xf]
  %v2163 = vld [vmem:[%s10 + $0xa4] sm:$0xf]
  %v2164 = vld [vmem:[%s10 + $0xa8] sm:$0xf]
  %v2165 = vld [vmem:[%s10 + $0xac] sm:$0xf]
  %v2166 = vld [vmem:[%s10 + $0xb0] sm:$0xf]
  %v2167 = vld [vmem:[%s10 + $0xb4] sm:$0xf]
  %v2168 = vld [vmem:[%s10 + $0xb8] sm:$0xf]
  %v2169 = vld [vmem:[%s10 + $0xbc] sm:$0xf]
  %v2170 = vld [vmem:[%s10 + $0xc0] sm:$0xf]
  %v2171 = vld [vmem:[%s10 + $0xc4] sm:$0xf]
  %v2172 = vld [vmem:[%s10 + $0xc8] sm:$0xf]
  %v2173 = vld [vmem:[%s10 + $0xcc] sm:$0xf]
  %v2174 = vld [vmem:[%s10 + $0xd0] sm:$0xf]
  %v2175 = vld [vmem:[%s10 + $0xd4] sm:$0xf]
  %v2176 = vld [vmem:[%s10 + $0xd8] sm:$0xf]
  %v2177 = vld [vmem:[%s10 + $0xdc] sm:$0xf]
  %v2178 = vld [vmem:[%s10 + $0xe0] sm:$0xf]
  %v2179 = vld [vmem:[%s10 + $0xe4] sm:$0xf]
  %v2180 = vld [vmem:[%s10 + $0xe8] sm:$0xf]
  %v2181 = vld [vmem:[%s10 + $0xec] sm:$0xf]
  %v2182 = vld [vmem:[%s10 + $0xf0] sm:$0xf]
  %v2183 = vld [vmem:[%s10 + $0xf4] sm:$0xf]
  %v2184 = vld [vmem:[%s10 + $0xf8] sm:$0xf]
  %v2185 = vld [vmem:[%s10 + $0xfc] sm:$0xf]
  %v2250 = vunpack.c.l.b16 %v2122
  %v2251 = vunpack.c.l.b16 %v2123
  %v2252 = vunpack.c.l.b16 %v2124
  %v2253 = vunpack.c.l.b16 %v2125
  %v2254 = vunpack.c.l.b16 %v2126
  %v2255 = vunpack.c.l.b16 %v2127
  %v2256 = vunpack.c.l.b16 %v2128
  %v2257 = vunpack.c.l.b16 %v2129
  %v2258 = vunpack.c.l.b16 %v2130
  %v2259 = vunpack.c.l.b16 %v2131
  %v2260 = vunpack.c.l.b16 %v2132
  %v2261 = vunpack.c.l.b16 %v2133
  %v2262 = vunpack.c.l.b16 %v2134
  %v2263 = vunpack.c.l.b16 %v2135
  %v2264 = vunpack.c.l.b16 %v2136
  %v2265 = vunpack.c.l.b16 %v2137
  %v2266 = vunpack.c.l.b16 %v2138
  %v2267 = vunpack.c.l.b16 %v2139
  %v2268 = vunpack.c.l.b16 %v2140
  %v2269 = vunpack.c.l.b16 %v2141
  %v2270 = vunpack.c.l.b16 %v2142
  %v2271 = vunpack.c.l.b16 %v2143
  %v2272 = vunpack.c.l.b16 %v2144
  %v2273 = vunpack.c.l.b16 %v2145
  %v2274 = vunpack.c.l.b16 %v2146
  %v2275 = vunpack.c.l.b16 %v2147
  %v2276 = vunpack.c.l.b16 %v2148
  %v2277 = vunpack.c.l.b16 %v2149
  %v2278 = vunpack.c.l.b16 %v2150
  %v2279 = vunpack.c.l.b16 %v2151
  %v2280 = vunpack.c.l.b16 %v2152
  %v2281 = vunpack.c.l.b16 %v2153
  %v2282 = vunpack.c.l.b16 %v2154
  %v2283 = vunpack.c.l.b16 %v2155
  %v2284 = vunpack.c.l.b16 %v2156
  %v2285 = vunpack.c.l.b16 %v2157
  %v2286 = vunpack.c.l.b16 %v2158
  %v2287 = vunpack.c.l.b16 %v2159
  %v2288 = vunpack.c.l.b16 %v2160
  %v2289 = vunpack.c.l.b16 %v2161
  %v2290 = vunpack.c.l.b16 %v2162
  %v2291 = vunpack.c.l.b16 %v2163
  %v2292 = vunpack.c.l.b16 %v2164
  %v2293 = vunpack.c.l.b16 %v2165
  %v2294 = vunpack.c.l.b16 %v2166
  %v2295 = vunpack.c.l.b16 %v2167
  %v2296 = vunpack.c.l.b16 %v2168
  %v2297 = vunpack.c.l.b16 %v2169
  %v2298 = vunpack.c.l.b16 %v2170
  %v2299 = vunpack.c.l.b16 %v2171
  %v2300 = vunpack.c.l.b16 %v2172
  %v2301 = vunpack.c.l.b16 %v2173
  %v2302 = vunpack.c.l.b16 %v2174
  %v2303 = vunpack.c.l.b16 %v2175
  %v2304 = vunpack.c.l.b16 %v2176
  %v2305 = vunpack.c.l.b16 %v2177
  %v2306 = vunpack.c.l.b16 %v2178
  %v2307 = vunpack.c.l.b16 %v2179
  %v2308 = vunpack.c.l.b16 %v2180
  %v2309 = vunpack.c.l.b16 %v2181
  %v2310 = vunpack.c.l.b16 %v2182
  %v2311 = vunpack.c.l.b16 %v2183
  %v2312 = vunpack.c.l.b16 %v2184
  %v2313 = vunpack.c.l.b16 %v2185
  %v2314 = vpack.c.b16 %v2251, %v2250
  %v2315 = vpack.c.b16 %v2253, %v2252
  %v2316 = vpack.c.b16 %v2255, %v2254
  %v2317 = vpack.c.b16 %v2257, %v2256
  %v2318 = vpack.c.b16 %v2259, %v2258
  %v2319 = vpack.c.b16 %v2261, %v2260
  %v2320 = vpack.c.b16 %v2263, %v2262
  %v2321 = vpack.c.b16 %v2265, %v2264
  %v2322 = vpack.c.b16 %v2267, %v2266
  %v2323 = vpack.c.b16 %v2269, %v2268
  %v2324 = vpack.c.b16 %v2271, %v2270
  %v2325 = vpack.c.b16 %v2273, %v2272
  %v2326 = vpack.c.b16 %v2275, %v2274
  %v2327 = vpack.c.b16 %v2277, %v2276
  %v2328 = vpack.c.b16 %v2279, %v2278
  %v2329 = vpack.c.b16 %v2281, %v2280
  %v2330 = vpack.c.b16 %v2283, %v2282
  %v2331 = vpack.c.b16 %v2285, %v2284
  %v2332 = vpack.c.b16 %v2287, %v2286
  %v2333 = vpack.c.b16 %v2289, %v2288
  %v2334 = vpack.c.b16 %v2291, %v2290
  %v2335 = vpack.c.b16 %v2293, %v2292
  %v2336 = vpack.c.b16 %v2295, %v2294
  %v2337 = vpack.c.b16 %v2297, %v2296
  %v2338 = vpack.c.b16 %v2299, %v2298
  %v2339 = vpack.c.b16 %v2301, %v2300
  %v2340 = vpack.c.b16 %v2303, %v2302
  %v2341 = vpack.c.b16 %v2305, %v2304
  %v2342 = vpack.c.b16 %v2307, %v2306
  %v2343 = vpack.c.b16 %v2309, %v2308
  %v2344 = vpack.c.b16 %v2311, %v2310
  %v2345 = vpack.c.b16 %v2313, %v2312
  %2378 = vmatprep.subr.bf16.mxu0 0
  %2379 = vmatpush1.bf16.msra.mxu0 %v2321
  %2380 = vmatprep.subr.bf16.mxu0 0
  %2381 = vmatpush1.bf16.msra.mxu0 %v2320
  %2382 = vmatprep.subr.bf16.mxu0 0
  %2383 = vmatpush1.bf16.msra.mxu0 %v2319
  %2384 = vmatprep.subr.bf16.mxu0 0
  %2385 = vmatpush1.bf16.msra.mxu0 %v2318
  %2386 = vmatprep.subr.bf16.mxu0 0
  %2387 = vmatpush1.bf16.msra.mxu0 %v2317
  %2388 = vmatprep.subr.bf16.mxu0 0
  %2389 = vmatpush1.bf16.msra.mxu0 %v2316
  %2390 = vmatprep.subr.bf16.mxu0 0
  %2391 = vmatpush1.bf16.msra.mxu0 %v2315
  %2392 = vmatprep.subr.bf16.mxu0 0
  %2393 = vmatpush1.bf16.msra.mxu0 %v2314
  %2394 = vmatprep.subr.bf16.mxu0 0
  %2395 = vmatpush2.bf16.msra.mxu0 %v2329
  %2396 = vmatprep.subr.bf16.mxu0 0
  %2397 = vmatpush2.bf16.msra.mxu0 %v2328
  %2398 = vmatprep.subr.bf16.mxu0 0
  %2399 = vmatpush2.bf16.msra.mxu0 %v2327
  %2400 = vmatprep.subr.bf16.mxu0 0
  %2401 = vmatpush2.bf16.msra.mxu0 %v2326
  %2402 = vmatprep.subr.bf16.mxu0 0
  %2403 = vmatpush2.bf16.msra.mxu0 %v2325
  %2404 = vmatprep.subr.bf16.mxu0 0
  %2405 = vmatpush2.bf16.msra.mxu0 %v2324
  %2406 = vmatprep.subr.bf16.mxu0 0
  %2407 = vmatpush2.bf16.msra.mxu0 %v2323
  %2408 = vmatprep.subr.bf16.mxu0 0
  %2409 = vmatpush2.bf16.msra.mxu0 %v2322
  %2410 = vmatprep.mubr.bf16.mxu0 %v2119
  %2411 = vmatmul.mubr.bf16.gmra.mxu0 %v2118
  %v2412 = vpop.f32.mrf.mxu0
  %v2413 = vadd.f32 0.0, %v2412
  %v2414 = vpop.f32.mrf.mxu0
  %v2415 = vpop.f32.mrf.mxu0
  %v2416 = vpop.f32.mrf.mxu0
  %2417 = vdwg.mxu0
  %2418 = vmatprep.subr.bf16.mxu0 0
  %2419 = vmatpush1.bf16.msra.mxu0 %v2337
  %2420 = vmatprep.subr.bf16.mxu0 0
  %2421 = vmatpush1.bf16.msra.mxu0 %v2336
  %2422 = vmatprep.subr.bf16.mxu0 0
  %2423 = vmatpush1.bf16.msra.mxu0 %v2335
  %2424 = vmatprep.subr.bf16.mxu0 0
  %2425 = vmatpush1.bf16.msra.mxu0 %v2334
  %2426 = vmatprep.subr.bf16.mxu0 0
  %2427 = vmatpush1.bf16.msra.mxu0 %v2333
  %2428 = vmatprep.subr.bf16.mxu0 0
  %2429 = vmatpush1.bf16.msra.mxu0 %v2332
  %2430 = vmatprep.subr.bf16.mxu0 0
  %2431 = vmatpush1.bf16.msra.mxu0 %v2331
  %2432 = vmatprep.subr.bf16.mxu0 0
  %2433 = vmatpush1.bf16.msra.mxu0 %v2330
  %2434 = vmatprep.subr.bf16.mxu0 0
  %2435 = vmatpush2.bf16.msra.mxu0 %v2345
  %2436 = vmatprep.subr.bf16.mxu0 0
  %2437 = vmatpush2.bf16.msra.mxu0 %v2344
  %2438 = vmatprep.subr.bf16.mxu0 0
  %2439 = vmatpush2.bf16.msra.mxu0 %v2343
  %2440 = vmatprep.subr.bf16.mxu0 0
  %2441 = vmatpush2.bf16.msra.mxu0 %v2342
  %2442 = vmatprep.subr.bf16.mxu0 0
  %2443 = vmatpush2.bf16.msra.mxu0 %v2341
  %2444 = vmatprep.subr.bf16.mxu0 0
  %2445 = vmatpush2.bf16.msra.mxu0 %v2340
  %2446 = vmatprep.subr.bf16.mxu0 0
  %2447 = vmatpush2.bf16.msra.mxu0 %v2339
  %2448 = vmatprep.subr.bf16.mxu0 0
  %2449 = vmatpush2.bf16.msra.mxu0 %v2338
  %2450 = vmatprep.mubr.bf16.mxu0 %v2121
  %2451 = vmatmul.mubr.bf16.gmra.mxu0 %v2120
  %v2452 = vpop.f32.mrf.mxu0
  %v2453 = vadd.f32 %v2413, %v2452
  %v2454 = vpop.f32.mrf.mxu0
  %v2455 = vpop.f32.mrf.mxu0
  %v2456 = vpop.f32.mrf.mxu0
  %2457 = vdwg.mxu0
  %v2458 = vmul.f32 %v2453, %v2453
  %v2459 = vld [vmem:[%s11] sm:$0xff]
  %v2460 = vld [vmem:[%s11 + $0x8] sm:$0xff]
  %v2461 = vld [vmem:[%s11 + $0x10] sm:$0xff]
  %v2462 = vld [vmem:[%s11 + $0x18] sm:$0xff]
  %v2463 = vld [vmem:[%s11 + $0x20] sm:$0xff]
  %v2464 = vld [vmem:[%s11 + $0x28] sm:$0xff]
  %v2465 = vld [vmem:[%s11 + $0x30] sm:$0xff]
  %v2466 = vld [vmem:[%s11 + $0x38] sm:$0xff]
  %v2467 = vld [vmem:[%s11 + $0x40] sm:$0xff]
  %v2468 = vld [vmem:[%s11 + $0x48] sm:$0xff]
  %v2469 = vld [vmem:[%s11 + $0x50] sm:$0xff]
  %v2470 = vld [vmem:[%s11 + $0x58] sm:$0xff]
  %v2471 = vld [vmem:[%s11 + $0x60] sm:$0xff]
  %v2472 = vld [vmem:[%s11 + $0x68] sm:$0xff]
  %v2473 = vld [vmem:[%s11 + $0x70] sm:$0xff]
  %v2474 = vld [vmem:[%s11 + $0x78] sm:$0xff]
  %2475 = vmatprep.subr.mxu0 0.0
  %2476 = vmatpush1.msra.mxu0 %v2474
  %2477 = vmatprep.subr.mxu0 0.0
  %2478 = vmatpush1.msra.mxu0 %v2473
  %2479 = vmatprep.subr.mxu0 0.0
  %2480 = vmatpush1.msra.mxu0 %v2472
  %2481 = vmatprep.subr.mxu0 0.0
  %2482 = vmatpush1.msra.mxu0 %v2471
  %2483 = vmatprep.subr.mxu0 0.0
  %2484 = vmatpush1.msra.mxu0 %v2470
  %2485 = vmatprep.subr.mxu0 0.0
  %2486 = vmatpush1.msra.mxu0 %v2469
  %2487 = vmatprep.subr.mxu0 0.0
  %2488 = vmatpush1.msra.mxu0 %v2468
  %2489 = vmatprep.subr.mxu0 0.0
  %2490 = vmatpush1.msra.mxu0 %v2467
  %2491 = vmatprep.subr.mxu0 0.0
  %2492 = vmatpush1.msra.mxu0 %v2466
  %2493 = vmatprep.subr.mxu0 0.0
  %2494 = vmatpush1.msra.mxu0 %v2465
  %2495 = vmatprep.subr.mxu0 0.0
  %2496 = vmatpush1.msra.mxu0 %v2464
  %2497 = vmatprep.subr.mxu0 0.0
  %2498 = vmatpush1.msra.mxu0 %v2463
  %2499 = vmatprep.subr.mxu0 0.0
  %2500 = vmatpush1.msra.mxu0 %v2462
  %2501 = vmatprep.subr.mxu0 0.0
  %2502 = vmatpush1.msra.mxu0 %v2461
  %2503 = vmatprep.subr.mxu0 0.0
  %2504 = vmatpush1.msra.mxu0 %v2460
  %2505 = vmatprep.subr.mxu0 0.0
  %2506 = vmatpush1.msra.mxu0 %v2459
  %2507 = vmatprep.subr.mxu0 0.0
  %2508 = vmatpush2.msra.mxu0 0.0
  %2509 = vmatprep.subr.mxu0 0.0
  %2510 = vmatpush2.msra.mxu0 0.0
  %2511 = vmatprep.subr.mxu0 0.0
  %2512 = vmatpush2.msra.mxu0 0.0
  %2513 = vmatprep.subr.mxu0 0.0
  %2514 = vmatpush2.msra.mxu0 0.0
  %2515 = vmatprep.subr.mxu0 0.0
  %2516 = vmatpush2.msra.mxu0 0.0
  %2517 = vmatprep.subr.mxu0 0.0
  %2518 = vmatpush2.msra.mxu0 0.0
  %2519 = vmatprep.subr.mxu0 0.0
  %2520 = vmatpush2.msra.mxu0 0.0
  %2521 = vmatprep.subr.mxu0 0.0
  %2522 = vmatpush2.msra.mxu0 0.0
  %2523 = vmatprep.subr.mxu0 0.0
  %2524 = vmatpush2.msra.mxu0 0.0
  %2525 = vmatprep.subr.mxu0 0.0
  %2526 = vmatpush2.msra.mxu0 0.0
  %2527 = vmatprep.subr.mxu0 0.0
  %2528 = vmatpush2.msra.mxu0 0.0
  %2529 = vmatprep.subr.mxu0 0.0
  %2530 = vmatpush2.msra.mxu0 0.0
  %2531 = vmatprep.subr.mxu0 0.0
  %2532 = vmatpush2.msra.mxu0 0.0
  %2533 = vmatprep.subr.mxu0 0.0
  %2534 = vmatpush2.msra.mxu0 0.0
  %2535 = vmatprep.subr.mxu0 0.0
  %2536 = vmatpush2.msra.mxu0 0.0
  %2537 = vmatprep.subr.mxu0 0.0
  %2538 = vmatpush2.msra.mxu0 0.0
  %2539 = vmatprep.mubr.f32.mxu0 0.0
  %2540 = vmatmul.mubr.f32.gmra.mxu0 %v2453
  %v2541 = vpop.f32.mrf.mxu0
  %v2542 = vadd.f32 0.0, %v2541
  %v2543 = vpop.f32.mrf.mxu0
  %2544 = vmatprep.mubr.f32.mxu0 0.0
  %2545 = vmatmul.mubr.f32.gmra.mxu0 %v2458
  %v2546 = vpop.f32.mrf.mxu0
  %v2547 = vadd.f32 0.0, %v2546
  %v2548 = vpop.f32.mrf.mxu0
  %2549 = vdwg.mxu0
  %v2550 = vsel %vm845, %v2542, 0.0
  %v2551 = vrot.slane %v2550, 4
  %v2552 = vadd.f32 %v2550, %v2551
  %v2553 = vrot.slane %v2552, 2
  %v2554 = vadd.f32 %v2552, %v2553
  %v2555 = vrot.slane %v2554, 1
  %v2556 = vadd.f32 %v2554, %v2555
  %v2557 = vrcp.pop 32.0
  %v2558 = vmul.f32 %v2556, %v2557
  %v2559 = vsel %vm845, %v2547, 0.0
  %v2560 = vrot.slane %v2559, 4
  %v2561 = vadd.f32 %v2559, %v2560
  %v2562 = vrot.slane %v2561, 2
  %v2563 = vadd.f32 %v2561, %v2562
  %v2564 = vrot.slane %v2563, 1
  %v2565 = vadd.f32 %v2563, %v2564
  %v2566 = vmul.f32 %v2565, %v2557
  %v2567 = vmul.f32 %v2558, %v2558
  %v2568 = vsub.f32 %v2566, %v2567
  %v2569 = vld [vmem:[%s13] sm:$0x1]
  %v2570 = vadd.f32 %v2568, 1e-05
  %v2571 = vrsqrt.pop %v2570
  %v2572 = vmul.f32 %v2569, %v2571
  %v2573 = vld [vmem:[%s14] sm:$0x1]
  %v2574 = vmul.f32 %v2558, %v2572
  %v2575 = vsub.f32 %v2573, %v2574
  %v2576 = vld [vmem:[%s12] sm:$0xff]
  %v2577 = vld [vmem:[%s12 + $0x8] sm:$0xff]
  %v2578 = vld [vmem:[%s12 + $0x10] sm:$0xff]
  %v2579 = vld [vmem:[%s12 + $0x18] sm:$0xff]
  %v2581 = vsel %vm845, %v2572, 0
  %2583 = vmatprep.subr.mxu0 0.0
  %2584 = vmatpush1.msra.mxu0 0.0
  %2585 = vmatprep.subr.mxu0 0.0
  %2586 = vmatpush1.msra.mxu0 0.0
  %2587 = vmatprep.subr.mxu0 0.0
  %2588 = vmatpush1.msra.mxu0 0.0
  %2589 = vmatprep.subr.mxu0 0.0
  %2590 = vmatpush1.msra.mxu0 0.0
  %2591 = vmatprep.subr.mxu0 0.0
  %2592 = vmatpush1.msra.mxu0 0.0
  %2593 = vmatprep.subr.mxu0 0.0
  %2594 = vmatpush1.msra.mxu0 0.0
  %2595 = vmatprep.subr.mxu0 0.0
  %2596 = vmatpush1.msra.mxu0 0.0
  %2597 = vmatprep.subr.mxu0 0.0
  %2598 = vmatpush1.msra.mxu0 0.0
  %2599 = vmatprep.subr.mxu0 0.0
  %2600 = vmatpush1.msra.mxu0 0.0
  %2601 = vmatprep.subr.mxu0 0.0
  %2602 = vmatpush1.msra.mxu0 0.0
  %2603 = vmatprep.subr.mxu0 0.0
  %2604 = vmatpush1.msra.mxu0 0.0
  %2605 = vmatprep.subr.mxu0 0.0
  %2606 = vmatpush1.msra.mxu0 0.0
  %2607 = vmatprep.subr.mxu0 0.0
  %2608 = vmatpush1.msra.mxu0 %v2579
  %2609 = vmatprep.subr.mxu0 0.0
  %2610 = vmatpush1.msra.mxu0 %v2578
  %2611 = vmatprep.subr.mxu0 0.0
  %2612 = vmatpush1.msra.mxu0 %v2577
  %2613 = vmatprep.subr.mxu0 0.0
  %2614 = vmatpush1.msra.mxu0 %v2576
  %2615 = vmatprep.subr.mxu0 0.0
  %2616 = vmatpush2.msra.mxu0 0.0
  %2617 = vmatprep.subr.mxu0 0.0
  %2618 = vmatpush2.msra.mxu0 0.0
  %2619 = vmatprep.subr.mxu0 0.0
  %2620 = vmatpush2.msra.mxu0 0.0
  %2621 = vmatprep.subr.mxu0 0.0
  %2622 = vmatpush2.msra.mxu0 0.0
  %2623 = vmatprep.subr.mxu0 0.0
  %2624 = vmatpush2.msra.mxu0 0.0
  %2625 = vmatprep.subr.mxu0 0.0
  %2626 = vmatpush2.msra.mxu0 0.0
  %2627 = vmatprep.subr.mxu0 0.0
  %2628 = vmatpush2.msra.mxu0 0.0
  %2629 = vmatprep.subr.mxu0 0.0
  %2630 = vmatpush2.msra.mxu0 0.0
  %2631 = vmatprep.subr.mxu0 0.0
  %2632 = vmatpush2.msra.mxu0 0.0
  %2633 = vmatprep.subr.mxu0 0.0
  %2634 = vmatpush2.msra.mxu0 0.0
  %2635 = vmatprep.subr.mxu0 0.0
  %2636 = vmatpush2.msra.mxu0 0.0
  %2637 = vmatprep.subr.mxu0 0.0
  %2638 = vmatpush2.msra.mxu0 0.0
  %2639 = vmatprep.subr.mxu0 0.0
  %2640 = vmatpush2.msra.mxu0 0.0
  %2641 = vmatprep.subr.mxu0 0.0
  %2642 = vmatpush2.msra.mxu0 0.0
  %2643 = vmatprep.subr.mxu0 0.0
  %2644 = vmatpush2.msra.mxu0 0.0
  %2645 = vmatprep.subr.mxu0 0.0
  %2646 = vmatpush2.msra.mxu0 0.0
  %2647 = vmatprep.mubr.f32.mxu0 0.0
  %2648 = vmatmul.mubr.f32.gmra.mxu0 %v2581
  %v2649 = vpop.f32.mrf.mxu0
  %v2650 = vadd.f32 0.0, %v2649
  %v2651 = vpop.f32.mrf.mxu0
  %2652 = vdwg.mxu0
  %v2654 = vsel %vm845, %v2575, 0
  %2656 = vmatprep.subr.mxu0 0.0
  %2657 = vmatpush1.msra.mxu0 0.0
  %2658 = vmatprep.subr.mxu0 0.0
  %2659 = vmatpush1.msra.mxu0 0.0
  %2660 = vmatprep.subr.mxu0 0.0
  %2661 = vmatpush1.msra.mxu0 0.0
  %2662 = vmatprep.subr.mxu0 0.0
  %2663 = vmatpush1.msra.mxu0 0.0
  %2664 = vmatprep.subr.mxu0 0.0
  %2665 = vmatpush1.msra.mxu0 0.0
  %2666 = vmatprep.subr.mxu0 0.0
  %2667 = vmatpush1.msra.mxu0 0.0
  %2668 = vmatprep.subr.mxu0 0.0
  %2669 = vmatpush1.msra.mxu0 0.0
  %2670 = vmatprep.subr.mxu0 0.0
  %2671 = vmatpush1.msra.mxu0 0.0
  %2672 = vmatprep.subr.mxu0 0.0
  %2673 = vmatpush1.msra.mxu0 0.0
  %2674 = vmatprep.subr.mxu0 0.0
  %2675 = vmatpush1.msra.mxu0 0.0
  %2676 = vmatprep.subr.mxu0 0.0
  %2677 = vmatpush1.msra.mxu0 0.0
  %2678 = vmatprep.subr.mxu0 0.0
  %2679 = vmatpush1.msra.mxu0 0.0
  %2680 = vmatprep.subr.mxu0 0.0
  %2681 = vmatpush1.msra.mxu0 %v2579
  %2682 = vmatprep.subr.mxu0 0.0
  %2683 = vmatpush1.msra.mxu0 %v2578
  %2684 = vmatprep.subr.mxu0 0.0
  %2685 = vmatpush1.msra.mxu0 %v2577
  %2686 = vmatprep.subr.mxu0 0.0
  %2687 = vmatpush1.msra.mxu0 %v2576
  %2688 = vmatprep.subr.mxu0 0.0
  %2689 = vmatpush2.msra.mxu0 0.0
  %2690 = vmatprep.subr.mxu0 0.0
  %2691 = vmatpush2.msra.mxu0 0.0
  %2692 = vmatprep.subr.mxu0 0.0
  %2693 = vmatpush2.msra.mxu0 0.0
  %2694 = vmatprep.subr.mxu0 0.0
  %2695 = vmatpush2.msra.mxu0 0.0
  %2696 = vmatprep.subr.mxu0 0.0
  %2697 = vmatpush2.msra.mxu0 0.0
  %2698 = vmatprep.subr.mxu0 0.0
  %2699 = vmatpush2.msra.mxu0 0.0
  %2700 = vmatprep.subr.mxu0 0.0
  %2701 = vmatpush2.msra.mxu0 0.0
  %2702 = vmatprep.subr.mxu0 0.0
  %2703 = vmatpush2.msra.mxu0 0.0
  %2704 = vmatprep.subr.mxu0 0.0
  %2705 = vmatpush2.msra.mxu0 0.0
  %2706 = vmatprep.subr.mxu0 0.0
  %2707 = vmatpush2.msra.mxu0 0.0
  %2708 = vmatprep.subr.mxu0 0.0
  %2709 = vmatpush2.msra.mxu0 0.0
  %2710 = vmatprep.subr.mxu0 0.0
  %2711 = vmatpush2.msra.mxu0 0.0
  %2712 = vmatprep.subr.mxu0 0.0
  %2713 = vmatpush2.msra.mxu0 0.0
  %2714 = vmatprep.subr.mxu0 0.0
  %2715 = vmatpush2.msra.mxu0 0.0
  %2716 = vmatprep.subr.mxu0 0.0
  %2717 = vmatpush2.msra.mxu0 0.0
  %2718 = vmatprep.subr.mxu0 0.0
  %2719 = vmatpush2.msra.mxu0 0.0
  %2720 = vmatprep.mubr.f32.mxu0 0.0
  %2721 = vmatmul.mubr.f32.gmra.mxu0 %v2654
  %v2722 = vpop.f32.mrf.mxu0
  %v2723 = vadd.f32 0.0, %v2722
  %v2724 = vpop.f32.mrf.mxu0
  %2725 = vdwg.mxu0
  %v2726 = vlaneseq
  %v2727 = vshrl.u32 %v2726, 7
  %v2728 = vsub.s32 0, %v2727
  %v2729 = vrot.slane %v2650, %v2728
  %v2730 = vmul.f32 %v2453, %v2729
  %v2731 = vlaneseq
  %v2732 = vshrl.u32 %v2731, 7
  %v2733 = vsub.s32 0, %v2732
  %v2734 = vrot.slane %v2723, %v2733
  %v2735 = vadd.f32 %v2730, %v2734
  %v2736 = vmul.f32 %v2735, 0.2
  %v2737 = vmax.f32 %v2735, %v2736
  %v2738 = vld [vmem:[%s15] sm:$0x3]
  %vm2739 = vcmask 64512
  %v2741 = vsel %vm2739, %v2738, 0
  %2743 = vmatprep.subr.mxu0 0.0
  %2744 = vmatpush1.msra.mxu0 0.0
  %2745 = vmatprep.subr.mxu0 0.0
  %2746 = vmatpush1.msra.mxu0 0.0
  %2747 = vmatprep.subr.mxu0 0.0
  %2748 = vmatpush1.msra.mxu0 0.0
  %2749 = vmatprep.subr.mxu0 0.0
  %2750 = vmatpush1.msra.mxu0 0.0
  %2751 = vmatprep.subr.mxu0 0.0
  %2752 = vmatpush1.msra.mxu0 0.0
  %2753 = vmatprep.subr.mxu0 0.0
  %2754 = vmatpush1.msra.mxu0 0.0
  %2755 = vmatprep.subr.mxu0 0.0
  %2756 = vmatpush1.msra.mxu0 0.0
  %2757 = vmatprep.subr.mxu0 0.0
  %2758 = vmatpush1.msra.mxu0 0.0
  %2759 = vmatprep.subr.mxu0 0.0
  %2760 = vmatpush1.msra.mxu0 0.0
  %2761 = vmatprep.subr.mxu0 0.0
  %2762 = vmatpush1.msra.mxu0 0.0
  %2763 = vmatprep.subr.mxu0 0.0
  %2764 = vmatpush1.msra.mxu0 0.0
  %2765 = vmatprep.subr.mxu0 0.0
  %2766 = vmatpush1.msra.mxu0 0.0
  %2767 = vmatprep.subr.mxu0 0.0
  %2768 = vmatpush1.msra.mxu0 0.0
  %2769 = vmatprep.subr.mxu0 0.0
  %2770 = vmatpush1.msra.mxu0 0.0
  %2771 = vmatprep.subr.mxu0 0.0
  %2772 = vmatpush1.msra.mxu0 0.0
  %2773 = vmatprep.subr.mxu0 0.0
  %2774 = vmatpush1.msra.mxu0 %v2737
  %2775 = vmatprep.subr.mxu0 0.0
  %2776 = vmatpush2.msra.mxu0 0.0
  %2777 = vmatprep.subr.mxu0 0.0
  %2778 = vmatpush2.msra.mxu0 0.0
  %2779 = vmatprep.subr.mxu0 0.0
  %2780 = vmatpush2.msra.mxu0 0.0
  %2781 = vmatprep.subr.mxu0 0.0
  %2782 = vmatpush2.msra.mxu0 0.0
  %2783 = vmatprep.subr.mxu0 0.0
  %2784 = vmatpush2.msra.mxu0 0.0
  %2785 = vmatprep.subr.mxu0 0.0
  %2786 = vmatpush2.msra.mxu0 0.0
  %2787 = vmatprep.subr.mxu0 0.0
  %2788 = vmatpush2.msra.mxu0 0.0
  %2789 = vmatprep.subr.mxu0 0.0
  %2790 = vmatpush2.msra.mxu0 0.0
  %2791 = vmatprep.subr.mxu0 0.0
  %2792 = vmatpush2.msra.mxu0 0.0
  %2793 = vmatprep.subr.mxu0 0.0
  %2794 = vmatpush2.msra.mxu0 0.0
  %2795 = vmatprep.subr.mxu0 0.0
  %2796 = vmatpush2.msra.mxu0 0.0
  %2797 = vmatprep.subr.mxu0 0.0
  %2798 = vmatpush2.msra.mxu0 0.0
  %2799 = vmatprep.subr.mxu0 0.0
  %2800 = vmatpush2.msra.mxu0 0.0
  %2801 = vmatprep.subr.mxu0 0.0
  %2802 = vmatpush2.msra.mxu0 0.0
  %2803 = vmatprep.subr.mxu0 0.0
  %2804 = vmatpush2.msra.mxu0 0.0
  %2805 = vmatprep.subr.mxu0 0.0
  %2806 = vmatpush2.msra.mxu0 0.0
  %2807 = vmatprep.mubr.f32.mxu0 0.0
  %2808 = vmatmul.mubr.f32.gmra.mxu0 %v2741
  %v2809 = vpop.f32.mrf.mxu0
  %v2810 = vadd.f32 0.0, %v2809
  %v2811 = vpop.f32.mrf.mxu0
  %2812 = vdwg.mxu0
  %s2813 = scalar_lea.vmem %s15, 2
  %v2814 = vld [vmem:[%s2813] sm:$0x3]
  %v2816 = vsel %vm2739, %v2814, 0
  %2818 = vmatprep.subr.mxu0 0.0
  %2819 = vmatpush1.msra.mxu0 0.0
  %2820 = vmatprep.subr.mxu0 0.0
  %2821 = vmatpush1.msra.mxu0 0.0
  %2822 = vmatprep.subr.mxu0 0.0
  %2823 = vmatpush1.msra.mxu0 0.0
  %2824 = vmatprep.subr.mxu0 0.0
  %2825 = vmatpush1.msra.mxu0 0.0
  %2826 = vmatprep.subr.mxu0 0.0
  %2827 = vmatpush1.msra.mxu0 0.0
  %2828 = vmatprep.subr.mxu0 0.0
  %2829 = vmatpush1.msra.mxu0 0.0
  %2830 = vmatprep.subr.mxu0 0.0
  %2831 = vmatpush1.msra.mxu0 0.0
  %2832 = vmatprep.subr.mxu0 0.0
  %2833 = vmatpush1.msra.mxu0 0.0
  %2834 = vmatprep.subr.mxu0 0.0
  %2835 = vmatpush1.msra.mxu0 0.0
  %2836 = vmatprep.subr.mxu0 0.0
  %2837 = vmatpush1.msra.mxu0 0.0
  %2838 = vmatprep.subr.mxu0 0.0
  %2839 = vmatpush1.msra.mxu0 0.0
  %2840 = vmatprep.subr.mxu0 0.0
  %2841 = vmatpush1.msra.mxu0 0.0
  %2842 = vmatprep.subr.mxu0 0.0
  %2843 = vmatpush1.msra.mxu0 0.0
  %2844 = vmatprep.subr.mxu0 0.0
  %2845 = vmatpush1.msra.mxu0 0.0
  %2846 = vmatprep.subr.mxu0 0.0
  %2847 = vmatpush1.msra.mxu0 0.0
  %2848 = vmatprep.subr.mxu0 0.0
  %2849 = vmatpush1.msra.mxu0 %v2737
  %2850 = vmatprep.subr.mxu0 0.0
  %2851 = vmatpush2.msra.mxu0 0.0
  %2852 = vmatprep.subr.mxu0 0.0
  %2853 = vmatpush2.msra.mxu0 0.0
  %2854 = vmatprep.subr.mxu0 0.0
  %2855 = vmatpush2.msra.mxu0 0.0
  %2856 = vmatprep.subr.mxu0 0.0
  %2857 = vmatpush2.msra.mxu0 0.0
  %2858 = vmatprep.subr.mxu0 0.0
  %2859 = vmatpush2.msra.mxu0 0.0
  %2860 = vmatprep.subr.mxu0 0.0
  %2861 = vmatpush2.msra.mxu0 0.0
  %2862 = vmatprep.subr.mxu0 0.0
  %2863 = vmatpush2.msra.mxu0 0.0
  %2864 = vmatprep.subr.mxu0 0.0
  %2865 = vmatpush2.msra.mxu0 0.0
  %2866 = vmatprep.subr.mxu0 0.0
  %2867 = vmatpush2.msra.mxu0 0.0
  %2868 = vmatprep.subr.mxu0 0.0
  %2869 = vmatpush2.msra.mxu0 0.0
  %2870 = vmatprep.subr.mxu0 0.0
  %2871 = vmatpush2.msra.mxu0 0.0
  %2872 = vmatprep.subr.mxu0 0.0
  %2873 = vmatpush2.msra.mxu0 0.0
  %2874 = vmatprep.subr.mxu0 0.0
  %2875 = vmatpush2.msra.mxu0 0.0
  %2876 = vmatprep.subr.mxu0 0.0
  %2877 = vmatpush2.msra.mxu0 0.0
  %2878 = vmatprep.subr.mxu0 0.0
  %2879 = vmatpush2.msra.mxu0 0.0
  %2880 = vmatprep.subr.mxu0 0.0
  %2881 = vmatpush2.msra.mxu0 0.0
  %2882 = vmatprep.mubr.f32.mxu0 0.0
  %2883 = vmatmul.mubr.f32.gmra.mxu0 %v2816
  %v2884 = vpop.f32.mrf.mxu0
  %v2885 = vadd.f32 0.0, %v2884
  %v2886 = vpop.f32.mrf.mxu0
  %2887 = vdwg.mxu0
  %s2888 = scalar_lea.vmem %s15, 4
  %v2889 = vld [vmem:[%s2888] sm:$0x3]
  %v2891 = vsel %vm2739, %v2889, 0
  %2893 = vmatprep.subr.mxu0 0.0
  %2894 = vmatpush1.msra.mxu0 0.0
  %2895 = vmatprep.subr.mxu0 0.0
  %2896 = vmatpush1.msra.mxu0 0.0
  %2897 = vmatprep.subr.mxu0 0.0
  %2898 = vmatpush1.msra.mxu0 0.0
  %2899 = vmatprep.subr.mxu0 0.0
  %2900 = vmatpush1.msra.mxu0 0.0
  %2901 = vmatprep.subr.mxu0 0.0
  %2902 = vmatpush1.msra.mxu0 0.0
  %2903 = vmatprep.subr.mxu0 0.0
  %2904 = vmatpush1.msra.mxu0 0.0
  %2905 = vmatprep.subr.mxu0 0.0
  %2906 = vmatpush1.msra.mxu0 0.0
  %2907 = vmatprep.subr.mxu0 0.0
  %2908 = vmatpush1.msra.mxu0 0.0
  %2909 = vmatprep.subr.mxu0 0.0
  %2910 = vmatpush1.msra.mxu0 0.0
  %2911 = vmatprep.subr.mxu0 0.0
  %2912 = vmatpush1.msra.mxu0 0.0
  %2913 = vmatprep.subr.mxu0 0.0
  %2914 = vmatpush1.msra.mxu0 0.0
  %2915 = vmatprep.subr.mxu0 0.0
  %2916 = vmatpush1.msra.mxu0 0.0
  %2917 = vmatprep.subr.mxu0 0.0
  %2918 = vmatpush1.msra.mxu0 0.0
  %2919 = vmatprep.subr.mxu0 0.0
  %2920 = vmatpush1.msra.mxu0 0.0
  %2921 = vmatprep.subr.mxu0 0.0
  %2922 = vmatpush1.msra.mxu0 0.0
  %2923 = vmatprep.subr.mxu0 0.0
  %2924 = vmatpush1.msra.mxu0 %v2737
  %2925 = vmatprep.subr.mxu0 0.0
  %2926 = vmatpush2.msra.mxu0 0.0
  %2927 = vmatprep.subr.mxu0 0.0
  %2928 = vmatpush2.msra.mxu0 0.0
  %2929 = vmatprep.subr.mxu0 0.0
  %2930 = vmatpush2.msra.mxu0 0.0
  %2931 = vmatprep.subr.mxu0 0.0
  %2932 = vmatpush2.msra.mxu0 0.0
  %2933 = vmatprep.subr.mxu0 0.0
  %2934 = vmatpush2.msra.mxu0 0.0
  %2935 = vmatprep.subr.mxu0 0.0
  %2936 = vmatpush2.msra.mxu0 0.0
  %2937 = vmatprep.subr.mxu0 0.0
  %2938 = vmatpush2.msra.mxu0 0.0
  %2939 = vmatprep.subr.mxu0 0.0
  %2940 = vmatpush2.msra.mxu0 0.0
  %2941 = vmatprep.subr.mxu0 0.0
  %2942 = vmatpush2.msra.mxu0 0.0
  %2943 = vmatprep.subr.mxu0 0.0
  %2944 = vmatpush2.msra.mxu0 0.0
  %2945 = vmatprep.subr.mxu0 0.0
  %2946 = vmatpush2.msra.mxu0 0.0
  %2947 = vmatprep.subr.mxu0 0.0
  %2948 = vmatpush2.msra.mxu0 0.0
  %2949 = vmatprep.subr.mxu0 0.0
  %2950 = vmatpush2.msra.mxu0 0.0
  %2951 = vmatprep.subr.mxu0 0.0
  %2952 = vmatpush2.msra.mxu0 0.0
  %2953 = vmatprep.subr.mxu0 0.0
  %2954 = vmatpush2.msra.mxu0 0.0
  %2955 = vmatprep.subr.mxu0 0.0
  %2956 = vmatpush2.msra.mxu0 0.0
  %2957 = vmatprep.mubr.f32.mxu0 0.0
  %2958 = vmatmul.mubr.f32.gmra.mxu0 %v2891
  %v2959 = vpop.f32.mrf.mxu0
  %v2960 = vadd.f32 0.0, %v2959
  %v2961 = vpop.f32.mrf.mxu0
  %2962 = vdwg.mxu0
  %s2963 = scalar_lea.vmem %s15, 6
  %v2964 = vld [vmem:[%s2963] sm:$0x3]
  %v2966 = vsel %vm2739, %v2964, 0
  %2968 = vmatprep.subr.mxu0 0.0
  %2969 = vmatpush1.msra.mxu0 0.0
  %2970 = vmatprep.subr.mxu0 0.0
  %2971 = vmatpush1.msra.mxu0 0.0
  %2972 = vmatprep.subr.mxu0 0.0
  %2973 = vmatpush1.msra.mxu0 0.0
  %2974 = vmatprep.subr.mxu0 0.0
  %2975 = vmatpush1.msra.mxu0 0.0
  %2976 = vmatprep.subr.mxu0 0.0
  %2977 = vmatpush1.msra.mxu0 0.0
  %2978 = vmatprep.subr.mxu0 0.0
  %2979 = vmatpush1.msra.mxu0 0.0
  %2980 = vmatprep.subr.mxu0 0.0
  %2981 = vmatpush1.msra.mxu0 0.0
  %2982 = vmatprep.subr.mxu0 0.0
  %2983 = vmatpush1.msra.mxu0 0.0
  %2984 = vmatprep.subr.mxu0 0.0
  %2985 = vmatpush1.msra.mxu0 0.0
  %2986 = vmatprep.subr.mxu0 0.0
  %2987 = vmatpush1.msra.mxu0 0.0
  %2988 = vmatprep.subr.mxu0 0.0
  %2989 = vmatpush1.msra.mxu0 0.0
  %2990 = vmatprep.subr.mxu0 0.0
  %2991 = vmatpush1.msra.mxu0 0.0
  %2992 = vmatprep.subr.mxu0 0.0
  %2993 = vmatpush1.msra.mxu0 0.0
  %2994 = vmatprep.subr.mxu0 0.0
  %2995 = vmatpush1.msra.mxu0 0.0
  %2996 = vmatprep.subr.mxu0 0.0
  %2997 = vmatpush1.msra.mxu0 0.0
  %2998 = vmatprep.subr.mxu0 0.0
  %2999 = vmatpush1.msra.mxu0 %v2737
  %3000 = vmatprep.subr.mxu0 0.0
  %3001 = vmatpush2.msra.mxu0 0.0
  %3002 = vmatprep.subr.mxu0 0.0
  %3003 = vmatpush2.msra.mxu0 0.0
  %3004 = vmatprep.subr.mxu0 0.0
  %3005 = vmatpush2.msra.mxu0 0.0
  %3006 = vmatprep.subr.mxu0 0.0
  %3007 = vmatpush2.msra.mxu0 0.0
  %3008 = vmatprep.subr.mxu0 0.0
  %3009 = vmatpush2.msra.mxu0 0.0
  %3010 = vmatprep.subr.mxu0 0.0
  %3011 = vmatpush2.msra.mxu0 0.0
  %3012 = vmatprep.subr.mxu0 0.0
  %3013 = vmatpush2.msra.mxu0 0.0
  %3014 = vmatprep.subr.mxu0 0.0
  %3015 = vmatpush2.msra.mxu0 0.0
  %3016 = vmatprep.subr.mxu0 0.0
  %3017 = vmatpush2.msra.mxu0 0.0
  %3018 = vmatprep.subr.mxu0 0.0
  %3019 = vmatpush2.msra.mxu0 0.0
  %3020 = vmatprep.subr.mxu0 0.0
  %3021 = vmatpush2.msra.mxu0 0.0
  %3022 = vmatprep.subr.mxu0 0.0
  %3023 = vmatpush2.msra.mxu0 0.0
  %3024 = vmatprep.subr.mxu0 0.0
  %3025 = vmatpush2.msra.mxu0 0.0
  %3026 = vmatprep.subr.mxu0 0.0
  %3027 = vmatpush2.msra.mxu0 0.0
  %3028 = vmatprep.subr.mxu0 0.0
  %3029 = vmatpush2.msra.mxu0 0.0
  %3030 = vmatprep.subr.mxu0 0.0
  %3031 = vmatpush2.msra.mxu0 0.0
  %3032 = vmatprep.mubr.f32.mxu0 0.0
  %3033 = vmatmul.mubr.f32.gmra.mxu0 %v2966
  %v3034 = vpop.f32.mrf.mxu0
  %v3035 = vadd.f32 0.0, %v3034
  %v3036 = vpop.f32.mrf.mxu0
  %3037 = vdwg.mxu0
  %v3038 = vpack.c.bf16 %v2810, %v2810
  %v3039 = vpack.c.bf16 %v2885, %v2885
  %v3040 = vpack.c.bf16 %v2960, %v2960
  %v3041 = vpack.c.bf16 %v3035, %v3035
  %v3042 = vld [vmem:[%s16] sm:$0xf]
  %v3043 = vld [vmem:[%s16 + $0x4] sm:$0xf]
  %v3044 = vld [vmem:[%s16 + $0x8] sm:$0xf]
  %v3045 = vld [vmem:[%s16 + $0xc] sm:$0xf]
  %v3046 = vld [vmem:[%s16 + $0x10] sm:$0xf]
  %v3047 = vld [vmem:[%s16 + $0x14] sm:$0xf]
  %v3048 = vld [vmem:[%s16 + $0x18] sm:$0xf]
  %v3049 = vld [vmem:[%s16 + $0x1c] sm:$0xf]
  %v3050 = vld [vmem:[%s16 + $0x20] sm:$0xf]
  %v3051 = vld [vmem:[%s16 + $0x24] sm:$0xf]
  %v3052 = vld [vmem:[%s16 + $0x28] sm:$0xf]
  %v3053 = vld [vmem:[%s16 + $0x2c] sm:$0xf]
  %v3054 = vld [vmem:[%s16 + $0x30] sm:$0xf]
  %v3055 = vld [vmem:[%s16 + $0x34] sm:$0xf]
  %v3056 = vld [vmem:[%s16 + $0x38] sm:$0xf]
  %v3057 = vld [vmem:[%s16 + $0x3c] sm:$0xf]
  %v3058 = vld [vmem:[%s16 + $0x40] sm:$0xf]
  %v3059 = vld [vmem:[%s16 + $0x44] sm:$0xf]
  %v3060 = vld [vmem:[%s16 + $0x48] sm:$0xf]
  %v3061 = vld [vmem:[%s16 + $0x4c] sm:$0xf]
  %v3062 = vld [vmem:[%s16 + $0x50] sm:$0xf]
  %v3063 = vld [vmem:[%s16 + $0x54] sm:$0xf]
  %v3064 = vld [vmem:[%s16 + $0x58] sm:$0xf]
  %v3065 = vld [vmem:[%s16 + $0x5c] sm:$0xf]
  %v3066 = vld [vmem:[%s16 + $0x60] sm:$0xf]
  %v3067 = vld [vmem:[%s16 + $0x64] sm:$0xf]
  %v3068 = vld [vmem:[%s16 + $0x68] sm:$0xf]
  %v3069 = vld [vmem:[%s16 + $0x6c] sm:$0xf]
  %v3070 = vld [vmem:[%s16 + $0x70] sm:$0xf]
  %v3071 = vld [vmem:[%s16 + $0x74] sm:$0xf]
  %v3072 = vld [vmem:[%s16 + $0x78] sm:$0xf]
  %v3073 = vld [vmem:[%s16 + $0x7c] sm:$0xf]
  %v3074 = vld [vmem:[%s16 + $0x80] sm:$0xf]
  %v3075 = vld [vmem:[%s16 + $0x84] sm:$0xf]
  %v3076 = vld [vmem:[%s16 + $0x88] sm:$0xf]
  %v3077 = vld [vmem:[%s16 + $0x8c] sm:$0xf]
  %v3078 = vld [vmem:[%s16 + $0x90] sm:$0xf]
  %v3079 = vld [vmem:[%s16 + $0x94] sm:$0xf]
  %v3080 = vld [vmem:[%s16 + $0x98] sm:$0xf]
  %v3081 = vld [vmem:[%s16 + $0x9c] sm:$0xf]
  %v3082 = vld [vmem:[%s16 + $0xa0] sm:$0xf]
  %v3083 = vld [vmem:[%s16 + $0xa4] sm:$0xf]
  %v3084 = vld [vmem:[%s16 + $0xa8] sm:$0xf]
  %v3085 = vld [vmem:[%s16 + $0xac] sm:$0xf]
  %v3086 = vld [vmem:[%s16 + $0xb0] sm:$0xf]
  %v3087 = vld [vmem:[%s16 + $0xb4] sm:$0xf]
  %v3088 = vld [vmem:[%s16 + $0xb8] sm:$0xf]
  %v3089 = vld [vmem:[%s16 + $0xbc] sm:$0xf]
  %v3090 = vld [vmem:[%s16 + $0xc0] sm:$0xf]
  %v3091 = vld [vmem:[%s16 + $0xc4] sm:$0xf]
  %v3092 = vld [vmem:[%s16 + $0xc8] sm:$0xf]
  %v3093 = vld [vmem:[%s16 + $0xcc] sm:$0xf]
  %v3094 = vld [vmem:[%s16 + $0xd0] sm:$0xf]
  %v3095 = vld [vmem:[%s16 + $0xd4] sm:$0xf]
  %v3096 = vld [vmem:[%s16 + $0xd8] sm:$0xf]
  %v3097 = vld [vmem:[%s16 + $0xdc] sm:$0xf]
  %v3098 = vld [vmem:[%s16 + $0xe0] sm:$0xf]
  %v3099 = vld [vmem:[%s16 + $0xe4] sm:$0xf]
  %v3100 = vld [vmem:[%s16 + $0xe8] sm:$0xf]
  %v3101 = vld [vmem:[%s16 + $0xec] sm:$0xf]
  %v3102 = vld [vmem:[%s16 + $0xf0] sm:$0xf]
  %v3103 = vld [vmem:[%s16 + $0xf4] sm:$0xf]
  %v3104 = vld [vmem:[%s16 + $0xf8] sm:$0xf]
  %v3105 = vld [vmem:[%s16 + $0xfc] sm:$0xf]
  %v3170 = vunpack.c.l.b16 %v3042
  %v3171 = vunpack.c.l.b16 %v3043
  %v3172 = vunpack.c.l.b16 %v3044
  %v3173 = vunpack.c.l.b16 %v3045
  %v3174 = vunpack.c.l.b16 %v3046
  %v3175 = vunpack.c.l.b16 %v3047
  %v3176 = vunpack.c.l.b16 %v3048
  %v3177 = vunpack.c.l.b16 %v3049
  %v3178 = vunpack.c.l.b16 %v3050
  %v3179 = vunpack.c.l.b16 %v3051
  %v3180 = vunpack.c.l.b16 %v3052
  %v3181 = vunpack.c.l.b16 %v3053
  %v3182 = vunpack.c.l.b16 %v3054
  %v3183 = vunpack.c.l.b16 %v3055
  %v3184 = vunpack.c.l.b16 %v3056
  %v3185 = vunpack.c.l.b16 %v3057
  %v3186 = vunpack.c.l.b16 %v3058
  %v3187 = vunpack.c.l.b16 %v3059
  %v3188 = vunpack.c.l.b16 %v3060
  %v3189 = vunpack.c.l.b16 %v3061
  %v3190 = vunpack.c.l.b16 %v3062
  %v3191 = vunpack.c.l.b16 %v3063
  %v3192 = vunpack.c.l.b16 %v3064
  %v3193 = vunpack.c.l.b16 %v3065
  %v3194 = vunpack.c.l.b16 %v3066
  %v3195 = vunpack.c.l.b16 %v3067
  %v3196 = vunpack.c.l.b16 %v3068
  %v3197 = vunpack.c.l.b16 %v3069
  %v3198 = vunpack.c.l.b16 %v3070
  %v3199 = vunpack.c.l.b16 %v3071
  %v3200 = vunpack.c.l.b16 %v3072
  %v3201 = vunpack.c.l.b16 %v3073
  %v3202 = vunpack.c.l.b16 %v3074
  %v3203 = vunpack.c.l.b16 %v3075
  %v3204 = vunpack.c.l.b16 %v3076
  %v3205 = vunpack.c.l.b16 %v3077
  %v3206 = vunpack.c.l.b16 %v3078
  %v3207 = vunpack.c.l.b16 %v3079
  %v3208 = vunpack.c.l.b16 %v3080
  %v3209 = vunpack.c.l.b16 %v3081
  %v3210 = vunpack.c.l.b16 %v3082
  %v3211 = vunpack.c.l.b16 %v3083
  %v3212 = vunpack.c.l.b16 %v3084
  %v3213 = vunpack.c.l.b16 %v3085
  %v3214 = vunpack.c.l.b16 %v3086
  %v3215 = vunpack.c.l.b16 %v3087
  %v3216 = vunpack.c.l.b16 %v3088
  %v3217 = vunpack.c.l.b16 %v3089
  %v3218 = vunpack.c.l.b16 %v3090
  %v3219 = vunpack.c.l.b16 %v3091
  %v3220 = vunpack.c.l.b16 %v3092
  %v3221 = vunpack.c.l.b16 %v3093
  %v3222 = vunpack.c.l.b16 %v3094
  %v3223 = vunpack.c.l.b16 %v3095
  %v3224 = vunpack.c.l.b16 %v3096
  %v3225 = vunpack.c.l.b16 %v3097
  %v3226 = vunpack.c.l.b16 %v3098
  %v3227 = vunpack.c.l.b16 %v3099
  %v3228 = vunpack.c.l.b16 %v3100
  %v3229 = vunpack.c.l.b16 %v3101
  %v3230 = vunpack.c.l.b16 %v3102
  %v3231 = vunpack.c.l.b16 %v3103
  %v3232 = vunpack.c.l.b16 %v3104
  %v3233 = vunpack.c.l.b16 %v3105
  %v3234 = vpack.c.b16 %v3171, %v3170
  %v3235 = vpack.c.b16 %v3173, %v3172
  %v3236 = vpack.c.b16 %v3175, %v3174
  %v3237 = vpack.c.b16 %v3177, %v3176
  %v3238 = vpack.c.b16 %v3179, %v3178
  %v3239 = vpack.c.b16 %v3181, %v3180
  %v3240 = vpack.c.b16 %v3183, %v3182
  %v3241 = vpack.c.b16 %v3185, %v3184
  %v3242 = vpack.c.b16 %v3187, %v3186
  %v3243 = vpack.c.b16 %v3189, %v3188
  %v3244 = vpack.c.b16 %v3191, %v3190
  %v3245 = vpack.c.b16 %v3193, %v3192
  %v3246 = vpack.c.b16 %v3195, %v3194
  %v3247 = vpack.c.b16 %v3197, %v3196
  %v3248 = vpack.c.b16 %v3199, %v3198
  %v3249 = vpack.c.b16 %v3201, %v3200
  %v3250 = vpack.c.b16 %v3203, %v3202
  %v3251 = vpack.c.b16 %v3205, %v3204
  %v3252 = vpack.c.b16 %v3207, %v3206
  %v3253 = vpack.c.b16 %v3209, %v3208
  %v3254 = vpack.c.b16 %v3211, %v3210
  %v3255 = vpack.c.b16 %v3213, %v3212
  %v3256 = vpack.c.b16 %v3215, %v3214
  %v3257 = vpack.c.b16 %v3217, %v3216
  %v3258 = vpack.c.b16 %v3219, %v3218
  %v3259 = vpack.c.b16 %v3221, %v3220
  %v3260 = vpack.c.b16 %v3223, %v3222
  %v3261 = vpack.c.b16 %v3225, %v3224
  %v3262 = vpack.c.b16 %v3227, %v3226
  %v3263 = vpack.c.b16 %v3229, %v3228
  %v3264 = vpack.c.b16 %v3231, %v3230
  %v3265 = vpack.c.b16 %v3233, %v3232
  %3298 = vmatprep.subr.bf16.mxu0 0
  %3299 = vmatpush1.bf16.msra.mxu0 %v3241
  %3300 = vmatprep.subr.bf16.mxu0 0
  %3301 = vmatpush1.bf16.msra.mxu0 %v3240
  %3302 = vmatprep.subr.bf16.mxu0 0
  %3303 = vmatpush1.bf16.msra.mxu0 %v3239
  %3304 = vmatprep.subr.bf16.mxu0 0
  %3305 = vmatpush1.bf16.msra.mxu0 %v3238
  %3306 = vmatprep.subr.bf16.mxu0 0
  %3307 = vmatpush1.bf16.msra.mxu0 %v3237
  %3308 = vmatprep.subr.bf16.mxu0 0
  %3309 = vmatpush1.bf16.msra.mxu0 %v3236
  %3310 = vmatprep.subr.bf16.mxu0 0
  %3311 = vmatpush1.bf16.msra.mxu0 %v3235
  %3312 = vmatprep.subr.bf16.mxu0 0
  %3313 = vmatpush1.bf16.msra.mxu0 %v3234
  %3314 = vmatprep.subr.bf16.mxu0 0
  %3315 = vmatpush2.bf16.msra.mxu0 %v3249
  %3316 = vmatprep.subr.bf16.mxu0 0
  %3317 = vmatpush2.bf16.msra.mxu0 %v3248
  %3318 = vmatprep.subr.bf16.mxu0 0
  %3319 = vmatpush2.bf16.msra.mxu0 %v3247
  %3320 = vmatprep.subr.bf16.mxu0 0
  %3321 = vmatpush2.bf16.msra.mxu0 %v3246
  %3322 = vmatprep.subr.bf16.mxu0 0
  %3323 = vmatpush2.bf16.msra.mxu0 %v3245
  %3324 = vmatprep.subr.bf16.mxu0 0
  %3325 = vmatpush2.bf16.msra.mxu0 %v3244
  %3326 = vmatprep.subr.bf16.mxu0 0
  %3327 = vmatpush2.bf16.msra.mxu0 %v3243
  %3328 = vmatprep.subr.bf16.mxu0 0
  %3329 = vmatpush2.bf16.msra.mxu0 %v3242
  %3330 = vmatprep.mubr.bf16.mxu0 %v3039
  %3331 = vmatmul.mubr.bf16.gmra.mxu0 %v3038
  %v3332 = vpop.f32.mrf.mxu0
  %v3333 = vadd.f32 0.0, %v3332
  %v3334 = vpop.f32.mrf.mxu0
  %v3335 = vpop.f32.mrf.mxu0
  %v3336 = vpop.f32.mrf.mxu0
  %3337 = vdwg.mxu0
  %3338 = vmatprep.subr.bf16.mxu0 0
  %3339 = vmatpush1.bf16.msra.mxu0 %v3257
  %3340 = vmatprep.subr.bf16.mxu0 0
  %3341 = vmatpush1.bf16.msra.mxu0 %v3256
  %3342 = vmatprep.subr.bf16.mxu0 0
  %3343 = vmatpush1.bf16.msra.mxu0 %v3255
  %3344 = vmatprep.subr.bf16.mxu0 0
  %3345 = vmatpush1.bf16.msra.mxu0 %v3254
  %3346 = vmatprep.subr.bf16.mxu0 0
  %3347 = vmatpush1.bf16.msra.mxu0 %v3253
  %3348 = vmatprep.subr.bf16.mxu0 0
  %3349 = vmatpush1.bf16.msra.mxu0 %v3252
  %3350 = vmatprep.subr.bf16.mxu0 0
  %3351 = vmatpush1.bf16.msra.mxu0 %v3251
  %3352 = vmatprep.subr.bf16.mxu0 0
  %3353 = vmatpush1.bf16.msra.mxu0 %v3250
  %3354 = vmatprep.subr.bf16.mxu0 0
  %3355 = vmatpush2.bf16.msra.mxu0 %v3265
  %3356 = vmatprep.subr.bf16.mxu0 0
  %3357 = vmatpush2.bf16.msra.mxu0 %v3264
  %3358 = vmatprep.subr.bf16.mxu0 0
  %3359 = vmatpush2.bf16.msra.mxu0 %v3263
  %3360 = vmatprep.subr.bf16.mxu0 0
  %3361 = vmatpush2.bf16.msra.mxu0 %v3262
  %3362 = vmatprep.subr.bf16.mxu0 0
  %3363 = vmatpush2.bf16.msra.mxu0 %v3261
  %3364 = vmatprep.subr.bf16.mxu0 0
  %3365 = vmatpush2.bf16.msra.mxu0 %v3260
  %3366 = vmatprep.subr.bf16.mxu0 0
  %3367 = vmatpush2.bf16.msra.mxu0 %v3259
  %3368 = vmatprep.subr.bf16.mxu0 0
  %3369 = vmatpush2.bf16.msra.mxu0 %v3258
  %3370 = vmatprep.mubr.bf16.mxu0 %v3041
  %3371 = vmatmul.mubr.bf16.gmra.mxu0 %v3040
  %v3372 = vpop.f32.mrf.mxu0
  %v3373 = vadd.f32 %v3333, %v3372
  %v3374 = vpop.f32.mrf.mxu0
  %v3375 = vpop.f32.mrf.mxu0
  %v3376 = vpop.f32.mrf.mxu0
  %3377 = vdwg.mxu0
  %3378 = vst [vmem:[%s17] sm:$0x3] %v3373
  // Predicated region
  $region70: #{discriminator_forward.1} parent=0 // pred_check
    _
  $region71: #{discriminator_forward.1} parent=0 // pred_check_branch
    %3380 = sbr.rel (0) target = $region73
  $region72: #{discriminator_forward.1} parent=0 // pred_region
    _
  $region73: #{discriminator_forward.1} parent=0 // pred_fallthru
    _
  // Predicated region
  $region74: #{discriminator_forward.1} parent=0 // pred_check
    _
  $region75: #{discriminator_forward.1} parent=0 // pred_check_branch
    %3382 = sbr.rel (0) target = $region77
  $region76: #{discriminator_forward.1} parent=0 // pred_region
    _
  $region77: #{discriminator_forward.1} parent=0 // pred_fallthru
    _

</llo_original>
